<compile_context>
chip_gen: v6e
topology: v6e:2x2x1
jax: 0.10.0
libtpu: 0.0.40
codegen_flags: <defaults>
</compile_context>

<pallas_src>
import jax
import jax.numpy as jnp
import numpy as np
from jax.experimental import pallas as pl
from jax.experimental.pallas import tpu as pltpu

PADDING_VALUE = -32.0


# ----------------------------------------------------------------------------
# Fused kernel factory: all LSTM layers + pad-mask + Linear in one grid step.
# Ref order: x, (w_ih, w_hh, b) * L, lengths, w_p, b_p, pad_row, out,
#            xw_scr, hseq_scr.
# ----------------------------------------------------------------------------
def _make_fused_kernel(num_layers, Hp):
    H4 = 4 * Hp

    def kernel(*refs):
        x_ref = refs[0]
        layer_refs = refs[1:1 + 3 * num_layers]
        len_ref, wp_ref, bp_ref, padrow_ref = refs[1 + 3 * num_layers:
                                                   5 + 3 * num_layers]
        out_ref = refs[5 + 3 * num_layers]
        xw_scr, hseq_scr = refs[6 + 3 * num_layers:]

        T, bb, _ = x_ref.shape
        O = out_ref.shape[-1]

        for layer in range(num_layers):
            wih_ref = layer_refs[3 * layer + 0]
            whh_ref = layer_refs[3 * layer + 1]
            b_ref = layer_refs[3 * layer + 2]

            # Hoisted input projection for the whole slab: one big MXU matmul
            # (bf16 operands, f32 accumulate).  Layer >0 reads the previous
            # layer's hidden sequence straight out of VMEM (no HBM round trip).
            if layer == 0:
                inp = x_ref[...]                                  # already bf16
            else:
                inp = hseq_scr[...].astype(jnp.bfloat16)
            din = inp.shape[-1]
            xw = jnp.dot(inp.reshape(T * bb, din), wih_ref[...],
                         preferred_element_type=jnp.float32)
            xw_scr[...] = (xw + b_ref[...]).reshape(T, bb, H4)

            def step(t, carry, whh_ref=whh_ref):
                h, c = carry                                      # live in vregs
                gates = xw_scr[t] + jnp.dot(
                    h.astype(jnp.bfloat16), whh_ref[...],
                    preferred_element_type=jnp.float32)
                # Gate order [i, f, o, g]; all slices 128-lane aligned.
                sig = jax.nn.sigmoid(gates[:, :3 * Hp])
                i_g = sig[:, 0 * Hp:1 * Hp]
                f_g = sig[:, 1 * Hp:2 * Hp]
                o_g = sig[:, 2 * Hp:3 * Hp]
                g_g = jnp.tanh(gates[:, 3 * Hp:])
                c_new = f_g * c + i_g * g_g
                h_new = o_g * jnp.tanh(c_new)
                hseq_scr[t] = h_new
                return (h_new, c_new)

            zero = jnp.zeros((bb, Hp), jnp.float32)
            jax.lax.fori_loop(0, T, step, (zero, zero),
                              unroll=(True if T <= 32 else 8))

        # Epilogue: project the whole hidden slab (one MXU matmul, M = T*bb),
        # then apply the pad_packed_sequence mask AFTER the projection — the
        # -32 pad row maps to the precomputed constant pad_row.
        h_flat = hseq_scr[...].astype(jnp.bfloat16).reshape(T * bb, Hp)
        proj = jnp.dot(h_flat, wp_ref[...], preferred_element_type=jnp.float32)
        proj = (proj + bp_ref[...]).reshape(T, bb, O)
        t_idx = jax.lax.broadcasted_iota(jnp.int32, (T, bb, O), 0)
        len_b = jnp.broadcast_to(len_ref[...][None, :, :], (T, bb, O))
        pad_row = jnp.broadcast_to(padrow_ref[...][None, :, :], (T, bb, O))
        out_ref[...] = jnp.where(t_idx < len_b, proj, pad_row)

    return kernel


def _vmem_limit_bytes(T, bb, D, Hp, O, num_layers):
    """Scoped-VMEM budget: 2x-buffered I/O blocks + single-buffered weights +
    scratch, with headroom. (Default scoped limits are far below physical.)"""
    H4 = 4 * Hp
    f32, bf16 = 4, 2
    total = (
        2 * T * bb * D * bf16            # x block (double-buffered)
        + 2 * T * bb * O * f32           # out block (double-buffered)
        + 2 * bb * f32                   # lengths
        + D * H4 * bf16                  # layer-0 w_ih (Buffered(1))
        + (num_layers - 1) * Hp * H4 * bf16
        + num_layers * Hp * H4 * bf16    # w_hh
        + num_layers * H4 * f32          # biases
        + Hp * O * bf16 + 2 * O * f32    # projection weights / bias / pad_row
        + T * bb * H4 * f32              # xw_scr
        + T * bb * Hp * f32              # hseq_scr
    )
    return int(min(100 * 2**20, max(32 * 2**20, int(total * 1.5))))


# ----------------------------------------------------------------------------
# Full forward (wrapper).
# ----------------------------------------------------------------------------
def lstm_classifier_forward(x_btd, lengths, packed, *, batch_block=None):
    """x_btd: (B, T, D) batch-first.  lengths: host int array.  packed: see
    pack_params()."""
    lengths_np = np.asarray(lengths, dtype=np.int32)
    B, _, D = x_btd.shape
    t_out = int(lengths_np.max())        # pad_packed_sequence truncates to max

    layers = packed["lstm_layers"]
    num_layers = len(layers)
    Hp = packed["hidden_padded"]
    O = packed["w_proj"].shape[-1]
    H4 = 4 * Hp

    # Pad batch to a full sublane tile.
    Bp = int(np.ceil(B / 8) * 8)
    x = x_btd[:, :t_out].astype(jnp.bfloat16)          # bf16 MXU operand
    if Bp != B:
        x = jnp.pad(x, ((0, Bp - B), (0, 0), (0, 0)))
    # Time-major layout for the recurrence (leading-dim dynamic indexing is the
    # cheap VMEM path).  See TODO(synk) at top about folding these transposes.
    x_tbd = jnp.transpose(x, (1, 0, 2))                 # (t_out, Bp, D)

    lengths_pad = np.zeros((Bp, 1), dtype=np.int32)
    lengths_pad[:B, 0] = lengths_np
    lengths_dev = jnp.asarray(lengths_pad)

    if batch_block is None:
        # Keep >=128 rows per grid step so the serial h@Whh matmul fills the
        # MXU M-dim; only split (nb>=2, feeds both v7x cores) for large batches.
        batch_block = 128 if (Bp >= 256 and Bp % 128 == 0) else Bp
    bb = batch_block
    assert Bp % bb == 0 and bb % 8 == 0
    nb = Bp // bb
    T = t_out

    # Weights are grid-invariant -> single-buffer them (halves weight VMEM).
    wconst = dict(pipeline_mode=pl.Buffered(1))

    in_specs = [pl.BlockSpec((T, bb, D), lambda i: (0, i, 0))]
    args = [x_tbd]
    for (w_ih, w_hh, b) in layers:
        din = w_ih.shape[0]
        in_specs += [
            pl.BlockSpec((din, H4), lambda i: (0, 0), **wconst),
            pl.BlockSpec((Hp, H4), lambda i: (0, 0), **wconst),
            pl.BlockSpec((1, H4), lambda i: (0, 0), **wconst),
        ]
        args += [w_ih, w_hh, b]
    in_specs += [
        pl.BlockSpec((bb, 1), lambda i: (i, 0)),
        pl.BlockSpec((Hp, O), lambda i: (0, 0), **wconst),
        pl.BlockSpec((1, O), lambda i: (0, 0), **wconst),
        pl.BlockSpec((1, O), lambda i: (0, 0), **wconst),
    ]
    args += [lengths_dev, packed["w_proj"], packed["b_proj"], packed["pad_row"]]

    out_tbo = pl.pallas_call(
        _make_fused_kernel(num_layers, Hp),
        out_shape=jax.ShapeDtypeStruct((T, Bp, O), jnp.float32),
        grid_spec=pltpu.PrefetchScalarGridSpec(
            num_scalar_prefetch=0,
            grid=(nb,),
            in_specs=in_specs,
            out_specs=pl.BlockSpec((T, bb, O), lambda i: (0, i, 0)),
            scratch_shapes=[
                # TODO(synk): time-chunk these for v7x's 64 MiB at large T*bb*H.
                pltpu.VMEM((T, bb, H4), jnp.float32),   # hoisted x @ Wih + b
                pltpu.VMEM((T, bb, Hp), jnp.float32),   # hidden sequence
            ],
        ),
        compiler_params=pltpu.CompilerParams(
            dimension_semantics=("parallel",),
            vmem_limit_bytes=_vmem_limit_bytes(T, bb, D, Hp, O, num_layers),
        ),
    )(*args)

    return jnp.transpose(out_tbo, (1, 0, 2))[:B]        # (B, t_out, O)


# ----------------------------------------------------------------------------
# Parameter handling.
# ----------------------------------------------------------------------------
def init_params(key, input_size, hidden_size, num_layers, output_size):
    """Raw f32 params, PyTorch-equivalent layout per layer:
       w_ih = weight_ih_l{k}.T -> (Din, 4H), gate order [i, f, g, o]
       w_hh = weight_hh_l{k}.T -> (H, 4H)
       b    = (bias_ih_l{k} + bias_hh_l{k})[None, :]                     """
    params = {"lstm_layers": []}
    scale = 1.0 / np.sqrt(hidden_size)
    for layer in range(num_layers):
        d_in = input_size if layer == 0 else hidden_size
        key, k1, k2, k3 = jax.random.split(key, 4)
        w_ih = jax.random.uniform(k1, (d_in, 4 * hidden_size), jnp.float32, -scale, scale)
        w_hh = jax.random.uniform(k2, (hidden_size, 4 * hidden_size), jnp.float32, -scale, scale)
        b = jax.random.uniform(k3, (1, 4 * hidden_size), jnp.float32, -scale, scale)
        params["lstm_layers"].append((w_ih, w_hh, b))
    key, k4, k5 = jax.random.split(key, 3)
    params["w_proj"] = jax.random.uniform(k4, (hidden_size, output_size), jnp.float32, -scale, scale)
    params["b_proj"] = jax.random.uniform(k5, (1, output_size), jnp.float32, -scale, scale)
    return params


def pack_params(raw, hidden_size):
    """Reorder gates to [i,f,o,g], pad per-gate width to a multiple of 128 and
    zero-pad the padded hidden rows (padded units provably stay 0 through the
    recurrence), cast matmul weights to bf16, precompute pad_row."""
    H = hidden_size
    Hp = ((H + 127) // 128) * 128
    pad_h = Hp - H

    def reorder_pad_cols(w):
        gi, gf, gg, go = (w[:, k * H:(k + 1) * H] for k in range(4))
        cols = [jnp.pad(c, ((0, 0), (0, pad_h))) for c in (gi, gf, go, gg)]
        return jnp.concatenate(cols, axis=1)

    layers = []
    for idx, (w_ih, w_hh, b) in enumerate(raw["lstm_layers"]):
        w_ih_p = reorder_pad_cols(w_ih)
        if idx > 0:                                  # pad the H input rows too
            w_ih_p = jnp.pad(w_ih_p, ((0, pad_h), (0, 0)))
        w_hh_p = jnp.pad(reorder_pad_cols(w_hh), ((0, pad_h), (0, 0)))
        b_p = reorder_pad_cols(b)
        layers.append((w_ih_p.astype(jnp.bfloat16),
                       w_hh_p.astype(jnp.bfloat16),
                       b_p.astype(jnp.float32)))

    w_proj = jnp.pad(raw["w_proj"], ((0, pad_h), (0, 0))).astype(jnp.bfloat16)
    b_proj = raw["b_proj"].astype(jnp.float32)
    # Projection of the constant -32 pad row (mask is applied after the Linear).
    pad_row = (PADDING_VALUE
               * jnp.sum(w_proj.astype(jnp.float32), axis=0, keepdims=True)
               + b_proj).astype(jnp.float32)
    return {"lstm_layers": layers, "w_proj": w_proj, "b_proj": b_proj,
            "pad_row": pad_row, "hidden_padded": Hp}


# ----------------------------------------------------------------------------
# Pure-JAX reference (mirrors MXU numerics: bf16 matmul operands, f32 accum /
# elementwise).  Strict f32 PyTorch parity would need HIGHEST-precision dots.
# ----------------------------------------------------------------------------
def reference_forward(x_btd, lengths, raw):
    lengths_np = np.asarray(lengths, dtype=np.int32)
    t_out = int(lengths_np.max())
    B = x_btd.shape[0]

    def bdot(a, w):
        return jnp.dot(a.astype(jnp.bfloat16), w.astype(jnp.bfloat16),
                       preferred_element_type=jnp.float32)

    h_seq = jnp.transpose(x_btd[:, :t_out].astype(jnp.float32), (1, 0, 2))
    for (w_ih, w_hh, b) in raw["lstm_layers"]:
        H = w_hh.shape[0]

        def step(carry, x_t, w_ih=w_ih, w_hh=w_hh, b=b, H=H):
            h, c = carry
            gates = bdot(x_t, w_ih) + bdot(h, w_hh) + b
            i = jax.nn.sigmoid(gates[:, 0 * H:1 * H])
            f = jax.nn.sigmoid(gates[:, 1 * H:2 * H])
            g = jnp.tanh(gates[:, 2 * H:3 * H])
            o = jax.nn.sigmoid(gates[:, 3 * H:4 * H])
            c = f * c + i * g
            h = o * jnp.tanh(c)
            return (h, c), h

        init = (jnp.zeros((B, H), jnp.float32), jnp.zeros((B, H), jnp.float32))
        _, h_seq = jax.lax.scan(step, init, h_seq)

    mask = (jnp.arange(t_out)[:, None, None]
            < jnp.asarray(lengths_np)[None, :, None])
    h_seq = jnp.where(mask, h_seq, jnp.float32(PADDING_VALUE))
    out = bdot(h_seq, raw["w_proj"]) + raw["b_proj"]
    return jnp.transpose(out, (1, 0, 2))


if __name__ == "__main__":
    B, T = 2, 8
    input_size, hidden_size, num_layers, output_size = 16, 32, 2, 4

    key = jax.random.PRNGKey(0)
    key, kx = jax.random.split(key)
    x = jax.random.normal(kx, (B, T, input_size), jnp.float32)   # batch-first
    lengths = np.array([8, 5], dtype=np.int32)

    raw = init_params(key, input_size, hidden_size, num_layers, output_size)
    packed = pack_params(raw, hidden_size)

    out = jax.block_until_ready(lstm_classifier_forward(x, lengths, packed))
    ref = jax.block_until_ready(reference_forward(x, lengths, raw))

    # bf16 MXU operands in kernel and reference -> tolerance reflects bf16 paths.
    np.testing.assert_allclose(np.asarray(out), np.asarray(ref),
                               atol=5e-3, rtol=5e-3)
    assert out.shape == (B, int(lengths.max()), output_size)
    print("KERNEL_OK")
</pallas_src>

<mosaic_0001>
module attributes {stable_mosaic.version = 11 : i64} {
  func.func @kernel(%arg0: i32, %arg1: memref<8x8x16xbf16, #tpu.memory_space<vmem>>, %arg2: memref<16x512xbf16, #tpu.memory_space<vmem>>, %arg3: memref<128x512xbf16, #tpu.memory_space<vmem>>, %arg4: memref<1x512xf32, #tpu.memory_space<vmem>>, %arg5: memref<128x512xbf16, #tpu.memory_space<vmem>>, %arg6: memref<128x512xbf16, #tpu.memory_space<vmem>>, %arg7: memref<1x512xf32, #tpu.memory_space<vmem>>, %arg8: memref<8x1xi32, #tpu.memory_space<vmem>>, %arg9: memref<128x4xbf16, #tpu.memory_space<vmem>>, %arg10: memref<1x4xf32, #tpu.memory_space<vmem>>, %arg11: memref<1x4xf32, #tpu.memory_space<vmem>>, %arg12: memref<8x8x4xf32, #tpu.memory_space<vmem>>, %arg13: memref<8x8x512xf32, #tpu.memory_space<vmem>>, %arg14: memref<8x8x128xf32, #tpu.memory_space<vmem>>) attributes {dimension_semantics = [#tpu.dimension_semantics<parallel>], iteration_bounds = array<i64: 1>, scalar_prefetch = 0 : i64, scratch_operands = 2 : i64, tpu.core_type = #tpu.core_type<tc>, window_params = [{transform_indices = @transform_0, window_bounds = array<i64: 8, 8, 16>}, {pipeline_mode = #tpu.pipeline_mode<synchronous>, transform_indices = @transform_1, window_bounds = array<i64: 16, 512>}, {pipeline_mode = #tpu.pipeline_mode<synchronous>, transform_indices = @transform_2, window_bounds = array<i64: 128, 512>}, {pipeline_mode = #tpu.pipeline_mode<synchronous>, transform_indices = @transform_3, window_bounds = array<i64: 1, 512>}, {pipeline_mode = #tpu.pipeline_mode<synchronous>, transform_indices = @transform_4, window_bounds = array<i64: 128, 512>}, {pipeline_mode = #tpu.pipeline_mode<synchronous>, transform_indices = @transform_5, window_bounds = array<i64: 128, 512>}, {pipeline_mode = #tpu.pipeline_mode<synchronous>, transform_indices = @transform_6, window_bounds = array<i64: 1, 512>}, {transform_indices = @transform_7, window_bounds = array<i64: 8, 1>}, {pipeline_mode = #tpu.pipeline_mode<synchronous>, transform_indices = @transform_8, window_bounds = array<i64: 128, 4>}, {pipeline_mode = #tpu.pipeline_mode<synchronous>, transform_indices = @transform_9, window_bounds = array<i64: 1, 4>}, {pipeline_mode = #tpu.pipeline_mode<synchronous>, transform_indices = @transform_10, window_bounds = array<i64: 1, 4>}, {transform_indices = @transform_11, window_bounds = array<i64: 8, 8, 4>}]} {
    %c0 = arith.constant 0 : index
    %c0_0 = arith.constant 0 : index
    %c0_1 = arith.constant 0 : index
    %0 = vector.load %arg1[%c0, %c0_0, %c0_1] : memref<8x8x16xbf16, #tpu.memory_space<vmem>>, vector<8x8x16xbf16>
    %1 = vector.shape_cast %0 : vector<8x8x16xbf16> to vector<64x16xbf16>
    %c0_2 = arith.constant 0 : index
    %c0_3 = arith.constant 0 : index
    %2 = vector.load %arg2[%c0_2, %c0_3] : memref<16x512xbf16, #tpu.memory_space<vmem>>, vector<16x512xbf16>
    %cst = arith.constant dense<0.000000e+00> : vector<64x512xf32>
    %3 = tpu.matmul %1, %2, %cst {dimension_numbers = #tpu.dot_dimension_numbers<[1], [0], [0], [1], [0, 0, 1, 1], [], []>} : vector<64x16xbf16>, vector<16x512xbf16>, vector<64x512xf32> -> vector<64x512xf32>
    %c0_4 = arith.constant 0 : index
    %c0_5 = arith.constant 0 : index
    %4 = vector.load %arg4[%c0_4, %c0_5] : memref<1x512xf32, #tpu.memory_space<vmem>>, vector<1x512xf32>
    %5 = vector.broadcast %4 : vector<1x512xf32> to vector<64x512xf32>
    %6 = arith.addf %3, %5 : vector<64x512xf32>
    %7 = vector.shape_cast %6 : vector<64x512xf32> to vector<8x8x512xf32>
    %c0_6 = arith.constant 0 : index
    %c0_7 = arith.constant 0 : index
    %c0_8 = arith.constant 0 : index
    %8 = vector.load %arg13[%c0_6, %c0_7, %c0_8] : memref<8x8x512xf32, #tpu.memory_space<vmem>>, vector<8x8x512xf32>
    tpu.vector_store %arg13[%c0_6, %c0_7, %c0_8], %7 {strides = array<i32>} : memref<8x8x512xf32, #tpu.memory_space<vmem>>, vector<8x8x512xf32>,
    %cst_9 = arith.constant 0.000000e+00 : f32
    %9 = vector.broadcast %cst_9 : f32 to vector<8x128xf32>
    %c0_i32 = arith.constant 0 : i32
    %10 = arith.index_cast %c0_i32 : i32 to index
    %c0_10 = arith.constant 0 : index
    %c0_11 = arith.constant 0 : index
    %11 = vector.load %arg13[%10, %c0_10, %c0_11] : memref<8x8x512xf32, #tpu.memory_space<vmem>>, vector<1x8x512xf32>
    %12 = vector.shape_cast %11 : vector<1x8x512xf32> to vector<8x512xf32>
    %13 = arith.truncf %9 : vector<8x128xf32> to vector<8x128xbf16>
    %c0_12 = arith.constant 0 : index
    %c0_13 = arith.constant 0 : index
    %14 = vector.load %arg3[%c0_12, %c0_13] : memref<128x512xbf16, #tpu.memory_space<vmem>>, vector<128x512xbf16>
    %cst_14 = arith.constant dense<0.000000e+00> : vector<8x512xf32>
    %15 = tpu.matmul %13, %14, %cst_14 {dimension_numbers = #tpu.dot_dimension_numbers<[1], [0], [0], [1], [0, 0, 1, 1], [], []>} : vector<8x128xbf16>, vector<128x512xbf16>, vector<8x512xf32> -> vector<8x512xf32>
    %16 = arith.addf %12, %15 : vector<8x512xf32>
    %17 = vector.extract_strided_slice %16 {offsets = [0, 0], sizes = [8, 384], strides = [1, 1]} : vector<8x512xf32> to vector<8x384xf32>
    %18 = arith.negf %17 : vector<8x384xf32>
    %19 = math.exp %18 : vector<8x384xf32>
    %cst_15 = arith.constant 1.000000e+00 : f32
    %20 = vector.broadcast %cst_15 : f32 to vector<8x384xf32>
    %21 = arith.addf %20, %19 : vector<8x384xf32>
    %22 = arith.divf %20, %21 : vector<8x384xf32>
    %23 = vector.extract_strided_slice %22 {offsets = [0, 0], sizes = [8, 128], strides = [1, 1]} : vector<8x384xf32> to vector<8x128xf32>
    %24 = vector.extract_strided_slice %22 {offsets = [0, 128], sizes = [8, 128], strides = [1, 1]} : vector<8x384xf32> to vector<8x128xf32>
    %25 = vector.extract_strided_slice %22 {offsets = [0, 256], sizes = [8, 128], strides = [1, 1]} : vector<8x384xf32> to vector<8x128xf32>
    %26 = vector.extract_strided_slice %16 {offsets = [0, 384], sizes = [8, 128], strides = [1, 1]} : vector<8x512xf32> to vector<8x128xf32>
    %27 = math.tanh %26 : vector<8x128xf32>
    %28 = arith.mulf %24, %9 : vector<8x128xf32>
    %29 = arith.mulf %23, %27 : vector<8x128xf32>
    %30 = arith.addf %28, %29 : vector<8x128xf32>
    %31 = math.tanh %30 : vector<8x128xf32>
    %32 = arith.mulf %25, %31 : vector<8x128xf32>
    %33 = arith.index_cast %c0_i32 : i32 to index
    %c0_16 = arith.constant 0 : index
    %c0_17 = arith.constant 0 : index
    %34 = vector.load %arg14[%33, %c0_16, %c0_17] : memref<8x8x128xf32, #tpu.memory_space<vmem>>, vector<1x8x128xf32>
    %35 = vector.shape_cast %34 : vector<1x8x128xf32> to vector<8x128xf32>
    %36 = vector.shape_cast %32 : vector<8x128xf32> to vector<1x8x128xf32>
    tpu.vector_store %arg14[%33, %c0_16, %c0_17], %36 {strides = array<i32>} : memref<8x8x128xf32, #tpu.memory_space<vmem>>, vector<1x8x128xf32>,
    %c1_i32 = arith.constant 1 : i32
    %37 = arith.index_cast %c1_i32 : i32 to index
    %c0_18 = arith.constant 0 : index
    %c0_19 = arith.constant 0 : index
    %38 = vector.load %arg13[%37, %c0_18, %c0_19] : memref<8x8x512xf32, #tpu.memory_space<vmem>>, vector<1x8x512xf32>
    %39 = vector.shape_cast %38 : vector<1x8x512xf32> to vector<8x512xf32>
    %40 = arith.truncf %32 : vector<8x128xf32> to vector<8x128xbf16>
    %c0_20 = arith.constant 0 : index
    %c0_21 = arith.constant 0 : index
    %41 = vector.load %arg3[%c0_20, %c0_21] : memref<128x512xbf16, #tpu.memory_space<vmem>>, vector<128x512xbf16>
    %cst_22 = arith.constant dense<0.000000e+00> : vector<8x512xf32>
    %42 = tpu.matmul %40, %41, %cst_22 {dimension_numbers = #tpu.dot_dimension_numbers<[1], [0], [0], [1], [0, 0, 1, 1], [], []>} : vector<8x128xbf16>, vector<128x512xbf16>, vector<8x512xf32> -> vector<8x512xf32>
    %43 = arith.addf %39, %42 : vector<8x512xf32>
    %44 = vector.extract_strided_slice %43 {offsets = [0, 0], sizes = [8, 384], strides = [1, 1]} : vector<8x512xf32> to vector<8x384xf32>
    %45 = arith.negf %44 : vector<8x384xf32>
    %46 = math.exp %45 : vector<8x384xf32>
    %cst_23 = arith.constant 1.000000e+00 : f32
    %47 = vector.broadcast %cst_23 : f32 to vector<8x384xf32>
    %48 = arith.addf %47, %46 : vector<8x384xf32>
    %49 = arith.divf %47, %48 : vector<8x384xf32>
    %50 = vector.extract_strided_slice %49 {offsets = [0, 0], sizes = [8, 128], strides = [1, 1]} : vector<8x384xf32> to vector<8x128xf32>
    %51 = vector.extract_strided_slice %49 {offsets = [0, 128], sizes = [8, 128], strides = [1, 1]} : vector<8x384xf32> to vector<8x128xf32>
    %52 = vector.extract_strided_slice %49 {offsets = [0, 256], sizes = [8, 128], strides = [1, 1]} : vector<8x384xf32> to vector<8x128xf32>
    %53 = vector.extract_strided_slice %43 {offsets = [0, 384], sizes = [8, 128], strides = [1, 1]} : vector<8x512xf32> to vector<8x128xf32>
    %54 = math.tanh %53 : vector<8x128xf32>
    %55 = arith.mulf %51, %30 : vector<8x128xf32>
    %56 = arith.mulf %50, %54 : vector<8x128xf32>
    %57 = arith.addf %55, %56 : vector<8x128xf32>
    %58 = math.tanh %57 : vector<8x128xf32>
    %59 = arith.mulf %52, %58 : vector<8x128xf32>
    %60 = arith.index_cast %c1_i32 : i32 to index
    %c0_24 = arith.constant 0 : index
    %c0_25 = arith.constant 0 : index
    %61 = vector.load %arg14[%60, %c0_24, %c0_25] : memref<8x8x128xf32, #tpu.memory_space<vmem>>, vector<1x8x128xf32>
    %62 = vector.shape_cast %61 : vector<1x8x128xf32> to vector<8x128xf32>
    %63 = vector.shape_cast %59 : vector<8x128xf32> to vector<1x8x128xf32>
    tpu.vector_store %arg14[%60, %c0_24, %c0_25], %63 {strides = array<i32>} : memref<8x8x128xf32, #tpu.memory_space<vmem>>, vector<1x8x128xf32>,
    %c2_i32 = arith.constant 2 : i32
    %64 = arith.index_cast %c2_i32 : i32 to index
    %c0_26 = arith.constant 0 : index
    %c0_27 = arith.constant 0 : index
    %65 = vector.load %arg13[%64, %c0_26, %c0_27] : memref<8x8x512xf32, #tpu.memory_space<vmem>>, vector<1x8x512xf32>
    %66 = vector.shape_cast %65 : vector<1x8x512xf32> to vector<8x512xf32>
    %67 = arith.truncf %59 : vector<8x128xf32> to vector<8x128xbf16>
    %c0_28 = arith.constant 0 : index
    %c0_29 = arith.constant 0 : index
    %68 = vector.load %arg3[%c0_28, %c0_29] : memref<128x512xbf16, #tpu.memory_space<vmem>>, vector<128x512xbf16>
    %cst_30 = arith.constant dense<0.000000e+00> : vector<8x512xf32>
    %69 = tpu.matmul %67, %68, %cst_30 {dimension_numbers = #tpu.dot_dimension_numbers<[1], [0], [0], [1], [0, 0, 1, 1], [], []>} : vector<8x128xbf16>, vector<128x512xbf16>, vector<8x512xf32> -> vector<8x512xf32>
    %70 = arith.addf %66, %69 : vector<8x512xf32>
    %71 = vector.extract_strided_slice %70 {offsets = [0, 0], sizes = [8, 384], strides = [1, 1]} : vector<8x512xf32> to vector<8x384xf32>
    %72 = arith.negf %71 : vector<8x384xf32>
    %73 = math.exp %72 : vector<8x384xf32>
    %cst_31 = arith.constant 1.000000e+00 : f32
    %74 = vector.broadcast %cst_31 : f32 to vector<8x384xf32>
    %75 = arith.addf %74, %73 : vector<8x384xf32>
    %76 = arith.divf %74, %75 : vector<8x384xf32>
    %77 = vector.extract_strided_slice %76 {offsets = [0, 0], sizes = [8, 128], strides = [1, 1]} : vector<8x384xf32> to vector<8x128xf32>
    %78 = vector.extract_strided_slice %76 {offsets = [0, 128], sizes = [8, 128], strides = [1, 1]} : vector<8x384xf32> to vector<8x128xf32>
    %79 = vector.extract_strided_slice %76 {offsets = [0, 256], sizes = [8, 128], strides = [1, 1]} : vector<8x384xf32> to vector<8x128xf32>
    %80 = vector.extract_strided_slice %70 {offsets = [0, 384], sizes = [8, 128], strides = [1, 1]} : vector<8x512xf32> to vector<8x128xf32>
    %81 = math.tanh %80 : vector<8x128xf32>
    %82 = arith.mulf %78, %57 : vector<8x128xf32>
    %83 = arith.mulf %77, %81 : vector<8x128xf32>
    %84 = arith.addf %82, %83 : vector<8x128xf32>
    %85 = math.tanh %84 : vector<8x128xf32>
    %86 = arith.mulf %79, %85 : vector<8x128xf32>
    %87 = arith.index_cast %c2_i32 : i32 to index
    %c0_32 = arith.constant 0 : index
    %c0_33 = arith.constant 0 : index
    %88 = vector.load %arg14[%87, %c0_32, %c0_33] : memref<8x8x128xf32, #tpu.memory_space<vmem>>, vector<1x8x128xf32>
    %89 = vector.shape_cast %88 : vector<1x8x128xf32> to vector<8x128xf32>
    %90 = vector.shape_cast %86 : vector<8x128xf32> to vector<1x8x128xf32>
    tpu.vector_store %arg14[%87, %c0_32, %c0_33], %90 {strides = array<i32>} : memref<8x8x128xf32, #tpu.memory_space<vmem>>, vector<1x8x128xf32>,
    %c3_i32 = arith.constant 3 : i32
    %91 = arith.index_cast %c3_i32 : i32 to index
    %c0_34 = arith.constant 0 : index
    %c0_35 = arith.constant 0 : index
    %92 = vector.load %arg13[%91, %c0_34, %c0_35] : memref<8x8x512xf32, #tpu.memory_space<vmem>>, vector<1x8x512xf32>
    %93 = vector.shape_cast %92 : vector<1x8x512xf32> to vector<8x512xf32>
    %94 = arith.truncf %86 : vector<8x128xf32> to vector<8x128xbf16>
    %c0_36 = arith.constant 0 : index
    %c0_37 = arith.constant 0 : index
    %95 = vector.load %arg3[%c0_36, %c0_37] : memref<128x512xbf16, #tpu.memory_space<vmem>>, vector<128x512xbf16>
    %cst_38 = arith.constant dense<0.000000e+00> : vector<8x512xf32>
    %96 = tpu.matmul %94, %95, %cst_38 {dimension_numbers = #tpu.dot_dimension_numbers<[1], [0], [0], [1], [0, 0, 1, 1], [], []>} : vector<8x128xbf16>, vector<128x512xbf16>, vector<8x512xf32> -> vector<8x512xf32>
    %97 = arith.addf %93, %96 : vector<8x512xf32>
    %98 = vector.extract_strided_slice %97 {offsets = [0, 0], sizes = [8, 384], strides = [1, 1]} : vector<8x512xf32> to vector<8x384xf32>
    %99 = arith.negf %98 : vector<8x384xf32>
    %100 = math.exp %99 : vector<8x384xf32>
    %cst_39 = arith.constant 1.000000e+00 : f32
    %101 = vector.broadcast %cst_39 : f32 to vector<8x384xf32>
    %102 = arith.addf %101, %100 : vector<8x384xf32>
    %103 = arith.divf %101, %102 : vector<8x384xf32>
    %104 = vector.extract_strided_slice %103 {offsets = [0, 0], sizes = [8, 128], strides = [1, 1]} : vector<8x384xf32> to vector<8x128xf32>
    %105 = vector.extract_strided_slice %103 {offsets = [0, 128], sizes = [8, 128], strides = [1, 1]} : vector<8x384xf32> to vector<8x128xf32>
    %106 = vector.extract_strided_slice %103 {offsets = [0, 256], sizes = [8, 128], strides = [1, 1]} : vector<8x384xf32> to vector<8x128xf32>
    %107 = vector.extract_strided_slice %97 {offsets = [0, 384], sizes = [8, 128], strides = [1, 1]} : vector<8x512xf32> to vector<8x128xf32>
    %108 = math.tanh %107 : vector<8x128xf32>
    %109 = arith.mulf %105, %84 : vector<8x128xf32>
    %110 = arith.mulf %104, %108 : vector<8x128xf32>
    %111 = arith.addf %109, %110 : vector<8x128xf32>
    %112 = math.tanh %111 : vector<8x128xf32>
    %113 = arith.mulf %106, %112 : vector<8x128xf32>
    %114 = arith.index_cast %c3_i32 : i32 to index
    %c0_40 = arith.constant 0 : index
    %c0_41 = arith.constant 0 : index
    %115 = vector.load %arg14[%114, %c0_40, %c0_41] : memref<8x8x128xf32, #tpu.memory_space<vmem>>, vector<1x8x128xf32>
    %116 = vector.shape_cast %115 : vector<1x8x128xf32> to vector<8x128xf32>
    %117 = vector.shape_cast %113 : vector<8x128xf32> to vector<1x8x128xf32>
    tpu.vector_store %arg14[%114, %c0_40, %c0_41], %117 {strides = array<i32>} : memref<8x8x128xf32, #tpu.memory_space<vmem>>, vector<1x8x128xf32>,
    %c4_i32 = arith.constant 4 : i32
    %118 = arith.index_cast %c4_i32 : i32 to index
    %c0_42 = arith.constant 0 : index
    %c0_43 = arith.constant 0 : index
    %119 = vector.load %arg13[%118, %c0_42, %c0_43] : memref<8x8x512xf32, #tpu.memory_space<vmem>>, vector<1x8x512xf32>
    %120 = vector.shape_cast %119 : vector<1x8x512xf32> to vector<8x512xf32>
    %121 = arith.truncf %113 : vector<8x128xf32> to vector<8x128xbf16>
    %c0_44 = arith.constant 0 : index
    %c0_45 = arith.constant 0 : index
    %122 = vector.load %arg3[%c0_44, %c0_45] : memref<128x512xbf16, #tpu.memory_space<vmem>>, vector<128x512xbf16>
    %cst_46 = arith.constant dense<0.000000e+00> : vector<8x512xf32>
    %123 = tpu.matmul %121, %122, %cst_46 {dimension_numbers = #tpu.dot_dimension_numbers<[1], [0], [0], [1], [0, 0, 1, 1], [], []>} : vector<8x128xbf16>, vector<128x512xbf16>, vector<8x512xf32> -> vector<8x512xf32>
    %124 = arith.addf %120, %123 : vector<8x512xf32>
    %125 = vector.extract_strided_slice %124 {offsets = [0, 0], sizes = [8, 384], strides = [1, 1]} : vector<8x512xf32> to vector<8x384xf32>
    %126 = arith.negf %125 : vector<8x384xf32>
    %127 = math.exp %126 : vector<8x384xf32>
    %cst_47 = arith.constant 1.000000e+00 : f32
    %128 = vector.broadcast %cst_47 : f32 to vector<8x384xf32>
    %129 = arith.addf %128, %127 : vector<8x384xf32>
    %130 = arith.divf %128, %129 : vector<8x384xf32>
    %131 = vector.extract_strided_slice %130 {offsets = [0, 0], sizes = [8, 128], strides = [1, 1]} : vector<8x384xf32> to vector<8x128xf32>
    %132 = vector.extract_strided_slice %130 {offsets = [0, 128], sizes = [8, 128], strides = [1, 1]} : vector<8x384xf32> to vector<8x128xf32>
    %133 = vector.extract_strided_slice %130 {offsets = [0, 256], sizes = [8, 128], strides = [1, 1]} : vector<8x384xf32> to vector<8x128xf32>
    %134 = vector.extract_strided_slice %124 {offsets = [0, 384], sizes = [8, 128], strides = [1, 1]} : vector<8x512xf32> to vector<8x128xf32>
    %135 = math.tanh %134 : vector<8x128xf32>
    %136 = arith.mulf %132, %111 : vector<8x128xf32>
    %137 = arith.mulf %131, %135 : vector<8x128xf32>
    %138 = arith.addf %136, %137 : vector<8x128xf32>
    %139 = math.tanh %138 : vector<8x128xf32>
    %140 = arith.mulf %133, %139 : vector<8x128xf32>
    %141 = arith.index_cast %c4_i32 : i32 to index
    %c0_48 = arith.constant 0 : index
    %c0_49 = arith.constant 0 : index
    %142 = vector.load %arg14[%141, %c0_48, %c0_49] : memref<8x8x128xf32, #tpu.memory_space<vmem>>, vector<1x8x128xf32>
    %143 = vector.shape_cast %142 : vector<1x8x128xf32> to vector<8x128xf32>
    %144 = vector.shape_cast %140 : vector<8x128xf32> to vector<1x8x128xf32>
    tpu.vector_store %arg14[%141, %c0_48, %c0_49], %144 {strides = array<i32>} : memref<8x8x128xf32, #tpu.memory_space<vmem>>, vector<1x8x128xf32>,
    %c5_i32 = arith.constant 5 : i32
    %145 = arith.index_cast %c5_i32 : i32 to index
    %c0_50 = arith.constant 0 : index
    %c0_51 = arith.constant 0 : index
    %146 = vector.load %arg13[%145, %c0_50, %c0_51] : memref<8x8x512xf32, #tpu.memory_space<vmem>>, vector<1x8x512xf32>
    %147 = vector.shape_cast %146 : vector<1x8x512xf32> to vector<8x512xf32>
    %148 = arith.truncf %140 : vector<8x128xf32> to vector<8x128xbf16>
    %c0_52 = arith.constant 0 : index
    %c0_53 = arith.constant 0 : index
    %149 = vector.load %arg3[%c0_52, %c0_53] : memref<128x512xbf16, #tpu.memory_space<vmem>>, vector<128x512xbf16>
    %cst_54 = arith.constant dense<0.000000e+00> : vector<8x512xf32>
    %150 = tpu.matmul %148, %149, %cst_54 {dimension_numbers = #tpu.dot_dimension_numbers<[1], [0], [0], [1], [0, 0, 1, 1], [], []>} : vector<8x128xbf16>, vector<128x512xbf16>, vector<8x512xf32> -> vector<8x512xf32>
    %151 = arith.addf %147, %150 : vector<8x512xf32>
    %152 = vector.extract_strided_slice %151 {offsets = [0, 0], sizes = [8, 384], strides = [1, 1]} : vector<8x512xf32> to vector<8x384xf32>
    %153 = arith.negf %152 : vector<8x384xf32>
    %154 = math.exp %153 : vector<8x384xf32>
    %cst_55 = arith.constant 1.000000e+00 : f32
    %155 = vector.broadcast %cst_55 : f32 to vector<8x384xf32>
    %156 = arith.addf %155, %154 : vector<8x384xf32>
    %157 = arith.divf %155, %156 : vector<8x384xf32>
    %158 = vector.extract_strided_slice %157 {offsets = [0, 0], sizes = [8, 128], strides = [1, 1]} : vector<8x384xf32> to vector<8x128xf32>
    %159 = vector.extract_strided_slice %157 {offsets = [0, 128], sizes = [8, 128], strides = [1, 1]} : vector<8x384xf32> to vector<8x128xf32>
    %160 = vector.extract_strided_slice %157 {offsets = [0, 256], sizes = [8, 128], strides = [1, 1]} : vector<8x384xf32> to vector<8x128xf32>
    %161 = vector.extract_strided_slice %151 {offsets = [0, 384], sizes = [8, 128], strides = [1, 1]} : vector<8x512xf32> to vector<8x128xf32>
    %162 = math.tanh %161 : vector<8x128xf32>
    %163 = arith.mulf %159, %138 : vector<8x128xf32>
    %164 = arith.mulf %158, %162 : vector<8x128xf32>
    %165 = arith.addf %163, %164 : vector<8x128xf32>
    %166 = math.tanh %165 : vector<8x128xf32>
    %167 = arith.mulf %160, %166 : vector<8x128xf32>
    %168 = arith.index_cast %c5_i32 : i32 to index
    %c0_56 = arith.constant 0 : index
    %c0_57 = arith.constant 0 : index
    %169 = vector.load %arg14[%168, %c0_56, %c0_57] : memref<8x8x128xf32, #tpu.memory_space<vmem>>, vector<1x8x128xf32>
    %170 = vector.shape_cast %169 : vector<1x8x128xf32> to vector<8x128xf32>
    %171 = vector.shape_cast %167 : vector<8x128xf32> to vector<1x8x128xf32>
    tpu.vector_store %arg14[%168, %c0_56, %c0_57], %171 {strides = array<i32>} : memref<8x8x128xf32, #tpu.memory_space<vmem>>, vector<1x8x128xf32>,
    %c6_i32 = arith.constant 6 : i32
    %172 = arith.index_cast %c6_i32 : i32 to index
    %c0_58 = arith.constant 0 : index
    %c0_59 = arith.constant 0 : index
    %173 = vector.load %arg13[%172, %c0_58, %c0_59] : memref<8x8x512xf32, #tpu.memory_space<vmem>>, vector<1x8x512xf32>
    %174 = vector.shape_cast %173 : vector<1x8x512xf32> to vector<8x512xf32>
    %175 = arith.truncf %167 : vector<8x128xf32> to vector<8x128xbf16>
    %c0_60 = arith.constant 0 : index
    %c0_61 = arith.constant 0 : index
    %176 = vector.load %arg3[%c0_60, %c0_61] : memref<128x512xbf16, #tpu.memory_space<vmem>>, vector<128x512xbf16>
    %cst_62 = arith.constant dense<0.000000e+00> : vector<8x512xf32>
    %177 = tpu.matmul %175, %176, %cst_62 {dimension_numbers = #tpu.dot_dimension_numbers<[1], [0], [0], [1], [0, 0, 1, 1], [], []>} : vector<8x128xbf16>, vector<128x512xbf16>, vector<8x512xf32> -> vector<8x512xf32>
    %178 = arith.addf %174, %177 : vector<8x512xf32>
    %179 = vector.extract_strided_slice %178 {offsets = [0, 0], sizes = [8, 384], strides = [1, 1]} : vector<8x512xf32> to vector<8x384xf32>
    %180 = arith.negf %179 : vector<8x384xf32>
    %181 = math.exp %180 : vector<8x384xf32>
    %cst_63 = arith.constant 1.000000e+00 : f32
    %182 = vector.broadcast %cst_63 : f32 to vector<8x384xf32>
    %183 = arith.addf %182, %181 : vector<8x384xf32>
    %184 = arith.divf %182, %183 : vector<8x384xf32>
    %185 = vector.extract_strided_slice %184 {offsets = [0, 0], sizes = [8, 128], strides = [1, 1]} : vector<8x384xf32> to vector<8x128xf32>
    %186 = vector.extract_strided_slice %184 {offsets = [0, 128], sizes = [8, 128], strides = [1, 1]} : vector<8x384xf32> to vector<8x128xf32>
    %187 = vector.extract_strided_slice %184 {offsets = [0, 256], sizes = [8, 128], strides = [1, 1]} : vector<8x384xf32> to vector<8x128xf32>
    %188 = vector.extract_strided_slice %178 {offsets = [0, 384], sizes = [8, 128], strides = [1, 1]} : vector<8x512xf32> to vector<8x128xf32>
    %189 = math.tanh %188 : vector<8x128xf32>
    %190 = arith.mulf %186, %165 : vector<8x128xf32>
    %191 = arith.mulf %185, %189 : vector<8x128xf32>
    %192 = arith.addf %190, %191 : vector<8x128xf32>
    %193 = math.tanh %192 : vector<8x128xf32>
    %194 = arith.mulf %187, %193 : vector<8x128xf32>
    %195 = arith.index_cast %c6_i32 : i32 to index
    %c0_64 = arith.constant 0 : index
    %c0_65 = arith.constant 0 : index
    %196 = vector.load %arg14[%195, %c0_64, %c0_65] : memref<8x8x128xf32, #tpu.memory_space<vmem>>, vector<1x8x128xf32>
    %197 = vector.shape_cast %196 : vector<1x8x128xf32> to vector<8x128xf32>
    %198 = vector.shape_cast %194 : vector<8x128xf32> to vector<1x8x128xf32>
    tpu.vector_store %arg14[%195, %c0_64, %c0_65], %198 {strides = array<i32>} : memref<8x8x128xf32, #tpu.memory_space<vmem>>, vector<1x8x128xf32>,
    %c7_i32 = arith.constant 7 : i32
    %199 = arith.index_cast %c7_i32 : i32 to index
    %c0_66 = arith.constant 0 : index
    %c0_67 = arith.constant 0 : index
    %200 = vector.load %arg13[%199, %c0_66, %c0_67] : memref<8x8x512xf32, #tpu.memory_space<vmem>>, vector<1x8x512xf32>
    %201 = vector.shape_cast %200 : vector<1x8x512xf32> to vector<8x512xf32>
    %202 = arith.truncf %194 : vector<8x128xf32> to vector<8x128xbf16>
    %c0_68 = arith.constant 0 : index
    %c0_69 = arith.constant 0 : index
    %203 = vector.load %arg3[%c0_68, %c0_69] : memref<128x512xbf16, #tpu.memory_space<vmem>>, vector<128x512xbf16>
    %cst_70 = arith.constant dense<0.000000e+00> : vector<8x512xf32>
    %204 = tpu.matmul %202, %203, %cst_70 {dimension_numbers = #tpu.dot_dimension_numbers<[1], [0], [0], [1], [0, 0, 1, 1], [], []>} : vector<8x128xbf16>, vector<128x512xbf16>, vector<8x512xf32> -> vector<8x512xf32>
    %205 = arith.addf %201, %204 : vector<8x512xf32>
    %206 = vector.extract_strided_slice %205 {offsets = [0, 0], sizes = [8, 384], strides = [1, 1]} : vector<8x512xf32> to vector<8x384xf32>
    %207 = arith.negf %206 : vector<8x384xf32>
    %208 = math.exp %207 : vector<8x384xf32>
    %cst_71 = arith.constant 1.000000e+00 : f32
    %209 = vector.broadcast %cst_71 : f32 to vector<8x384xf32>
    %210 = arith.addf %209, %208 : vector<8x384xf32>
    %211 = arith.divf %209, %210 : vector<8x384xf32>
    %212 = vector.extract_strided_slice %211 {offsets = [0, 0], sizes = [8, 128], strides = [1, 1]} : vector<8x384xf32> to vector<8x128xf32>
    %213 = vector.extract_strided_slice %211 {offsets = [0, 128], sizes = [8, 128], strides = [1, 1]} : vector<8x384xf32> to vector<8x128xf32>
    %214 = vector.extract_strided_slice %211 {offsets = [0, 256], sizes = [8, 128], strides = [1, 1]} : vector<8x384xf32> to vector<8x128xf32>
    %215 = vector.extract_strided_slice %205 {offsets = [0, 384], sizes = [8, 128], strides = [1, 1]} : vector<8x512xf32> to vector<8x128xf32>
    %216 = math.tanh %215 : vector<8x128xf32>
    %217 = arith.mulf %213, %192 : vector<8x128xf32>
    %218 = arith.mulf %212, %216 : vector<8x128xf32>
    %219 = arith.addf %217, %218 : vector<8x128xf32>
    %220 = math.tanh %219 : vector<8x128xf32>
    %221 = arith.mulf %214, %220 : vector<8x128xf32>
    %222 = arith.index_cast %c7_i32 : i32 to index
    %c0_72 = arith.constant 0 : index
    %c0_73 = arith.constant 0 : index
    %223 = vector.load %arg14[%222, %c0_72, %c0_73] : memref<8x8x128xf32, #tpu.memory_space<vmem>>, vector<1x8x128xf32>
    %224 = vector.shape_cast %223 : vector<1x8x128xf32> to vector<8x128xf32>
    %225 = vector.shape_cast %221 : vector<8x128xf32> to vector<1x8x128xf32>
    tpu.vector_store %arg14[%222, %c0_72, %c0_73], %225 {strides = array<i32>} : memref<8x8x128xf32, #tpu.memory_space<vmem>>, vector<1x8x128xf32>,
    %c8_i32 = arith.constant 8 : i32
    %c0_74 = arith.constant 0 : index
    %c0_75 = arith.constant 0 : index
    %c0_76 = arith.constant 0 : index
    %226 = vector.load %arg14[%c0_74, %c0_75, %c0_76] : memref<8x8x128xf32, #tpu.memory_space<vmem>>, vector<8x8x128xf32>
    %227 = arith.truncf %226 : vector<8x8x128xf32> to vector<8x8x128xbf16>
    %228 = vector.shape_cast %227 : vector<8x8x128xbf16> to vector<64x128xbf16>
    %c0_77 = arith.constant 0 : index
    %c0_78 = arith.constant 0 : index
    %229 = vector.load %arg5[%c0_77, %c0_78] : memref<128x512xbf16, #tpu.memory_space<vmem>>, vector<128x512xbf16>
    %cst_79 = arith.constant dense<0.000000e+00> : vector<64x512xf32>
    %230 = tpu.matmul %228, %229, %cst_79 {dimension_numbers = #tpu.dot_dimension_numbers<[1], [0], [0], [1], [0, 0, 1, 1], [], []>} : vector<64x128xbf16>, vector<128x512xbf16>, vector<64x512xf32> -> vector<64x512xf32>
    %c0_80 = arith.constant 0 : index
    %c0_81 = arith.constant 0 : index
    %231 = vector.load %arg7[%c0_80, %c0_81] : memref<1x512xf32, #tpu.memory_space<vmem>>, vector<1x512xf32>
    %232 = vector.broadcast %231 : vector<1x512xf32> to vector<64x512xf32>
    %233 = arith.addf %230, %232 : vector<64x512xf32>
    %234 = vector.shape_cast %233 : vector<64x512xf32> to vector<8x8x512xf32>
    %c0_82 = arith.constant 0 : index
    %c0_83 = arith.constant 0 : index
    %c0_84 = arith.constant 0 : index
    %235 = vector.load %arg13[%c0_82, %c0_83, %c0_84] : memref<8x8x512xf32, #tpu.memory_space<vmem>>, vector<8x8x512xf32>
    tpu.vector_store %arg13[%c0_82, %c0_83, %c0_84], %234 {strides = array<i32>} : memref<8x8x512xf32, #tpu.memory_space<vmem>>, vector<8x8x512xf32>,
    %cst_85 = arith.constant 0.000000e+00 : f32
    %236 = vector.broadcast %cst_85 : f32 to vector<8x128xf32>
    %c0_i32_86 = arith.constant 0 : i32
    %237 = arith.index_cast %c0_i32_86 : i32 to index
    %c0_87 = arith.constant 0 : index
    %c0_88 = arith.constant 0 : index
    %238 = vector.load %arg13[%237, %c0_87, %c0_88] : memref<8x8x512xf32, #tpu.memory_space<vmem>>, vector<1x8x512xf32>
    %239 = vector.shape_cast %238 : vector<1x8x512xf32> to vector<8x512xf32>
    %240 = arith.truncf %236 : vector<8x128xf32> to vector<8x128xbf16>
    %c0_89 = arith.constant 0 : index
    %c0_90 = arith.constant 0 : index
    %241 = vector.load %arg6[%c0_89, %c0_90] : memref<128x512xbf16, #tpu.memory_space<vmem>>, vector<128x512xbf16>
    %cst_91 = arith.constant dense<0.000000e+00> : vector<8x512xf32>
    %242 = tpu.matmul %240, %241, %cst_91 {dimension_numbers = #tpu.dot_dimension_numbers<[1], [0], [0], [1], [0, 0, 1, 1], [], []>} : vector<8x128xbf16>, vector<128x512xbf16>, vector<8x512xf32> -> vector<8x512xf32>
    %243 = arith.addf %239, %242 : vector<8x512xf32>
    %244 = vector.extract_strided_slice %243 {offsets = [0, 0], sizes = [8, 384], strides = [1, 1]} : vector<8x512xf32> to vector<8x384xf32>
    %245 = arith.negf %244 : vector<8x384xf32>
    %246 = math.exp %245 : vector<8x384xf32>
    %cst_92 = arith.constant 1.000000e+00 : f32
    %247 = vector.broadcast %cst_92 : f32 to vector<8x384xf32>
    %248 = arith.addf %247, %246 : vector<8x384xf32>
    %249 = arith.divf %247, %248 : vector<8x384xf32>
    %250 = vector.extract_strided_slice %249 {offsets = [0, 0], sizes = [8, 128], strides = [1, 1]} : vector<8x384xf32> to vector<8x128xf32>
    %251 = vector.extract_strided_slice %249 {offsets = [0, 128], sizes = [8, 128], strides = [1, 1]} : vector<8x384xf32> to vector<8x128xf32>
    %252 = vector.extract_strided_slice %249 {offsets = [0, 256], sizes = [8, 128], strides = [1, 1]} : vector<8x384xf32> to vector<8x128xf32>
    %253 = vector.extract_strided_slice %243 {offsets = [0, 384], sizes = [8, 128], strides = [1, 1]} : vector<8x512xf32> to vector<8x128xf32>
    %254 = math.tanh %253 : vector<8x128xf32>
    %255 = arith.mulf %251, %236 : vector<8x128xf32>
    %256 = arith.mulf %250, %254 : vector<8x128xf32>
    %257 = arith.addf %255, %256 : vector<8x128xf32>
    %258 = math.tanh %257 : vector<8x128xf32>
    %259 = arith.mulf %252, %258 : vector<8x128xf32>
    %260 = arith.index_cast %c0_i32_86 : i32 to index
    %c0_93 = arith.constant 0 : index
    %c0_94 = arith.constant 0 : index
    %261 = vector.load %arg14[%260, %c0_93, %c0_94] : memref<8x8x128xf32, #tpu.memory_space<vmem>>, vector<1x8x128xf32>
    %262 = vector.shape_cast %261 : vector<1x8x128xf32> to vector<8x128xf32>
    %263 = vector.shape_cast %259 : vector<8x128xf32> to vector<1x8x128xf32>
    tpu.vector_store %arg14[%260, %c0_93, %c0_94], %263 {strides = array<i32>} : memref<8x8x128xf32, #tpu.memory_space<vmem>>, vector<1x8x128xf32>,
    %c1_i32_95 = arith.constant 1 : i32
    %264 = arith.index_cast %c1_i32_95 : i32 to index
    %c0_96 = arith.constant 0 : index
    %c0_97 = arith.constant 0 : index
    %265 = vector.load %arg13[%264, %c0_96, %c0_97] : memref<8x8x512xf32, #tpu.memory_space<vmem>>, vector<1x8x512xf32>
    %266 = vector.shape_cast %265 : vector<1x8x512xf32> to vector<8x512xf32>
    %267 = arith.truncf %259 : vector<8x128xf32> to vector<8x128xbf16>
    %c0_98 = arith.constant 0 : index
    %c0_99 = arith.constant 0 : index
    %268 = vector.load %arg6[%c0_98, %c0_99] : memref<128x512xbf16, #tpu.memory_space<vmem>>, vector<128x512xbf16>
    %cst_100 = arith.constant dense<0.000000e+00> : vector<8x512xf32>
    %269 = tpu.matmul %267, %268, %cst_100 {dimension_numbers = #tpu.dot_dimension_numbers<[1], [0], [0], [1], [0, 0, 1, 1], [], []>} : vector<8x128xbf16>, vector<128x512xbf16>, vector<8x512xf32> -> vector<8x512xf32>
    %270 = arith.addf %266, %269 : vector<8x512xf32>
    %271 = vector.extract_strided_slice %270 {offsets = [0, 0], sizes = [8, 384], strides = [1, 1]} : vector<8x512xf32> to vector<8x384xf32>
    %272 = arith.negf %271 : vector<8x384xf32>
    %273 = math.exp %272 : vector<8x384xf32>
    %cst_101 = arith.constant 1.000000e+00 : f32
    %274 = vector.broadcast %cst_101 : f32 to vector<8x384xf32>
    %275 = arith.addf %274, %273 : vector<8x384xf32>
    %276 = arith.divf %274, %275 : vector<8x384xf32>
    %277 = vector.extract_strided_slice %276 {offsets = [0, 0], sizes = [8, 128], strides = [1, 1]} : vector<8x384xf32> to vector<8x128xf32>
    %278 = vector.extract_strided_slice %276 {offsets = [0, 128], sizes = [8, 128], strides = [1, 1]} : vector<8x384xf32> to vector<8x128xf32>
    %279 = vector.extract_strided_slice %276 {offsets = [0, 256], sizes = [8, 128], strides = [1, 1]} : vector<8x384xf32> to vector<8x128xf32>
    %280 = vector.extract_strided_slice %270 {offsets = [0, 384], sizes = [8, 128], strides = [1, 1]} : vector<8x512xf32> to vector<8x128xf32>
    %281 = math.tanh %280 : vector<8x128xf32>
    %282 = arith.mulf %278, %257 : vector<8x128xf32>
    %283 = arith.mulf %277, %281 : vector<8x128xf32>
    %284 = arith.addf %282, %283 : vector<8x128xf32>
    %285 = math.tanh %284 : vector<8x128xf32>
    %286 = arith.mulf %279, %285 : vector<8x128xf32>
    %287 = arith.index_cast %c1_i32_95 : i32 to index
    %c0_102 = arith.constant 0 : index
    %c0_103 = arith.constant 0 : index
    %288 = vector.load %arg14[%287, %c0_102, %c0_103] : memref<8x8x128xf32, #tpu.memory_space<vmem>>, vector<1x8x128xf32>
    %289 = vector.shape_cast %288 : vector<1x8x128xf32> to vector<8x128xf32>
    %290 = vector.shape_cast %286 : vector<8x128xf32> to vector<1x8x128xf32>
    tpu.vector_store %arg14[%287, %c0_102, %c0_103], %290 {strides = array<i32>} : memref<8x8x128xf32, #tpu.memory_space<vmem>>, vector<1x8x128xf32>,
    %c2_i32_104 = arith.constant 2 : i32
    %291 = arith.index_cast %c2_i32_104 : i32 to index
    %c0_105 = arith.constant 0 : index
    %c0_106 = arith.constant 0 : index
    %292 = vector.load %arg13[%291, %c0_105, %c0_106] : memref<8x8x512xf32, #tpu.memory_space<vmem>>, vector<1x8x512xf32>
    %293 = vector.shape_cast %292 : vector<1x8x512xf32> to vector<8x512xf32>
    %294 = arith.truncf %286 : vector<8x128xf32> to vector<8x128xbf16>
    %c0_107 = arith.constant 0 : index
    %c0_108 = arith.constant 0 : index
    %295 = vector.load %arg6[%c0_107, %c0_108] : memref<128x512xbf16, #tpu.memory_space<vmem>>, vector<128x512xbf16>
    %cst_109 = arith.constant dense<0.000000e+00> : vector<8x512xf32>
    %296 = tpu.matmul %294, %295, %cst_109 {dimension_numbers = #tpu.dot_dimension_numbers<[1], [0], [0], [1], [0, 0, 1, 1], [], []>} : vector<8x128xbf16>, vector<128x512xbf16>, vector<8x512xf32> -> vector<8x512xf32>
    %297 = arith.addf %293, %296 : vector<8x512xf32>
    %298 = vector.extract_strided_slice %297 {offsets = [0, 0], sizes = [8, 384], strides = [1, 1]} : vector<8x512xf32> to vector<8x384xf32>
    %299 = arith.negf %298 : vector<8x384xf32>
    %300 = math.exp %299 : vector<8x384xf32>
    %cst_110 = arith.constant 1.000000e+00 : f32
    %301 = vector.broadcast %cst_110 : f32 to vector<8x384xf32>
    %302 = arith.addf %301, %300 : vector<8x384xf32>
    %303 = arith.divf %301, %302 : vector<8x384xf32>
    %304 = vector.extract_strided_slice %303 {offsets = [0, 0], sizes = [8, 128], strides = [1, 1]} : vector<8x384xf32> to vector<8x128xf32>
    %305 = vector.extract_strided_slice %303 {offsets = [0, 128], sizes = [8, 128], strides = [1, 1]} : vector<8x384xf32> to vector<8x128xf32>
    %306 = vector.extract_strided_slice %303 {offsets = [0, 256], sizes = [8, 128], strides = [1, 1]} : vector<8x384xf32> to vector<8x128xf32>
    %307 = vector.extract_strided_slice %297 {offsets = [0, 384], sizes = [8, 128], strides = [1, 1]} : vector<8x512xf32> to vector<8x128xf32>
    %308 = math.tanh %307 : vector<8x128xf32>
    %309 = arith.mulf %305, %284 : vector<8x128xf32>
    %310 = arith.mulf %304, %308 : vector<8x128xf32>
    %311 = arith.addf %309, %310 : vector<8x128xf32>
    %312 = math.tanh %311 : vector<8x128xf32>
    %313 = arith.mulf %306, %312 : vector<8x128xf32>
    %314 = arith.index_cast %c2_i32_104 : i32 to index
    %c0_111 = arith.constant 0 : index
    %c0_112 = arith.constant 0 : index
    %315 = vector.load %arg14[%314, %c0_111, %c0_112] : memref<8x8x128xf32, #tpu.memory_space<vmem>>, vector<1x8x128xf32>
    %316 = vector.shape_cast %315 : vector<1x8x128xf32> to vector<8x128xf32>
    %317 = vector.shape_cast %313 : vector<8x128xf32> to vector<1x8x128xf32>
    tpu.vector_store %arg14[%314, %c0_111, %c0_112], %317 {strides = array<i32>} : memref<8x8x128xf32, #tpu.memory_space<vmem>>, vector<1x8x128xf32>,
    %c3_i32_113 = arith.constant 3 : i32
    %318 = arith.index_cast %c3_i32_113 : i32 to index
    %c0_114 = arith.constant 0 : index
    %c0_115 = arith.constant 0 : index
    %319 = vector.load %arg13[%318, %c0_114, %c0_115] : memref<8x8x512xf32, #tpu.memory_space<vmem>>, vector<1x8x512xf32>
    %320 = vector.shape_cast %319 : vector<1x8x512xf32> to vector<8x512xf32>
    %321 = arith.truncf %313 : vector<8x128xf32> to vector<8x128xbf16>
    %c0_116 = arith.constant 0 : index
    %c0_117 = arith.constant 0 : index
    %322 = vector.load %arg6[%c0_116, %c0_117] : memref<128x512xbf16, #tpu.memory_space<vmem>>, vector<128x512xbf16>
    %cst_118 = arith.constant dense<0.000000e+00> : vector<8x512xf32>
    %323 = tpu.matmul %321, %322, %cst_118 {dimension_numbers = #tpu.dot_dimension_numbers<[1], [0], [0], [1], [0, 0, 1, 1], [], []>} : vector<8x128xbf16>, vector<128x512xbf16>, vector<8x512xf32> -> vector<8x512xf32>
    %324 = arith.addf %320, %323 : vector<8x512xf32>
    %325 = vector.extract_strided_slice %324 {offsets = [0, 0], sizes = [8, 384], strides = [1, 1]} : vector<8x512xf32> to vector<8x384xf32>
    %326 = arith.negf %325 : vector<8x384xf32>
    %327 = math.exp %326 : vector<8x384xf32>
    %cst_119 = arith.constant 1.000000e+00 : f32
    %328 = vector.broadcast %cst_119 : f32 to vector<8x384xf32>
    %329 = arith.addf %328, %327 : vector<8x384xf32>
    %330 = arith.divf %328, %329 : vector<8x384xf32>
    %331 = vector.extract_strided_slice %330 {offsets = [0, 0], sizes = [8, 128], strides = [1, 1]} : vector<8x384xf32> to vector<8x128xf32>
    %332 = vector.extract_strided_slice %330 {offsets = [0, 128], sizes = [8, 128], strides = [1, 1]} : vector<8x384xf32> to vector<8x128xf32>
    %333 = vector.extract_strided_slice %330 {offsets = [0, 256], sizes = [8, 128], strides = [1, 1]} : vector<8x384xf32> to vector<8x128xf32>
    %334 = vector.extract_strided_slice %324 {offsets = [0, 384], sizes = [8, 128], strides = [1, 1]} : vector<8x512xf32> to vector<8x128xf32>
    %335 = math.tanh %334 : vector<8x128xf32>
    %336 = arith.mulf %332, %311 : vector<8x128xf32>
    %337 = arith.mulf %331, %335 : vector<8x128xf32>
    %338 = arith.addf %336, %337 : vector<8x128xf32>
    %339 = math.tanh %338 : vector<8x128xf32>
    %340 = arith.mulf %333, %339 : vector<8x128xf32>
    %341 = arith.index_cast %c3_i32_113 : i32 to index
    %c0_120 = arith.constant 0 : index
    %c0_121 = arith.constant 0 : index
    %342 = vector.load %arg14[%341, %c0_120, %c0_121] : memref<8x8x128xf32, #tpu.memory_space<vmem>>, vector<1x8x128xf32>
    %343 = vector.shape_cast %342 : vector<1x8x128xf32> to vector<8x128xf32>
    %344 = vector.shape_cast %340 : vector<8x128xf32> to vector<1x8x128xf32>
    tpu.vector_store %arg14[%341, %c0_120, %c0_121], %344 {strides = array<i32>} : memref<8x8x128xf32, #tpu.memory_space<vmem>>, vector<1x8x128xf32>,
    %c4_i32_122 = arith.constant 4 : i32
    %345 = arith.index_cast %c4_i32_122 : i32 to index
    %c0_123 = arith.constant 0 : index
    %c0_124 = arith.constant 0 : index
    %346 = vector.load %arg13[%345, %c0_123, %c0_124] : memref<8x8x512xf32, #tpu.memory_space<vmem>>, vector<1x8x512xf32>
    %347 = vector.shape_cast %346 : vector<1x8x512xf32> to vector<8x512xf32>
    %348 = arith.truncf %340 : vector<8x128xf32> to vector<8x128xbf16>
    %c0_125 = arith.constant 0 : index
    %c0_126 = arith.constant 0 : index
    %349 = vector.load %arg6[%c0_125, %c0_126] : memref<128x512xbf16, #tpu.memory_space<vmem>>, vector<128x512xbf16>
    %cst_127 = arith.constant dense<0.000000e+00> : vector<8x512xf32>
    %350 = tpu.matmul %348, %349, %cst_127 {dimension_numbers = #tpu.dot_dimension_numbers<[1], [0], [0], [1], [0, 0, 1, 1], [], []>} : vector<8x128xbf16>, vector<128x512xbf16>, vector<8x512xf32> -> vector<8x512xf32>
    %351 = arith.addf %347, %350 : vector<8x512xf32>
    %352 = vector.extract_strided_slice %351 {offsets = [0, 0], sizes = [8, 384], strides = [1, 1]} : vector<8x512xf32> to vector<8x384xf32>
    %353 = arith.negf %352 : vector<8x384xf32>
    %354 = math.exp %353 : vector<8x384xf32>
    %cst_128 = arith.constant 1.000000e+00 : f32
    %355 = vector.broadcast %cst_128 : f32 to vector<8x384xf32>
    %356 = arith.addf %355, %354 : vector<8x384xf32>
    %357 = arith.divf %355, %356 : vector<8x384xf32>
    %358 = vector.extract_strided_slice %357 {offsets = [0, 0], sizes = [8, 128], strides = [1, 1]} : vector<8x384xf32> to vector<8x128xf32>
    %359 = vector.extract_strided_slice %357 {offsets = [0, 128], sizes = [8, 128], strides = [1, 1]} : vector<8x384xf32> to vector<8x128xf32>
    %360 = vector.extract_strided_slice %357 {offsets = [0, 256], sizes = [8, 128], strides = [1, 1]} : vector<8x384xf32> to vector<8x128xf32>
    %361 = vector.extract_strided_slice %351 {offsets = [0, 384], sizes = [8, 128], strides = [1, 1]} : vector<8x512xf32> to vector<8x128xf32>
    %362 = math.tanh %361 : vector<8x128xf32>
    %363 = arith.mulf %359, %338 : vector<8x128xf32>
    %364 = arith.mulf %358, %362 : vector<8x128xf32>
    %365 = arith.addf %363, %364 : vector<8x128xf32>
    %366 = math.tanh %365 : vector<8x128xf32>
    %367 = arith.mulf %360, %366 : vector<8x128xf32>
    %368 = arith.index_cast %c4_i32_122 : i32 to index
    %c0_129 = arith.constant 0 : index
    %c0_130 = arith.constant 0 : index
    %369 = vector.load %arg14[%368, %c0_129, %c0_130] : memref<8x8x128xf32, #tpu.memory_space<vmem>>, vector<1x8x128xf32>
    %370 = vector.shape_cast %369 : vector<1x8x128xf32> to vector<8x128xf32>
    %371 = vector.shape_cast %367 : vector<8x128xf32> to vector<1x8x128xf32>
    tpu.vector_store %arg14[%368, %c0_129, %c0_130], %371 {strides = array<i32>} : memref<8x8x128xf32, #tpu.memory_space<vmem>>, vector<1x8x128xf32>,
    %c5_i32_131 = arith.constant 5 : i32
    %372 = arith.index_cast %c5_i32_131 : i32 to index
    %c0_132 = arith.constant 0 : index
    %c0_133 = arith.constant 0 : index
    %373 = vector.load %arg13[%372, %c0_132, %c0_133] : memref<8x8x512xf32, #tpu.memory_space<vmem>>, vector<1x8x512xf32>
    %374 = vector.shape_cast %373 : vector<1x8x512xf32> to vector<8x512xf32>
    %375 = arith.truncf %367 : vector<8x128xf32> to vector<8x128xbf16>
    %c0_134 = arith.constant 0 : index
    %c0_135 = arith.constant 0 : index
    %376 = vector.load %arg6[%c0_134, %c0_135] : memref<128x512xbf16, #tpu.memory_space<vmem>>, vector<128x512xbf16>
    %cst_136 = arith.constant dense<0.000000e+00> : vector<8x512xf32>
    %377 = tpu.matmul %375, %376, %cst_136 {dimension_numbers = #tpu.dot_dimension_numbers<[1], [0], [0], [1], [0, 0, 1, 1], [], []>} : vector<8x128xbf16>, vector<128x512xbf16>, vector<8x512xf32> -> vector<8x512xf32>
    %378 = arith.addf %374, %377 : vector<8x512xf32>
    %379 = vector.extract_strided_slice %378 {offsets = [0, 0], sizes = [8, 384], strides = [1, 1]} : vector<8x512xf32> to vector<8x384xf32>
    %380 = arith.negf %379 : vector<8x384xf32>
    %381 = math.exp %380 : vector<8x384xf32>
    %cst_137 = arith.constant 1.000000e+00 : f32
    %382 = vector.broadcast %cst_137 : f32 to vector<8x384xf32>
    %383 = arith.addf %382, %381 : vector<8x384xf32>
    %384 = arith.divf %382, %383 : vector<8x384xf32>
    %385 = vector.extract_strided_slice %384 {offsets = [0, 0], sizes = [8, 128], strides = [1, 1]} : vector<8x384xf32> to vector<8x128xf32>
    %386 = vector.extract_strided_slice %384 {offsets = [0, 128], sizes = [8, 128], strides = [1, 1]} : vector<8x384xf32> to vector<8x128xf32>
    %387 = vector.extract_strided_slice %384 {offsets = [0, 256], sizes = [8, 128], strides = [1, 1]} : vector<8x384xf32> to vector<8x128xf32>
    %388 = vector.extract_strided_slice %378 {offsets = [0, 384], sizes = [8, 128], strides = [1, 1]} : vector<8x512xf32> to vector<8x128xf32>
    %389 = math.tanh %388 : vector<8x128xf32>
    %390 = arith.mulf %386, %365 : vector<8x128xf32>
    %391 = arith.mulf %385, %389 : vector<8x128xf32>
    %392 = arith.addf %390, %391 : vector<8x128xf32>
    %393 = math.tanh %392 : vector<8x128xf32>
    %394 = arith.mulf %387, %393 : vector<8x128xf32>
    %395 = arith.index_cast %c5_i32_131 : i32 to index
    %c0_138 = arith.constant 0 : index
    %c0_139 = arith.constant 0 : index
    %396 = vector.load %arg14[%395, %c0_138, %c0_139] : memref<8x8x128xf32, #tpu.memory_space<vmem>>, vector<1x8x128xf32>
    %397 = vector.shape_cast %396 : vector<1x8x128xf32> to vector<8x128xf32>
    %398 = vector.shape_cast %394 : vector<8x128xf32> to vector<1x8x128xf32>
    tpu.vector_store %arg14[%395, %c0_138, %c0_139], %398 {strides = array<i32>} : memref<8x8x128xf32, #tpu.memory_space<vmem>>, vector<1x8x128xf32>,
    %c6_i32_140 = arith.constant 6 : i32
    %399 = arith.index_cast %c6_i32_140 : i32 to index
    %c0_141 = arith.constant 0 : index
    %c0_142 = arith.constant 0 : index
    %400 = vector.load %arg13[%399, %c0_141, %c0_142] : memref<8x8x512xf32, #tpu.memory_space<vmem>>, vector<1x8x512xf32>
    %401 = vector.shape_cast %400 : vector<1x8x512xf32> to vector<8x512xf32>
    %402 = arith.truncf %394 : vector<8x128xf32> to vector<8x128xbf16>
    %c0_143 = arith.constant 0 : index
    %c0_144 = arith.constant 0 : index
    %403 = vector.load %arg6[%c0_143, %c0_144] : memref<128x512xbf16, #tpu.memory_space<vmem>>, vector<128x512xbf16>
    %cst_145 = arith.constant dense<0.000000e+00> : vector<8x512xf32>
    %404 = tpu.matmul %402, %403, %cst_145 {dimension_numbers = #tpu.dot_dimension_numbers<[1], [0], [0], [1], [0, 0, 1, 1], [], []>} : vector<8x128xbf16>, vector<128x512xbf16>, vector<8x512xf32> -> vector<8x512xf32>
    %405 = arith.addf %401, %404 : vector<8x512xf32>
    %406 = vector.extract_strided_slice %405 {offsets = [0, 0], sizes = [8, 384], strides = [1, 1]} : vector<8x512xf32> to vector<8x384xf32>
    %407 = arith.negf %406 : vector<8x384xf32>
    %408 = math.exp %407 : vector<8x384xf32>
    %cst_146 = arith.constant 1.000000e+00 : f32
    %409 = vector.broadcast %cst_146 : f32 to vector<8x384xf32>
    %410 = arith.addf %409, %408 : vector<8x384xf32>
    %411 = arith.divf %409, %410 : vector<8x384xf32>
    %412 = vector.extract_strided_slice %411 {offsets = [0, 0], sizes = [8, 128], strides = [1, 1]} : vector<8x384xf32> to vector<8x128xf32>
    %413 = vector.extract_strided_slice %411 {offsets = [0, 128], sizes = [8, 128], strides = [1, 1]} : vector<8x384xf32> to vector<8x128xf32>
    %414 = vector.extract_strided_slice %411 {offsets = [0, 256], sizes = [8, 128], strides = [1, 1]} : vector<8x384xf32> to vector<8x128xf32>
    %415 = vector.extract_strided_slice %405 {offsets = [0, 384], sizes = [8, 128], strides = [1, 1]} : vector<8x512xf32> to vector<8x128xf32>
    %416 = math.tanh %415 : vector<8x128xf32>
    %417 = arith.mulf %413, %392 : vector<8x128xf32>
    %418 = arith.mulf %412, %416 : vector<8x128xf32>
    %419 = arith.addf %417, %418 : vector<8x128xf32>
    %420 = math.tanh %419 : vector<8x128xf32>
    %421 = arith.mulf %414, %420 : vector<8x128xf32>
    %422 = arith.index_cast %c6_i32_140 : i32 to index
    %c0_147 = arith.constant 0 : index
    %c0_148 = arith.constant 0 : index
    %423 = vector.load %arg14[%422, %c0_147, %c0_148] : memref<8x8x128xf32, #tpu.memory_space<vmem>>, vector<1x8x128xf32>
    %424 = vector.shape_cast %423 : vector<1x8x128xf32> to vector<8x128xf32>
    %425 = vector.shape_cast %421 : vector<8x128xf32> to vector<1x8x128xf32>
    tpu.vector_store %arg14[%422, %c0_147, %c0_148], %425 {strides = array<i32>} : memref<8x8x128xf32, #tpu.memory_space<vmem>>, vector<1x8x128xf32>,
    %c7_i32_149 = arith.constant 7 : i32
    %426 = arith.index_cast %c7_i32_149 : i32 to index
    %c0_150 = arith.constant 0 : index
    %c0_151 = arith.constant 0 : index
    %427 = vector.load %arg13[%426, %c0_150, %c0_151] : memref<8x8x512xf32, #tpu.memory_space<vmem>>, vector<1x8x512xf32>
    %428 = vector.shape_cast %427 : vector<1x8x512xf32> to vector<8x512xf32>
    %429 = arith.truncf %421 : vector<8x128xf32> to vector<8x128xbf16>
    %c0_152 = arith.constant 0 : index
    %c0_153 = arith.constant 0 : index
    %430 = vector.load %arg6[%c0_152, %c0_153] : memref<128x512xbf16, #tpu.memory_space<vmem>>, vector<128x512xbf16>
    %cst_154 = arith.constant dense<0.000000e+00> : vector<8x512xf32>
    %431 = tpu.matmul %429, %430, %cst_154 {dimension_numbers = #tpu.dot_dimension_numbers<[1], [0], [0], [1], [0, 0, 1, 1], [], []>} : vector<8x128xbf16>, vector<128x512xbf16>, vector<8x512xf32> -> vector<8x512xf32>
    %432 = arith.addf %428, %431 : vector<8x512xf32>
    %433 = vector.extract_strided_slice %432 {offsets = [0, 0], sizes = [8, 384], strides = [1, 1]} : vector<8x512xf32> to vector<8x384xf32>
    %434 = arith.negf %433 : vector<8x384xf32>
    %435 = math.exp %434 : vector<8x384xf32>
    %cst_155 = arith.constant 1.000000e+00 : f32
    %436 = vector.broadcast %cst_155 : f32 to vector<8x384xf32>
    %437 = arith.addf %436, %435 : vector<8x384xf32>
    %438 = arith.divf %436, %437 : vector<8x384xf32>
    %439 = vector.extract_strided_slice %438 {offsets = [0, 0], sizes = [8, 128], strides = [1, 1]} : vector<8x384xf32> to vector<8x128xf32>
    %440 = vector.extract_strided_slice %438 {offsets = [0, 128], sizes = [8, 128], strides = [1, 1]} : vector<8x384xf32> to vector<8x128xf32>
    %441 = vector.extract_strided_slice %438 {offsets = [0, 256], sizes = [8, 128], strides = [1, 1]} : vector<8x384xf32> to vector<8x128xf32>
    %442 = vector.extract_strided_slice %432 {offsets = [0, 384], sizes = [8, 128], strides = [1, 1]} : vector<8x512xf32> to vector<8x128xf32>
    %443 = math.tanh %442 : vector<8x128xf32>
    %444 = arith.mulf %440, %419 : vector<8x128xf32>
    %445 = arith.mulf %439, %443 : vector<8x128xf32>
    %446 = arith.addf %444, %445 : vector<8x128xf32>
    %447 = math.tanh %446 : vector<8x128xf32>
    %448 = arith.mulf %441, %447 : vector<8x128xf32>
    %449 = arith.index_cast %c7_i32_149 : i32 to index
    %c0_156 = arith.constant 0 : index
    %c0_157 = arith.constant 0 : index
    %450 = vector.load %arg14[%449, %c0_156, %c0_157] : memref<8x8x128xf32, #tpu.memory_space<vmem>>, vector<1x8x128xf32>
    %451 = vector.shape_cast %450 : vector<1x8x128xf32> to vector<8x128xf32>
    %452 = vector.shape_cast %448 : vector<8x128xf32> to vector<1x8x128xf32>
    tpu.vector_store %arg14[%449, %c0_156, %c0_157], %452 {strides = array<i32>} : memref<8x8x128xf32, #tpu.memory_space<vmem>>, vector<1x8x128xf32>,
    %c8_i32_158 = arith.constant 8 : i32
    %c0_159 = arith.constant 0 : index
    %c0_160 = arith.constant 0 : index
    %c0_161 = arith.constant 0 : index
    %453 = vector.load %arg14[%c0_159, %c0_160, %c0_161] : memref<8x8x128xf32, #tpu.memory_space<vmem>>, vector<8x8x128xf32>
    %454 = arith.truncf %453 : vector<8x8x128xf32> to vector<8x8x128xbf16>
    %455 = vector.shape_cast %454 : vector<8x8x128xbf16> to vector<64x128xbf16>
    %c0_162 = arith.constant 0 : index
    %c0_163 = arith.constant 0 : index
    %456 = vector.load %arg9[%c0_162, %c0_163] : memref<128x4xbf16, #tpu.memory_space<vmem>>, vector<128x4xbf16>
    %cst_164 = arith.constant dense<0.000000e+00> : vector<64x4xf32>
    %457 = tpu.matmul %455, %456, %cst_164 {dimension_numbers = #tpu.dot_dimension_numbers<[1], [0], [0], [1], [0, 0, 1, 1], [], []>} : vector<64x128xbf16>, vector<128x4xbf16>, vector<64x4xf32> -> vector<64x4xf32>
    %c0_165 = arith.constant 0 : index
    %c0_166 = arith.constant 0 : index
    %458 = vector.load %arg10[%c0_165, %c0_166] : memref<1x4xf32, #tpu.memory_space<vmem>>, vector<1x4xf32>
    %459 = vector.broadcast %458 : vector<1x4xf32> to vector<64x4xf32>
    %460 = arith.addf %457, %459 : vector<64x4xf32>
    %461 = vector.shape_cast %460 : vector<64x4xf32> to vector<8x8x4xf32>
    %462 = tpu.iota {dimensions = array<i32: 0>} : vector<8x8x4xi32>
    %c0_167 = arith.constant 0 : index
    %c0_168 = arith.constant 0 : index
    %463 = vector.load %arg8[%c0_167, %c0_168] : memref<8x1xi32, #tpu.memory_space<vmem>>, vector<8x1xi32>
    %464 = vector.shape_cast %463 : vector<8x1xi32> to vector<1x8x1xi32>
    %465 = vector.shape_cast %464 : vector<1x8x1xi32> to vector<1x8x1xi32>
    %466 = vector.broadcast %465 : vector<1x8x1xi32> to vector<8x8x4xi32>
    %c0_169 = arith.constant 0 : index
    %c0_170 = arith.constant 0 : index
    %467 = vector.load %arg11[%c0_169, %c0_170] : memref<1x4xf32, #tpu.memory_space<vmem>>, vector<1x4xf32>
    %468 = vector.shape_cast %467 : vector<1x4xf32> to vector<1x1x4xf32>
    %469 = vector.shape_cast %468 : vector<1x1x4xf32> to vector<1x1x4xf32>
    %470 = vector.broadcast %469 : vector<1x1x4xf32> to vector<8x8x4xf32>
    %471 = arith.cmpi slt, %462, %466 : vector<8x8x4xi32>
    %472 = arith.select %471, %461, %470 : vector<8x8x4xi1>, vector<8x8x4xf32>
    %c0_171 = arith.constant 0 : index
    %c0_172 = arith.constant 0 : index
    %c0_173 = arith.constant 0 : index
    %473 = vector.load %arg12[%c0_171, %c0_172, %c0_173] : memref<8x8x4xf32, #tpu.memory_space<vmem>>, vector<8x8x4xf32>
    tpu.vector_store %arg12[%c0_171, %c0_172, %c0_173], %472 {strides = array<i32>} : memref<8x8x4xf32, #tpu.memory_space<vmem>>, vector<8x8x4xf32>,
    return
  }
  func.func @transform_0(%arg0: i32) -> (i32, i32, i32) {
    %c0_i32 = arith.constant 0 : i32
    %c0_i32_0 = arith.constant 0 : i32
    %c0_i32_1 = arith.constant 0 : i32
    return %c0_i32, %arg0, %c0_i32_0 : i32, i32, i32
  }
  func.func @transform_1(%arg0: i32) -> (i32, i32) {
    %c0_i32 = arith.constant 0 : i32
    %c0_i32_0 = arith.constant 0 : i32
    %c0_i32_1 = arith.constant 0 : i32
    return %c0_i32, %c0_i32_0 : i32, i32
  }
  func.func @transform_2(%arg0: i32) -> (i32, i32) {
    %c0_i32 = arith.constant 0 : i32
    %c0_i32_0 = arith.constant 0 : i32
    %c0_i32_1 = arith.constant 0 : i32
    return %c0_i32, %c0_i32_0 : i32, i32
  }
  func.func @transform_3(%arg0: i32) -> (i32, i32) {
    %c0_i32 = arith.constant 0 : i32
    %c0_i32_0 = arith.constant 0 : i32
    %c0_i32_1 = arith.constant 0 : i32
    return %c0_i32, %c0_i32_0 : i32, i32
  }
  func.func @transform_4(%arg0: i32) -> (i32, i32) {
    %c0_i32 = arith.constant 0 : i32
    %c0_i32_0 = arith.constant 0 : i32
    %c0_i32_1 = arith.constant 0 : i32
    return %c0_i32, %c0_i32_0 : i32, i32
  }
  func.func @transform_5(%arg0: i32) -> (i32, i32) {
    %c0_i32 = arith.constant 0 : i32
    %c0_i32_0 = arith.constant 0 : i32
    %c0_i32_1 = arith.constant 0 : i32
    return %c0_i32, %c0_i32_0 : i32, i32
  }
  func.func @transform_6(%arg0: i32) -> (i32, i32) {
    %c0_i32 = arith.constant 0 : i32
    %c0_i32_0 = arith.constant 0 : i32
    %c0_i32_1 = arith.constant 0 : i32
    return %c0_i32, %c0_i32_0 : i32, i32
  }
  func.func @transform_7(%arg0: i32) -> (i32, i32) {
    %c0_i32 = arith.constant 0 : i32
    %c0_i32_0 = arith.constant 0 : i32
    return %arg0, %c0_i32 : i32, i32
  }
  func.func @transform_8(%arg0: i32) -> (i32, i32) {
    %c0_i32 = arith.constant 0 : i32
    %c0_i32_0 = arith.constant 0 : i32
    %c0_i32_1 = arith.constant 0 : i32
    return %c0_i32, %c0_i32_0 : i32, i32
  }
  func.func @transform_9(%arg0: i32) -> (i32, i32) {
    %c0_i32 = arith.constant 0 : i32
    %c0_i32_0 = arith.constant 0 : i32
    %c0_i32_1 = arith.constant 0 : i32
    return %c0_i32, %c0_i32_0 : i32, i32
  }
  func.func @transform_10(%arg0: i32) -> (i32, i32) {
    %c0_i32 = arith.constant 0 : i32
    %c0_i32_0 = arith.constant 0 : i32
    %c0_i32_1 = arith.constant 0 : i32
    return %c0_i32, %c0_i32_0 : i32, i32
  }
  func.func @transform_11(%arg0: i32) -> (i32, i32, i32) {
    %c0_i32 = arith.constant 0 : i32
    %c0_i32_0 = arith.constant 0 : i32
    %c0_i32_1 = arith.constant 0 : i32
    return %c0_i32, %arg0, %c0_i32_0 : i32, i32, i32
  }
}

</mosaic_0001>

<llo_original>
// kernel: tpu_custom_call.1
$region0: #{tpu_custom_call.1}
  #allocation0 [shape = 'u32[]', space=smem, size = 0x4, offset = 0x4, fixed_abs, tag = 'smem constant byte address 0x4 - core index']
  #allocation1 [shape = 'u32[144,128]{1,0:T(1,128)}', space=vmem, size = 0x12000, scoped, tag = 'internal scratch']
  #allocation2 [shape = 'f32[8,8,512]{2,1,0:T(8,128)}', space=vmem, size = 0x20000, scoped, tag = 'scratch operand']
  #allocation3 [shape = 'f32[8,8,128]{2,1,0:T(8,128)}', space=vmem, size = 0x8000, scoped, tag = 'scratch operand']
  %s0 = inlined_call_operand.vmem [shape: bf16[8,8,16], index: 0, kind: input, shape index: {}]
  %s1 = inlined_call_operand.vmem [shape: bf16[16,512], index: 1, kind: input, shape index: {}]
  %s2 = inlined_call_operand.hbm [shape: bf16[128,512], index: 2, kind: input, shape index: {}]
  %s3 = inlined_call_operand.vmem [shape: f32[1,512], index: 3, kind: input, shape index: {}]
  %s4 = inlined_call_operand.hbm [shape: bf16[128,512], index: 4, kind: input, shape index: {}]
  %s5 = inlined_call_operand.hbm [shape: bf16[128,512], index: 5, kind: input, shape index: {}]
  %s6 = inlined_call_operand.vmem [shape: f32[1,512], index: 6, kind: input, shape index: {}]
  %s7 = inlined_call_operand.vmem [shape: s32[8,1], index: 7, kind: input, shape index: {}]
  %s8 = inlined_call_operand.vmem [shape: bf16[128,4], index: 8, kind: input, shape index: {}]
  %s9 = inlined_call_operand.vmem [shape: f32[1,4], index: 9, kind: input, shape index: {}]
  %s10 = inlined_call_operand.vmem [shape: f32[1,4], index: 10, kind: input, shape index: {}]
  %s11 = inlined_call_operand.vmem [shape: f32[8,8,4], index: 11, kind: output, shape index: {}]
  %s12 = sld [smem:[#allocation0]]
  $region66: #{tpu_custom_call.1} parent=0
    _
  %s14 = ssub.s32 1, %s12
  %s15 = scalar_select 0, %s14, %s12
  $region1: #{tpu_custom_call.1} parent=0
    #allocation4 [shape = 'u8[131072]{0}', space=vmem, size = 0x20000, scoped, tag = 'input window, operand 2, single buffered']
    #allocation5 [shape = 's32[1]{0}', space=sflag, size = 0x4, scoped, tag = 'scoped memory for tpu_custom_call.1']
    #allocation6 [shape = 'u8[131072]{0}', space=vmem, size = 0x20000, scoped, tag = 'input window, operand 4, single buffered']
    #allocation7 [shape = 's32[1]{0}', space=sflag, size = 0x4, scoped, tag = 'scoped memory for tpu_custom_call.1']
    #allocation8 [shape = 'u8[131072]{0}', space=vmem, size = 0x20000, scoped, tag = 'input window, operand 5, single buffered']
    %16 = vsyncpa [#allocation5], 0
    %17 = vsyncpa [#allocation7], 0
    // Predicated region
    $region2: #{tpu_custom_call.1} parent=1 // pred_check
      _
    $region3: #{tpu_custom_call.1} parent=1 // pred_check_branch
      %19 = sbr.rel (0) target = $region5
    $region4: #{tpu_custom_call.1} parent=1 // pred_region
      _
    $region5: #{tpu_custom_call.1} parent=1 // pred_fallthru
      _
    // Predicated region
    $region6: #{tpu_custom_call.1} parent=1 // pred_check
      _
    $region7: #{tpu_custom_call.1} parent=1 // pred_check_branch
      %21 = sbr.rel (0) target = $region9
    $region8: #{tpu_custom_call.1} parent=1 // pred_region
      _
    $region9: #{tpu_custom_call.1} parent=1 // pred_fallthru
      _
    // Predicated region
    $region10: #{tpu_custom_call.1} parent=1 // pred_check
      _
    $region11: #{tpu_custom_call.1} parent=1 // pred_check_branch
      %23 = sbr.rel (0) target = $region13
    $region12: #{tpu_custom_call.1} parent=1 // pred_region
      %s25 = ssub.s32 4096, 4096
      %26 = vsyncadd [#allocation5], %s25
      %s27 = sshll.u32 [#allocation4], 4
      %s28 = int_to_ptr.vmem [resolvable:$true] %s27
      %33 = dma.hbm_to_vmem [thread:$0]  %s2, 4096, %s28, [#allocation5], 256, 256, 16
    $region13: #{tpu_custom_call.1} parent=1 // pred_fallthru
      _
    // Predicated region
    $region14: #{tpu_custom_call.1} parent=1 // pred_check
      _
    $region15: #{tpu_custom_call.1} parent=1 // pred_check_branch
      %35 = sbr.rel (0) target = $region17
    $region16: #{tpu_custom_call.1} parent=1 // pred_region
      _
    $region17: #{tpu_custom_call.1} parent=1 // pred_fallthru
      _
    // Predicated region
    $region18: #{tpu_custom_call.1} parent=1 // pred_check
      _
    $region19: #{tpu_custom_call.1} parent=1 // pred_check_branch
      %37 = sbr.rel (0) target = $region21
    $region20: #{tpu_custom_call.1} parent=1 // pred_region
      %s39 = ssub.s32 4096, 4096
      %40 = vsyncadd [#allocation7], %s39
      %s41 = sshll.u32 [#allocation6], 4
      %s42 = int_to_ptr.vmem [resolvable:$true] %s41
      %47 = dma.hbm_to_vmem [thread:$0]  %s4, 4096, %s42, [#allocation7], 256, 256, 16
    $region21: #{tpu_custom_call.1} parent=1 // pred_fallthru
      _
    // Predicated region
    $region22: #{tpu_custom_call.1} parent=1 // pred_check
      _
    $region23: #{tpu_custom_call.1} parent=1 // pred_check_branch
      %49 = sbr.rel (0) target = $region25
    $region24: #{tpu_custom_call.1} parent=1 // pred_region
      %s51 = ssub.s32 4096, 4096
      %52 = vsyncadd [#allocation7], %s51
      %s53 = sshll.u32 [#allocation8], 4
      %s54 = int_to_ptr.vmem [resolvable:$true] %s53
      %59 = dma.hbm_to_vmem [thread:$0]  %s5, 4096, %s54, [#allocation7], 256, 256, 16
    $region25: #{tpu_custom_call.1} parent=1 // pred_fallthru
      _
    // Predicated region
    $region26: #{tpu_custom_call.1} parent=1 // pred_check
      _
    $region27: #{tpu_custom_call.1} parent=1 // pred_check_branch
      %61 = sbr.rel (0) target = $region29
    $region28: #{tpu_custom_call.1} parent=1 // pred_region
      _
    $region29: #{tpu_custom_call.1} parent=1 // pred_fallthru
      _
    // Predicated region
    $region30: #{tpu_custom_call.1} parent=1 // pred_check
      _
    $region31: #{tpu_custom_call.1} parent=1 // pred_check_branch
      %63 = sbr.rel (0) target = $region33
    $region32: #{tpu_custom_call.1} parent=1 // pred_region
      _
    $region33: #{tpu_custom_call.1} parent=1 // pred_fallthru
      _
    // Predicated region
    $region34: #{tpu_custom_call.1} parent=1 // pred_check
      _
    $region35: #{tpu_custom_call.1} parent=1 // pred_check_branch
      %65 = sbr.rel (0) target = $region37
    $region36: #{tpu_custom_call.1} parent=1 // pred_region
      _
    $region37: #{tpu_custom_call.1} parent=1 // pred_fallthru
      _
    // Predicated region
    $region38: #{tpu_custom_call.1} parent=1 // pred_check
      _
    $region39: #{tpu_custom_call.1} parent=1 // pred_check_branch
      %67 = sbr.rel (0) target = $region41
    $region40: #{tpu_custom_call.1} parent=1 // pred_region
      _
    $region41: #{tpu_custom_call.1} parent=1 // pred_fallthru
      _
    // Predicated region
    $region42: #{tpu_custom_call.1} parent=1 // pred_check
      _
    $region43: #{tpu_custom_call.1} parent=1 // pred_check_branch
      %69 = sbr.rel (0) target = $region45
    $region44: #{tpu_custom_call.1} parent=1 // pred_region
      _
    $region45: #{tpu_custom_call.1} parent=1 // pred_fallthru
      _
    // Predicated region
    $region46: #{tpu_custom_call.1} parent=1 // pred_check
      _
    $region47: #{tpu_custom_call.1} parent=1 // pred_check_branch
      %71 = sbr.rel (0) target = $region49
    $region48: #{tpu_custom_call.1} parent=1 // pred_region
      %72 = dma.done [#allocation5], 4096
    $region49: #{tpu_custom_call.1} parent=1 // pred_fallthru
      _
    // Predicated region
    $region50: #{tpu_custom_call.1} parent=1 // pred_check
      _
    $region51: #{tpu_custom_call.1} parent=1 // pred_check_branch
      %74 = sbr.rel (0) target = $region53
    $region52: #{tpu_custom_call.1} parent=1 // pred_region
      %75 = dma.done [#allocation7], 4096
    $region53: #{tpu_custom_call.1} parent=1 // pred_fallthru
      _
    // Predicated region
    $region54: #{tpu_custom_call.1} parent=1 // pred_check
      _
    $region55: #{tpu_custom_call.1} parent=1 // pred_check_branch
      %77 = sbr.rel (0) target = $region57
    $region56: #{tpu_custom_call.1} parent=1 // pred_region
      %78 = dma.done [#allocation7], 4096
    $region57: #{tpu_custom_call.1} parent=1 // pred_fallthru
      _
    %v80 = vld [vmem:[%s0] sm:$0xf]
    %v81 = vld [vmem:[%s0 + $0x4] sm:$0xf]
    %v82 = vld [vmem:[%s0 + $0x8] sm:$0xf]
    %v83 = vld [vmem:[%s0 + $0xc] sm:$0xf]
    %v84 = vld [vmem:[%s0 + $0x10] sm:$0xf]
    %v85 = vld [vmem:[%s0 + $0x14] sm:$0xf]
    %v86 = vld [vmem:[%s0 + $0x18] sm:$0xf]
    %v87 = vld [vmem:[%s0 + $0x1c] sm:$0xf]
    %v88 = vld [vmem:[%s1] sm:$0xff]
    %v89 = vld [vmem:[%s1 + $0x8] sm:$0xff]
    %v90 = vld [vmem:[%s1 + $0x10] sm:$0xff]
    %v91 = vld [vmem:[%s1 + $0x18] sm:$0xff]
    %v92 = vld [vmem:[%s3] sm:$0xf]
    %v94 = vlaneseq
    %v95 = vshrl.u32 %v94, 7
    %v96 = vsub.s32 0, %v95
    %v97 = vrot.slane %v92, %v96
    %v98 = vlaneseq
    %v99 = vshrl.u32 %v98, 7
    %v100 = vsub.s32 1, %v99
    %v101 = vrot.slane %v92, %v100
    %v102 = vlaneseq
    %v103 = vshrl.u32 %v102, 7
    %v104 = vsub.s32 2, %v103
    %v105 = vrot.slane %v92, %v104
    %v106 = vlaneseq
    %v107 = vshrl.u32 %v106, 7
    %v108 = vsub.s32 3, %v107
    %v109 = vrot.slane %v92, %v108
    %v122 = vunpack.c.l.b16 %v80
    %v123 = vunpack.c.l.b16 %v81
    %v124 = vunpack.c.l.b16 %v82
    %v125 = vunpack.c.l.b16 %v83
    %v126 = vunpack.c.l.b16 %v84
    %v127 = vunpack.c.l.b16 %v85
    %v128 = vunpack.c.l.b16 %v86
    %v129 = vunpack.c.l.b16 %v87
    %v130 = vpack.c.b16 %v123, %v122
    %v131 = vpack.c.b16 %v125, %v124
    %v132 = vpack.c.b16 %v127, %v126
    %v133 = vpack.c.b16 %v129, %v128
    %v138 = vunpack.c.l.b16 %v88
    %v139 = vunpack.c.h.b16 %v88
    %v140 = vunpack.c.l.b16 %v89
    %v141 = vunpack.c.h.b16 %v89
    %v142 = vunpack.c.l.b16 %v90
    %v143 = vunpack.c.h.b16 %v90
    %v144 = vunpack.c.l.b16 %v91
    %v145 = vunpack.c.h.b16 %v91
    %v146 = vpack.c.b16 %v142, %v138
    %v147 = vpack.c.b16 %v143, %v139
    %v148 = vpack.c.b16 %v144, %v140
    %v149 = vpack.c.b16 %v145, %v141
    %vm154 = vcmask 130048
    %v156 = vsel %vm154, %v130, 0
    %v159 = vsel %vm154, %v131, 0
    %v162 = vsel %vm154, %v132, 0
    %v165 = vsel %vm154, %v133, 0
    %167 = vmatprep.subr.bf16.mxu0 0
    %168 = vmatpush1.bf16.msra.mxu0 0
    %169 = vmatprep.subr.bf16.mxu0 0
    %170 = vmatpush1.bf16.msra.mxu0 0
    %171 = vmatprep.subr.bf16.mxu0 0
    %172 = vmatpush1.bf16.msra.mxu0 0
    %173 = vmatprep.subr.bf16.mxu0 0
    %174 = vmatpush1.bf16.msra.mxu0 0
    %175 = vmatprep.subr.bf16.mxu0 0
    %176 = vmatpush1.bf16.msra.mxu0 0
    %177 = vmatprep.subr.bf16.mxu0 0
    %178 = vmatpush1.bf16.msra.mxu0 0
    %179 = vmatprep.subr.bf16.mxu0 0
    %180 = vmatpush1.bf16.msra.mxu0 0
    %181 = vmatprep.subr.bf16.mxu0 %v147
    %182 = vmatpush1.bf16.msra.mxu0 %v146
    %183 = vmatprep.subr.bf16.mxu0 0
    %184 = vmatpush2.bf16.msra.mxu0 0
    %185 = vmatprep.subr.bf16.mxu0 0
    %186 = vmatpush2.bf16.msra.mxu0 0
    %187 = vmatprep.subr.bf16.mxu0 0
    %188 = vmatpush2.bf16.msra.mxu0 0
    %189 = vmatprep.subr.bf16.mxu0 0
    %190 = vmatpush2.bf16.msra.mxu0 0
    %191 = vmatprep.subr.bf16.mxu0 0
    %192 = vmatpush2.bf16.msra.mxu0 0
    %193 = vmatprep.subr.bf16.mxu0 0
    %194 = vmatpush2.bf16.msra.mxu0 0
    %195 = vmatprep.subr.bf16.mxu0 0
    %196 = vmatpush2.bf16.msra.mxu0 0
    %197 = vmatprep.subr.bf16.mxu0 0
    %198 = vmatpush2.bf16.msra.mxu0 0
    %199 = vmatprep.mubr.bf16.mxu0 0
    %200 = vmatmul.mubr.bf16.gmra.mxu0 %v156
    %v201 = vpop.f32.mrf.mxu0
    %v202 = vadd.f32 %v97, %v201
    %v203 = vpop.f32.mrf.mxu0
    %v204 = vadd.f32 %v101, %v203
    %v205 = vpop.f32.mrf.mxu0
    %v206 = vadd.f32 %v97, %v205
    %v207 = vpop.f32.mrf.mxu0
    %v208 = vadd.f32 %v101, %v207
    %209 = vmatprep.mubr.bf16.mxu0 0
    %210 = vmatmul.mubr.bf16.gmra.mxu0 %v159
    %v211 = vpop.f32.mrf.mxu0
    %v212 = vadd.f32 %v97, %v211
    %v213 = vpop.f32.mrf.mxu0
    %v214 = vadd.f32 %v101, %v213
    %v215 = vpop.f32.mrf.mxu0
    %v216 = vadd.f32 %v97, %v215
    %v217 = vpop.f32.mrf.mxu0
    %v218 = vadd.f32 %v101, %v217
    %219 = vmatprep.mubr.bf16.mxu0 0
    %220 = vmatmul.mubr.bf16.gmra.mxu0 %v162
    %v221 = vpop.f32.mrf.mxu0
    %v222 = vadd.f32 %v97, %v221
    %v223 = vpop.f32.mrf.mxu0
    %v224 = vadd.f32 %v101, %v223
    %v225 = vpop.f32.mrf.mxu0
    %v226 = vadd.f32 %v97, %v225
    %v227 = vpop.f32.mrf.mxu0
    %v228 = vadd.f32 %v101, %v227
    %229 = vmatprep.mubr.bf16.mxu0 0
    %230 = vmatmul.mubr.bf16.gmra.mxu0 %v165
    %v231 = vpop.f32.mrf.mxu0
    %v232 = vadd.f32 %v97, %v231
    %v233 = vpop.f32.mrf.mxu0
    %v234 = vadd.f32 %v101, %v233
    %v235 = vpop.f32.mrf.mxu0
    %v236 = vadd.f32 %v97, %v235
    %v237 = vpop.f32.mrf.mxu0
    %v238 = vadd.f32 %v101, %v237
    %239 = vdwg.mxu0
    %240 = vmatprep.subr.bf16.mxu0 0
    %241 = vmatpush1.bf16.msra.mxu0 0
    %242 = vmatprep.subr.bf16.mxu0 0
    %243 = vmatpush1.bf16.msra.mxu0 0
    %244 = vmatprep.subr.bf16.mxu0 0
    %245 = vmatpush1.bf16.msra.mxu0 0
    %246 = vmatprep.subr.bf16.mxu0 0
    %247 = vmatpush1.bf16.msra.mxu0 0
    %248 = vmatprep.subr.bf16.mxu0 0
    %249 = vmatpush1.bf16.msra.mxu0 0
    %250 = vmatprep.subr.bf16.mxu0 0
    %251 = vmatpush1.bf16.msra.mxu0 0
    %252 = vmatprep.subr.bf16.mxu0 0
    %253 = vmatpush1.bf16.msra.mxu0 0
    %254 = vmatprep.subr.bf16.mxu0 %v149
    %255 = vmatpush1.bf16.msra.mxu0 %v148
    %256 = vmatprep.subr.bf16.mxu0 0
    %257 = vmatpush2.bf16.msra.mxu0 0
    %258 = vmatprep.subr.bf16.mxu0 0
    %259 = vmatpush2.bf16.msra.mxu0 0
    %260 = vmatprep.subr.bf16.mxu0 0
    %261 = vmatpush2.bf16.msra.mxu0 0
    %262 = vmatprep.subr.bf16.mxu0 0
    %263 = vmatpush2.bf16.msra.mxu0 0
    %264 = vmatprep.subr.bf16.mxu0 0
    %265 = vmatpush2.bf16.msra.mxu0 0
    %266 = vmatprep.subr.bf16.mxu0 0
    %267 = vmatpush2.bf16.msra.mxu0 0
    %268 = vmatprep.subr.bf16.mxu0 0
    %269 = vmatpush2.bf16.msra.mxu0 0
    %270 = vmatprep.subr.bf16.mxu0 0
    %271 = vmatpush2.bf16.msra.mxu0 0
    %272 = vmatprep.mubr.bf16.mxu0 0
    %273 = vmatmul.mubr.bf16.gmra.mxu0 %v156
    %v274 = vpop.f32.mrf.mxu0
    %v275 = vadd.f32 %v105, %v274
    %v276 = vpop.f32.mrf.mxu0
    %v277 = vadd.f32 %v109, %v276
    %v278 = vpop.f32.mrf.mxu0
    %v279 = vadd.f32 %v105, %v278
    %v280 = vpop.f32.mrf.mxu0
    %v281 = vadd.f32 %v109, %v280
    %282 = vmatprep.mubr.bf16.mxu0 0
    %283 = vmatmul.mubr.bf16.gmra.mxu0 %v159
    %v284 = vpop.f32.mrf.mxu0
    %v285 = vadd.f32 %v105, %v284
    %v286 = vpop.f32.mrf.mxu0
    %v287 = vadd.f32 %v109, %v286
    %v288 = vpop.f32.mrf.mxu0
    %v289 = vadd.f32 %v105, %v288
    %v290 = vpop.f32.mrf.mxu0
    %v291 = vadd.f32 %v109, %v290
    %292 = vmatprep.mubr.bf16.mxu0 0
    %293 = vmatmul.mubr.bf16.gmra.mxu0 %v162
    %v294 = vpop.f32.mrf.mxu0
    %v295 = vadd.f32 %v105, %v294
    %v296 = vpop.f32.mrf.mxu0
    %v297 = vadd.f32 %v109, %v296
    %v298 = vpop.f32.mrf.mxu0
    %v299 = vadd.f32 %v105, %v298
    %v300 = vpop.f32.mrf.mxu0
    %v301 = vadd.f32 %v109, %v300
    %302 = vmatprep.mubr.bf16.mxu0 0
    %303 = vmatmul.mubr.bf16.gmra.mxu0 %v165
    %v304 = vpop.f32.mrf.mxu0
    %v305 = vadd.f32 %v105, %v304
    %v306 = vpop.f32.mrf.mxu0
    %v307 = vadd.f32 %v109, %v306
    %v308 = vpop.f32.mrf.mxu0
    %v309 = vadd.f32 %v105, %v308
    %v310 = vpop.f32.mrf.mxu0
    %v311 = vadd.f32 %v109, %v310
    %312 = vdwg.mxu0
    %313 = vst [vmem:[#allocation2] sm:$0xff] %v202
    %314 = vst [vmem:[#allocation2 + $0x8] sm:$0xff] %v204
    %315 = vst [vmem:[#allocation2 + $0x10] sm:$0xff] %v275
    %316 = vst [vmem:[#allocation2 + $0x18] sm:$0xff] %v277
    %317 = vst [vmem:[#allocation2 + $0x20] sm:$0xff] %v206
    %318 = vst [vmem:[#allocation2 + $0x28] sm:$0xff] %v208
    %319 = vst [vmem:[#allocation2 + $0x30] sm:$0xff] %v279
    %320 = vst [vmem:[#allocation2 + $0x38] sm:$0xff] %v281
    %321 = vst [vmem:[#allocation2 + $0x40] sm:$0xff] %v212
    %322 = vst [vmem:[#allocation2 + $0x48] sm:$0xff] %v214
    %323 = vst [vmem:[#allocation2 + $0x50] sm:$0xff] %v285
    %324 = vst [vmem:[#allocation2 + $0x58] sm:$0xff] %v287
    %325 = vst [vmem:[#allocation2 + $0x60] sm:$0xff] %v216
    %326 = vst [vmem:[#allocation2 + $0x68] sm:$0xff] %v218
    %327 = vst [vmem:[#allocation2 + $0x70] sm:$0xff] %v289
    %328 = vst [vmem:[#allocation2 + $0x78] sm:$0xff] %v291
    %329 = vst [vmem:[#allocation2 + $0x80] sm:$0xff] %v222
    %330 = vst [vmem:[#allocation2 + $0x88] sm:$0xff] %v224
    %331 = vst [vmem:[#allocation2 + $0x90] sm:$0xff] %v295
    %332 = vst [vmem:[#allocation2 + $0x98] sm:$0xff] %v297
    %333 = vst [vmem:[#allocation2 + $0xa0] sm:$0xff] %v226
    %334 = vst [vmem:[#allocation2 + $0xa8] sm:$0xff] %v228
    %335 = vst [vmem:[#allocation2 + $0xb0] sm:$0xff] %v299
    %336 = vst [vmem:[#allocation2 + $0xb8] sm:$0xff] %v301
    %337 = vst [vmem:[#allocation2 + $0xc0] sm:$0xff] %v232
    %338 = vst [vmem:[#allocation2 + $0xc8] sm:$0xff] %v234
    %339 = vst [vmem:[#allocation2 + $0xd0] sm:$0xff] %v305
    %340 = vst [vmem:[#allocation2 + $0xd8] sm:$0xff] %v307
    %341 = vst [vmem:[#allocation2 + $0xe0] sm:$0xff] %v236
    %342 = vst [vmem:[#allocation2 + $0xe8] sm:$0xff] %v238
    %343 = vst [vmem:[#allocation2 + $0xf0] sm:$0xff] %v309
    %344 = vst [vmem:[#allocation2 + $0xf8] sm:$0xff] %v311
    %v345 = vld [vmem:[#allocation2] sm:$0xff]
    %v346 = vld [vmem:[#allocation2 + $0x8] sm:$0xff]
    %v347 = vld [vmem:[#allocation2 + $0x10] sm:$0xff]
    %v348 = vld [vmem:[#allocation2 + $0x18] sm:$0xff]
    %v349 = vld [vmem:[#allocation4] sm:$0xff]
    %v350 = vld [vmem:[#allocation4 + $0x8] sm:$0xff]
    %v351 = vld [vmem:[#allocation4 + $0x10] sm:$0xff]
    %v352 = vld [vmem:[#allocation4 + $0x18] sm:$0xff]
    %v353 = vld [vmem:[#allocation4 + $0x20] sm:$0xff]
    %v354 = vld [vmem:[#allocation4 + $0x28] sm:$0xff]
    %v355 = vld [vmem:[#allocation4 + $0x30] sm:$0xff]
    %v356 = vld [vmem:[#allocation4 + $0x38] sm:$0xff]
    %v357 = vld [vmem:[#allocation4 + $0x40] sm:$0xff]
    %v358 = vld [vmem:[#allocation4 + $0x48] sm:$0xff]
    %v359 = vld [vmem:[#allocation4 + $0x50] sm:$0xff]
    %v360 = vld [vmem:[#allocation4 + $0x58] sm:$0xff]
    %v361 = vld [vmem:[#allocation4 + $0x60] sm:$0xff]
    %v362 = vld [vmem:[#allocation4 + $0x68] sm:$0xff]
    %v363 = vld [vmem:[#allocation4 + $0x70] sm:$0xff]
    %v364 = vld [vmem:[#allocation4 + $0x78] sm:$0xff]
    %v365 = vld [vmem:[#allocation4 + $0x80] sm:$0xff]
    %v366 = vld [vmem:[#allocation4 + $0x88] sm:$0xff]
    %v367 = vld [vmem:[#allocation4 + $0x90] sm:$0xff]
    %v368 = vld [vmem:[#allocation4 + $0x98] sm:$0xff]
    %v369 = vld [vmem:[#allocation4 + $0xa0] sm:$0xff]
    %v370 = vld [vmem:[#allocation4 + $0xa8] sm:$0xff]
    %v371 = vld [vmem:[#allocation4 + $0xb0] sm:$0xff]
    %v372 = vld [vmem:[#allocation4 + $0xb8] sm:$0xff]
    %v373 = vld [vmem:[#allocation4 + $0xc0] sm:$0xff]
    %v374 = vld [vmem:[#allocation4 + $0xc8] sm:$0xff]
    %v375 = vld [vmem:[#allocation4 + $0xd0] sm:$0xff]
    %v376 = vld [vmem:[#allocation4 + $0xd8] sm:$0xff]
    %v377 = vld [vmem:[#allocation4 + $0xe0] sm:$0xff]
    %v378 = vld [vmem:[#allocation4 + $0xe8] sm:$0xff]
    %v379 = vld [vmem:[#allocation4 + $0xf0] sm:$0xff]
    %v380 = vld [vmem:[#allocation4 + $0xf8] sm:$0xff]
    %v413 = vunpack.c.l.b16 %v349
    %v414 = vunpack.c.h.b16 %v349
    %v415 = vunpack.c.l.b16 %v350
    %v416 = vunpack.c.h.b16 %v350
    %v417 = vunpack.c.l.b16 %v351
    %v418 = vunpack.c.h.b16 %v351
    %v419 = vunpack.c.l.b16 %v352
    %v420 = vunpack.c.h.b16 %v352
    %v421 = vunpack.c.l.b16 %v353
    %v422 = vunpack.c.h.b16 %v353
    %v423 = vunpack.c.l.b16 %v354
    %v424 = vunpack.c.h.b16 %v354
    %v425 = vunpack.c.l.b16 %v355
    %v426 = vunpack.c.h.b16 %v355
    %v427 = vunpack.c.l.b16 %v356
    %v428 = vunpack.c.h.b16 %v356
    %v429 = vunpack.c.l.b16 %v357
    %v430 = vunpack.c.h.b16 %v357
    %v431 = vunpack.c.l.b16 %v358
    %v432 = vunpack.c.h.b16 %v358
    %v433 = vunpack.c.l.b16 %v359
    %v434 = vunpack.c.h.b16 %v359
    %v435 = vunpack.c.l.b16 %v360
    %v436 = vunpack.c.h.b16 %v360
    %v437 = vunpack.c.l.b16 %v361
    %v438 = vunpack.c.h.b16 %v361
    %v439 = vunpack.c.l.b16 %v362
    %v440 = vunpack.c.h.b16 %v362
    %v441 = vunpack.c.l.b16 %v363
    %v442 = vunpack.c.h.b16 %v363
    %v443 = vunpack.c.l.b16 %v364
    %v444 = vunpack.c.h.b16 %v364
    %v445 = vunpack.c.l.b16 %v365
    %v446 = vunpack.c.h.b16 %v365
    %v447 = vunpack.c.l.b16 %v366
    %v448 = vunpack.c.h.b16 %v366
    %v449 = vunpack.c.l.b16 %v367
    %v450 = vunpack.c.h.b16 %v367
    %v451 = vunpack.c.l.b16 %v368
    %v452 = vunpack.c.h.b16 %v368
    %v453 = vunpack.c.l.b16 %v369
    %v454 = vunpack.c.h.b16 %v369
    %v455 = vunpack.c.l.b16 %v370
    %v456 = vunpack.c.h.b16 %v370
    %v457 = vunpack.c.l.b16 %v371
    %v458 = vunpack.c.h.b16 %v371
    %v459 = vunpack.c.l.b16 %v372
    %v460 = vunpack.c.h.b16 %v372
    %v461 = vunpack.c.l.b16 %v373
    %v462 = vunpack.c.h.b16 %v373
    %v463 = vunpack.c.l.b16 %v374
    %v464 = vunpack.c.h.b16 %v374
    %v465 = vunpack.c.l.b16 %v375
    %v466 = vunpack.c.h.b16 %v375
    %v467 = vunpack.c.l.b16 %v376
    %v468 = vunpack.c.h.b16 %v376
    %v469 = vunpack.c.l.b16 %v377
    %v470 = vunpack.c.h.b16 %v377
    %v471 = vunpack.c.l.b16 %v378
    %v472 = vunpack.c.h.b16 %v378
    %v473 = vunpack.c.l.b16 %v379
    %v474 = vunpack.c.h.b16 %v379
    %v475 = vunpack.c.l.b16 %v380
    %v476 = vunpack.c.h.b16 %v380
    %v477 = vpack.c.b16 %v417, %v413
    %v478 = vpack.c.b16 %v418, %v414
    %v479 = vpack.c.b16 %v419, %v415
    %v480 = vpack.c.b16 %v420, %v416
    %v481 = vpack.c.b16 %v425, %v421
    %v482 = vpack.c.b16 %v426, %v422
    %v483 = vpack.c.b16 %v427, %v423
    %v484 = vpack.c.b16 %v428, %v424
    %v485 = vpack.c.b16 %v433, %v429
    %v486 = vpack.c.b16 %v434, %v430
    %v487 = vpack.c.b16 %v435, %v431
    %v488 = vpack.c.b16 %v436, %v432
    %v489 = vpack.c.b16 %v441, %v437
    %v490 = vpack.c.b16 %v442, %v438
    %v491 = vpack.c.b16 %v443, %v439
    %v492 = vpack.c.b16 %v444, %v440
    %v493 = vpack.c.b16 %v449, %v445
    %v494 = vpack.c.b16 %v450, %v446
    %v495 = vpack.c.b16 %v451, %v447
    %v496 = vpack.c.b16 %v452, %v448
    %v497 = vpack.c.b16 %v457, %v453
    %v498 = vpack.c.b16 %v458, %v454
    %v499 = vpack.c.b16 %v459, %v455
    %v500 = vpack.c.b16 %v460, %v456
    %v501 = vpack.c.b16 %v465, %v461
    %v502 = vpack.c.b16 %v466, %v462
    %v503 = vpack.c.b16 %v467, %v463
    %v504 = vpack.c.b16 %v468, %v464
    %v505 = vpack.c.b16 %v473, %v469
    %v506 = vpack.c.b16 %v474, %v470
    %v507 = vpack.c.b16 %v475, %v471
    %v508 = vpack.c.b16 %v476, %v472
    %541 = vmatprep.subr.bf16.mxu0 %v506
    %542 = vmatpush1.bf16.msra.mxu0 %v505
    %543 = vmatprep.subr.bf16.mxu0 %v502
    %544 = vmatpush1.bf16.msra.mxu0 %v501
    %545 = vmatprep.subr.bf16.mxu0 %v498
    %546 = vmatpush1.bf16.msra.mxu0 %v497
    %547 = vmatprep.subr.bf16.mxu0 %v494
    %548 = vmatpush1.bf16.msra.mxu0 %v493
    %549 = vmatprep.subr.bf16.mxu0 %v490
    %550 = vmatpush1.bf16.msra.mxu0 %v489
    %551 = vmatprep.subr.bf16.mxu0 %v486
    %552 = vmatpush1.bf16.msra.mxu0 %v485
    %553 = vmatprep.subr.bf16.mxu0 %v482
    %554 = vmatpush1.bf16.msra.mxu0 %v481
    %555 = vmatprep.subr.bf16.mxu0 %v478
    %556 = vmatpush1.bf16.msra.mxu0 %v477
    %557 = vmatprep.subr.bf16.mxu0 0
    %558 = vmatpush2.bf16.msra.mxu0 0
    %559 = vmatprep.subr.bf16.mxu0 0
    %560 = vmatpush2.bf16.msra.mxu0 0
    %561 = vmatprep.subr.bf16.mxu0 0
    %562 = vmatpush2.bf16.msra.mxu0 0
    %563 = vmatprep.subr.bf16.mxu0 0
    %564 = vmatpush2.bf16.msra.mxu0 0
    %565 = vmatprep.subr.bf16.mxu0 0
    %566 = vmatpush2.bf16.msra.mxu0 0
    %567 = vmatprep.subr.bf16.mxu0 0
    %568 = vmatpush2.bf16.msra.mxu0 0
    %569 = vmatprep.subr.bf16.mxu0 0
    %570 = vmatpush2.bf16.msra.mxu0 0
    %571 = vmatprep.subr.bf16.mxu0 0
    %572 = vmatpush2.bf16.msra.mxu0 0
    %573 = vmatprep.mubr.bf16.mxu0 0
    %574 = vmatmul.mubr.bf16.gmra.mxu0 0
    %v575 = vpop.f32.mrf.mxu0
    %v576 = vadd.f32 0.0, %v575
    %v577 = vpop.f32.mrf.mxu0
    %v578 = vadd.f32 0.0, %v577
    %v579 = vpop.f32.mrf.mxu0
    %v580 = vpop.f32.mrf.mxu0
    %581 = vdwg.mxu0
    %582 = vmatprep.subr.bf16.mxu0 %v508
    %583 = vmatpush1.bf16.msra.mxu0 %v507
    %584 = vmatprep.subr.bf16.mxu0 %v504
    %585 = vmatpush1.bf16.msra.mxu0 %v503
    %586 = vmatprep.subr.bf16.mxu0 %v500
    %587 = vmatpush1.bf16.msra.mxu0 %v499
    %588 = vmatprep.subr.bf16.mxu0 %v496
    %589 = vmatpush1.bf16.msra.mxu0 %v495
    %590 = vmatprep.subr.bf16.mxu0 %v492
    %591 = vmatpush1.bf16.msra.mxu0 %v491
    %592 = vmatprep.subr.bf16.mxu0 %v488
    %593 = vmatpush1.bf16.msra.mxu0 %v487
    %594 = vmatprep.subr.bf16.mxu0 %v484
    %595 = vmatpush1.bf16.msra.mxu0 %v483
    %596 = vmatprep.subr.bf16.mxu0 %v480
    %597 = vmatpush1.bf16.msra.mxu0 %v479
    %598 = vmatprep.subr.bf16.mxu0 0
    %599 = vmatpush2.bf16.msra.mxu0 0
    %600 = vmatprep.subr.bf16.mxu0 0
    %601 = vmatpush2.bf16.msra.mxu0 0
    %602 = vmatprep.subr.bf16.mxu0 0
    %603 = vmatpush2.bf16.msra.mxu0 0
    %604 = vmatprep.subr.bf16.mxu0 0
    %605 = vmatpush2.bf16.msra.mxu0 0
    %606 = vmatprep.subr.bf16.mxu0 0
    %607 = vmatpush2.bf16.msra.mxu0 0
    %608 = vmatprep.subr.bf16.mxu0 0
    %609 = vmatpush2.bf16.msra.mxu0 0
    %610 = vmatprep.subr.bf16.mxu0 0
    %611 = vmatpush2.bf16.msra.mxu0 0
    %612 = vmatprep.subr.bf16.mxu0 0
    %613 = vmatpush2.bf16.msra.mxu0 0
    %614 = vmatprep.mubr.bf16.mxu0 0
    %615 = vmatmul.mubr.bf16.gmra.mxu0 0
    %v616 = vpop.f32.mrf.mxu0
    %v617 = vadd.f32 0.0, %v616
    %v618 = vpop.f32.mrf.mxu0
    %v619 = vadd.f32 0.0, %v618
    %v620 = vpop.f32.mrf.mxu0
    %v621 = vpop.f32.mrf.mxu0
    %622 = vdwg.mxu0
    %v623 = vadd.f32 %v345, %v576
    %v624 = vadd.f32 %v346, %v578
    %v625 = vadd.f32 %v347, %v617
    %v626 = vadd.f32 %v348, %v619
    %v627 = vxor.u32 %v623, 2147483648
    %v628 = vxor.u32 %v624, 2147483648
    %v629 = vxor.u32 %v625, 2147483648
    %v630 = vmul.f32 %v627, 1.442695
    %v631 = vpow.pop %v630
    %v632 = vmul.f32 %v628, 1.442695
    %v633 = vpow.pop %v632
    %v634 = vmul.f32 %v629, 1.442695
    %v635 = vpow.pop %v634
    %v636 = vadd.f32 %v631, 1.0
    %v637 = vadd.f32 %v633, 1.0
    %v638 = vadd.f32 %v635, 1.0
    %v639 = vrcp.pop %v636
    %v640 = vmul.f32 1.0, %v639
    %v641 = vrcp.pop %v637
    %v642 = vmul.f32 1.0, %v641
    %v643 = vrcp.pop %v638
    %v644 = vmul.f32 1.0, %v643
    %v645 = vtanh.pop %v626
    %v646 = vmul.f32 %v642, 0.0
    %v647 = vmul.f32 %v640, %v645
    %v648 = vadd.f32 %v646, %v647
    %v649 = vtanh.pop %v648
    %v650 = vmul.f32 %v644, %v649
    %651 = vst [vmem:[#allocation3] sm:$0xff] %v650
    %s652 = scalar_lea.vmem [#allocation2], 32
    %v653 = vld [vmem:[%s652] sm:$0xff]
    %v654 = vld [vmem:[%s652 + $0x8] sm:$0xff]
    %v655 = vld [vmem:[%s652 + $0x10] sm:$0xff]
    %v656 = vld [vmem:[%s652 + $0x18] sm:$0xff]
    %v657 = vpack.c.bf16 %v650, %v650
    %v658 = vld [vmem:[#allocation4] sm:$0xff]
    %v659 = vld [vmem:[#allocation4 + $0x8] sm:$0xff]
    %v660 = vld [vmem:[#allocation4 + $0x10] sm:$0xff]
    %v661 = vld [vmem:[#allocation4 + $0x18] sm:$0xff]
    %v662 = vld [vmem:[#allocation4 + $0x20] sm:$0xff]
    %v663 = vld [vmem:[#allocation4 + $0x28] sm:$0xff]
    %v664 = vld [vmem:[#allocation4 + $0x30] sm:$0xff]
    %v665 = vld [vmem:[#allocation4 + $0x38] sm:$0xff]
    %v666 = vld [vmem:[#allocation4 + $0x40] sm:$0xff]
    %v667 = vld [vmem:[#allocation4 + $0x48] sm:$0xff]
    %v668 = vld [vmem:[#allocation4 + $0x50] sm:$0xff]
    %v669 = vld [vmem:[#allocation4 + $0x58] sm:$0xff]
    %v670 = vld [vmem:[#allocation4 + $0x60] sm:$0xff]
    %v671 = vld [vmem:[#allocation4 + $0x68] sm:$0xff]
    %v672 = vld [vmem:[#allocation4 + $0x70] sm:$0xff]
    %v673 = vld [vmem:[#allocation4 + $0x78] sm:$0xff]
    %v674 = vld [vmem:[#allocation4 + $0x80] sm:$0xff]
    %v675 = vld [vmem:[#allocation4 + $0x88] sm:$0xff]
    %v676 = vld [vmem:[#allocation4 + $0x90] sm:$0xff]
    %v677 = vld [vmem:[#allocation4 + $0x98] sm:$0xff]
    %v678 = vld [vmem:[#allocation4 + $0xa0] sm:$0xff]
    %v679 = vld [vmem:[#allocation4 + $0xa8] sm:$0xff]
    %v680 = vld [vmem:[#allocation4 + $0xb0] sm:$0xff]
    %v681 = vld [vmem:[#allocation4 + $0xb8] sm:$0xff]
    %v682 = vld [vmem:[#allocation4 + $0xc0] sm:$0xff]
    %v683 = vld [vmem:[#allocation4 + $0xc8] sm:$0xff]
    %v684 = vld [vmem:[#allocation4 + $0xd0] sm:$0xff]
    %v685 = vld [vmem:[#allocation4 + $0xd8] sm:$0xff]
    %v686 = vld [vmem:[#allocation4 + $0xe0] sm:$0xff]
    %v687 = vld [vmem:[#allocation4 + $0xe8] sm:$0xff]
    %v688 = vld [vmem:[#allocation4 + $0xf0] sm:$0xff]
    %v689 = vld [vmem:[#allocation4 + $0xf8] sm:$0xff]
    %v722 = vunpack.c.l.b16 %v658
    %v723 = vunpack.c.h.b16 %v658
    %v724 = vunpack.c.l.b16 %v659
    %v725 = vunpack.c.h.b16 %v659
    %v726 = vunpack.c.l.b16 %v660
    %v727 = vunpack.c.h.b16 %v660
    %v728 = vunpack.c.l.b16 %v661
    %v729 = vunpack.c.h.b16 %v661
    %v730 = vunpack.c.l.b16 %v662
    %v731 = vunpack.c.h.b16 %v662
    %v732 = vunpack.c.l.b16 %v663
    %v733 = vunpack.c.h.b16 %v663
    %v734 = vunpack.c.l.b16 %v664
    %v735 = vunpack.c.h.b16 %v664
    %v736 = vunpack.c.l.b16 %v665
    %v737 = vunpack.c.h.b16 %v665
    %v738 = vunpack.c.l.b16 %v666
    %v739 = vunpack.c.h.b16 %v666
    %v740 = vunpack.c.l.b16 %v667
    %v741 = vunpack.c.h.b16 %v667
    %v742 = vunpack.c.l.b16 %v668
    %v743 = vunpack.c.h.b16 %v668
    %v744 = vunpack.c.l.b16 %v669
    %v745 = vunpack.c.h.b16 %v669
    %v746 = vunpack.c.l.b16 %v670
    %v747 = vunpack.c.h.b16 %v670
    %v748 = vunpack.c.l.b16 %v671
    %v749 = vunpack.c.h.b16 %v671
    %v750 = vunpack.c.l.b16 %v672
    %v751 = vunpack.c.h.b16 %v672
    %v752 = vunpack.c.l.b16 %v673
    %v753 = vunpack.c.h.b16 %v673
    %v754 = vunpack.c.l.b16 %v674
    %v755 = vunpack.c.h.b16 %v674
    %v756 = vunpack.c.l.b16 %v675
    %v757 = vunpack.c.h.b16 %v675
    %v758 = vunpack.c.l.b16 %v676
    %v759 = vunpack.c.h.b16 %v676
    %v760 = vunpack.c.l.b16 %v677
    %v761 = vunpack.c.h.b16 %v677
    %v762 = vunpack.c.l.b16 %v678
    %v763 = vunpack.c.h.b16 %v678
    %v764 = vunpack.c.l.b16 %v679
    %v765 = vunpack.c.h.b16 %v679
    %v766 = vunpack.c.l.b16 %v680
    %v767 = vunpack.c.h.b16 %v680
    %v768 = vunpack.c.l.b16 %v681
    %v769 = vunpack.c.h.b16 %v681
    %v770 = vunpack.c.l.b16 %v682
    %v771 = vunpack.c.h.b16 %v682
    %v772 = vunpack.c.l.b16 %v683
    %v773 = vunpack.c.h.b16 %v683
    %v774 = vunpack.c.l.b16 %v684
    %v775 = vunpack.c.h.b16 %v684
    %v776 = vunpack.c.l.b16 %v685
    %v777 = vunpack.c.h.b16 %v685
    %v778 = vunpack.c.l.b16 %v686
    %v779 = vunpack.c.h.b16 %v686
    %v780 = vunpack.c.l.b16 %v687
    %v781 = vunpack.c.h.b16 %v687
    %v782 = vunpack.c.l.b16 %v688
    %v783 = vunpack.c.h.b16 %v688
    %v784 = vunpack.c.l.b16 %v689
    %v785 = vunpack.c.h.b16 %v689
    %v786 = vpack.c.b16 %v726, %v722
    %v787 = vpack.c.b16 %v727, %v723
    %v788 = vpack.c.b16 %v728, %v724
    %v789 = vpack.c.b16 %v729, %v725
    %v790 = vpack.c.b16 %v734, %v730
    %v791 = vpack.c.b16 %v735, %v731
    %v792 = vpack.c.b16 %v736, %v732
    %v793 = vpack.c.b16 %v737, %v733
    %v794 = vpack.c.b16 %v742, %v738
    %v795 = vpack.c.b16 %v743, %v739
    %v796 = vpack.c.b16 %v744, %v740
    %v797 = vpack.c.b16 %v745, %v741
    %v798 = vpack.c.b16 %v750, %v746
    %v799 = vpack.c.b16 %v751, %v747
    %v800 = vpack.c.b16 %v752, %v748
    %v801 = vpack.c.b16 %v753, %v749
    %v802 = vpack.c.b16 %v758, %v754
    %v803 = vpack.c.b16 %v759, %v755
    %v804 = vpack.c.b16 %v760, %v756
    %v805 = vpack.c.b16 %v761, %v757
    %v806 = vpack.c.b16 %v766, %v762
    %v807 = vpack.c.b16 %v767, %v763
    %v808 = vpack.c.b16 %v768, %v764
    %v809 = vpack.c.b16 %v769, %v765
    %v810 = vpack.c.b16 %v774, %v770
    %v811 = vpack.c.b16 %v775, %v771
    %v812 = vpack.c.b16 %v776, %v772
    %v813 = vpack.c.b16 %v777, %v773
    %v814 = vpack.c.b16 %v782, %v778
    %v815 = vpack.c.b16 %v783, %v779
    %v816 = vpack.c.b16 %v784, %v780
    %v817 = vpack.c.b16 %v785, %v781
    %850 = vmatprep.subr.bf16.mxu0 %v815
    %851 = vmatpush1.bf16.msra.mxu0 %v814
    %852 = vmatprep.subr.bf16.mxu0 %v811
    %853 = vmatpush1.bf16.msra.mxu0 %v810
    %854 = vmatprep.subr.bf16.mxu0 %v807
    %855 = vmatpush1.bf16.msra.mxu0 %v806
    %856 = vmatprep.subr.bf16.mxu0 %v803
    %857 = vmatpush1.bf16.msra.mxu0 %v802
    %858 = vmatprep.subr.bf16.mxu0 %v799
    %859 = vmatpush1.bf16.msra.mxu0 %v798
    %860 = vmatprep.subr.bf16.mxu0 %v795
    %861 = vmatpush1.bf16.msra.mxu0 %v794
    %862 = vmatprep.subr.bf16.mxu0 %v791
    %863 = vmatpush1.bf16.msra.mxu0 %v790
    %864 = vmatprep.subr.bf16.mxu0 %v787
    %865 = vmatpush1.bf16.msra.mxu0 %v786
    %866 = vmatprep.subr.bf16.mxu0 0
    %867 = vmatpush2.bf16.msra.mxu0 0
    %868 = vmatprep.subr.bf16.mxu0 0
    %869 = vmatpush2.bf16.msra.mxu0 0
    %870 = vmatprep.subr.bf16.mxu0 0
    %871 = vmatpush2.bf16.msra.mxu0 0
    %872 = vmatprep.subr.bf16.mxu0 0
    %873 = vmatpush2.bf16.msra.mxu0 0
    %874 = vmatprep.subr.bf16.mxu0 0
    %875 = vmatpush2.bf16.msra.mxu0 0
    %876 = vmatprep.subr.bf16.mxu0 0
    %877 = vmatpush2.bf16.msra.mxu0 0
    %878 = vmatprep.subr.bf16.mxu0 0
    %879 = vmatpush2.bf16.msra.mxu0 0
    %880 = vmatprep.subr.bf16.mxu0 0
    %881 = vmatpush2.bf16.msra.mxu0 0
    %882 = vmatprep.mubr.bf16.mxu0 0
    %883 = vmatmul.mubr.bf16.gmra.mxu0 %v657
    %v884 = vpop.f32.mrf.mxu0
    %v885 = vadd.f32 0.0, %v884
    %v886 = vpop.f32.mrf.mxu0
    %v887 = vadd.f32 0.0, %v886
    %v888 = vpop.f32.mrf.mxu0
    %v889 = vpop.f32.mrf.mxu0
    %890 = vdwg.mxu0
    %891 = vmatprep.subr.bf16.mxu0 %v817
    %892 = vmatpush1.bf16.msra.mxu0 %v816
    %893 = vmatprep.subr.bf16.mxu0 %v813
    %894 = vmatpush1.bf16.msra.mxu0 %v812
    %895 = vmatprep.subr.bf16.mxu0 %v809
    %896 = vmatpush1.bf16.msra.mxu0 %v808
    %897 = vmatprep.subr.bf16.mxu0 %v805
    %898 = vmatpush1.bf16.msra.mxu0 %v804
    %899 = vmatprep.subr.bf16.mxu0 %v801
    %900 = vmatpush1.bf16.msra.mxu0 %v800
    %901 = vmatprep.subr.bf16.mxu0 %v797
    %902 = vmatpush1.bf16.msra.mxu0 %v796
    %903 = vmatprep.subr.bf16.mxu0 %v793
    %904 = vmatpush1.bf16.msra.mxu0 %v792
    %905 = vmatprep.subr.bf16.mxu0 %v789
    %906 = vmatpush1.bf16.msra.mxu0 %v788
    %907 = vmatprep.subr.bf16.mxu0 0
    %908 = vmatpush2.bf16.msra.mxu0 0
    %909 = vmatprep.subr.bf16.mxu0 0
    %910 = vmatpush2.bf16.msra.mxu0 0
    %911 = vmatprep.subr.bf16.mxu0 0
    %912 = vmatpush2.bf16.msra.mxu0 0
    %913 = vmatprep.subr.bf16.mxu0 0
    %914 = vmatpush2.bf16.msra.mxu0 0
    %915 = vmatprep.subr.bf16.mxu0 0
    %916 = vmatpush2.bf16.msra.mxu0 0
    %917 = vmatprep.subr.bf16.mxu0 0
    %918 = vmatpush2.bf16.msra.mxu0 0
    %919 = vmatprep.subr.bf16.mxu0 0
    %920 = vmatpush2.bf16.msra.mxu0 0
    %921 = vmatprep.subr.bf16.mxu0 0
    %922 = vmatpush2.bf16.msra.mxu0 0
    %923 = vmatprep.mubr.bf16.mxu0 0
    %924 = vmatmul.mubr.bf16.gmra.mxu0 %v657
    %v925 = vpop.f32.mrf.mxu0
    %v926 = vadd.f32 0.0, %v925
    %v927 = vpop.f32.mrf.mxu0
    %v928 = vadd.f32 0.0, %v927
    %v929 = vpop.f32.mrf.mxu0
    %v930 = vpop.f32.mrf.mxu0
    %931 = vdwg.mxu0
    %v932 = vadd.f32 %v653, %v885
    %v933 = vadd.f32 %v654, %v887
    %v934 = vadd.f32 %v655, %v926
    %v935 = vadd.f32 %v656, %v928
    %v936 = vxor.u32 %v932, 2147483648
    %v937 = vxor.u32 %v933, 2147483648
    %v938 = vxor.u32 %v934, 2147483648
    %v939 = vmul.f32 %v936, 1.442695
    %v940 = vpow.pop %v939
    %v941 = vmul.f32 %v937, 1.442695
    %v942 = vpow.pop %v941
    %v943 = vmul.f32 %v938, 1.442695
    %v944 = vpow.pop %v943
    %v945 = vadd.f32 %v940, 1.0
    %v946 = vadd.f32 %v942, 1.0
    %v947 = vadd.f32 %v944, 1.0
    %v948 = vrcp.pop %v945
    %v949 = vmul.f32 1.0, %v948
    %v950 = vrcp.pop %v946
    %v951 = vmul.f32 1.0, %v950
    %v952 = vrcp.pop %v947
    %v953 = vmul.f32 1.0, %v952
    %v954 = vtanh.pop %v935
    %v955 = vmul.f32 %v951, %v648
    %v956 = vmul.f32 %v949, %v954
    %v957 = vadd.f32 %v955, %v956
    %v958 = vtanh.pop %v957
    %v959 = vmul.f32 %v953, %v958
    %s960 = scalar_lea.vmem [#allocation3], 8
    %961 = vst [vmem:[%s960] sm:$0xff] %v959
    %s962 = scalar_lea.vmem [#allocation2], 64
    %v963 = vld [vmem:[%s962] sm:$0xff]
    %v964 = vld [vmem:[%s962 + $0x8] sm:$0xff]
    %v965 = vld [vmem:[%s962 + $0x10] sm:$0xff]
    %v966 = vld [vmem:[%s962 + $0x18] sm:$0xff]
    %v967 = vpack.c.bf16 %v959, %v959
    %v968 = vld [vmem:[#allocation4] sm:$0xff]
    %v969 = vld [vmem:[#allocation4 + $0x8] sm:$0xff]
    %v970 = vld [vmem:[#allocation4 + $0x10] sm:$0xff]
    %v971 = vld [vmem:[#allocation4 + $0x18] sm:$0xff]
    %v972 = vld [vmem:[#allocation4 + $0x20] sm:$0xff]
    %v973 = vld [vmem:[#allocation4 + $0x28] sm:$0xff]
    %v974 = vld [vmem:[#allocation4 + $0x30] sm:$0xff]
    %v975 = vld [vmem:[#allocation4 + $0x38] sm:$0xff]
    %v976 = vld [vmem:[#allocation4 + $0x40] sm:$0xff]
    %v977 = vld [vmem:[#allocation4 + $0x48] sm:$0xff]
    %v978 = vld [vmem:[#allocation4 + $0x50] sm:$0xff]
    %v979 = vld [vmem:[#allocation4 + $0x58] sm:$0xff]
    %v980 = vld [vmem:[#allocation4 + $0x60] sm:$0xff]
    %v981 = vld [vmem:[#allocation4 + $0x68] sm:$0xff]
    %v982 = vld [vmem:[#allocation4 + $0x70] sm:$0xff]
    %v983 = vld [vmem:[#allocation4 + $0x78] sm:$0xff]
    %v984 = vld [vmem:[#allocation4 + $0x80] sm:$0xff]
    %v985 = vld [vmem:[#allocation4 + $0x88] sm:$0xff]
    %v986 = vld [vmem:[#allocation4 + $0x90] sm:$0xff]
    %v987 = vld [vmem:[#allocation4 + $0x98] sm:$0xff]
    %v988 = vld [vmem:[#allocation4 + $0xa0] sm:$0xff]
    %v989 = vld [vmem:[#allocation4 + $0xa8] sm:$0xff]
    %v990 = vld [vmem:[#allocation4 + $0xb0] sm:$0xff]
    %v991 = vld [vmem:[#allocation4 + $0xb8] sm:$0xff]
    %v992 = vld [vmem:[#allocation4 + $0xc0] sm:$0xff]
    %v993 = vld [vmem:[#allocation4 + $0xc8] sm:$0xff]
    %v994 = vld [vmem:[#allocation4 + $0xd0] sm:$0xff]
    %v995 = vld [vmem:[#allocation4 + $0xd8] sm:$0xff]
    %v996 = vld [vmem:[#allocation4 + $0xe0] sm:$0xff]
    %v997 = vld [vmem:[#allocation4 + $0xe8] sm:$0xff]
    %v998 = vld [vmem:[#allocation4 + $0xf0] sm:$0xff]
    %v999 = vld [vmem:[#allocation4 + $0xf8] sm:$0xff]
    %v1032 = vunpack.c.l.b16 %v968
    %v1033 = vunpack.c.h.b16 %v968
    %v1034 = vunpack.c.l.b16 %v969
    %v1035 = vunpack.c.h.b16 %v969
    %v1036 = vunpack.c.l.b16 %v970
    %v1037 = vunpack.c.h.b16 %v970
    %v1038 = vunpack.c.l.b16 %v971
    %v1039 = vunpack.c.h.b16 %v971
    %v1040 = vunpack.c.l.b16 %v972
    %v1041 = vunpack.c.h.b16 %v972
    %v1042 = vunpack.c.l.b16 %v973
    %v1043 = vunpack.c.h.b16 %v973
    %v1044 = vunpack.c.l.b16 %v974
    %v1045 = vunpack.c.h.b16 %v974
    %v1046 = vunpack.c.l.b16 %v975
    %v1047 = vunpack.c.h.b16 %v975
    %v1048 = vunpack.c.l.b16 %v976
    %v1049 = vunpack.c.h.b16 %v976
    %v1050 = vunpack.c.l.b16 %v977
    %v1051 = vunpack.c.h.b16 %v977
    %v1052 = vunpack.c.l.b16 %v978
    %v1053 = vunpack.c.h.b16 %v978
    %v1054 = vunpack.c.l.b16 %v979
    %v1055 = vunpack.c.h.b16 %v979
    %v1056 = vunpack.c.l.b16 %v980
    %v1057 = vunpack.c.h.b16 %v980
    %v1058 = vunpack.c.l.b16 %v981
    %v1059 = vunpack.c.h.b16 %v981
    %v1060 = vunpack.c.l.b16 %v982
    %v1061 = vunpack.c.h.b16 %v982
    %v1062 = vunpack.c.l.b16 %v983
    %v1063 = vunpack.c.h.b16 %v983
    %v1064 = vunpack.c.l.b16 %v984
    %v1065 = vunpack.c.h.b16 %v984
    %v1066 = vunpack.c.l.b16 %v985
    %v1067 = vunpack.c.h.b16 %v985
    %v1068 = vunpack.c.l.b16 %v986
    %v1069 = vunpack.c.h.b16 %v986
    %v1070 = vunpack.c.l.b16 %v987
    %v1071 = vunpack.c.h.b16 %v987
    %v1072 = vunpack.c.l.b16 %v988
    %v1073 = vunpack.c.h.b16 %v988
    %v1074 = vunpack.c.l.b16 %v989
    %v1075 = vunpack.c.h.b16 %v989
    %v1076 = vunpack.c.l.b16 %v990
    %v1077 = vunpack.c.h.b16 %v990
    %v1078 = vunpack.c.l.b16 %v991
    %v1079 = vunpack.c.h.b16 %v991
    %v1080 = vunpack.c.l.b16 %v992
    %v1081 = vunpack.c.h.b16 %v992
    %v1082 = vunpack.c.l.b16 %v993
    %v1083 = vunpack.c.h.b16 %v993
    %v1084 = vunpack.c.l.b16 %v994
    %v1085 = vunpack.c.h.b16 %v994
    %v1086 = vunpack.c.l.b16 %v995
    %v1087 = vunpack.c.h.b16 %v995
    %v1088 = vunpack.c.l.b16 %v996
    %v1089 = vunpack.c.h.b16 %v996
    %v1090 = vunpack.c.l.b16 %v997
    %v1091 = vunpack.c.h.b16 %v997
    %v1092 = vunpack.c.l.b16 %v998
    %v1093 = vunpack.c.h.b16 %v998
    %v1094 = vunpack.c.l.b16 %v999
    %v1095 = vunpack.c.h.b16 %v999
    %v1096 = vpack.c.b16 %v1036, %v1032
    %v1097 = vpack.c.b16 %v1037, %v1033
    %v1098 = vpack.c.b16 %v1038, %v1034
    %v1099 = vpack.c.b16 %v1039, %v1035
    %v1100 = vpack.c.b16 %v1044, %v1040
    %v1101 = vpack.c.b16 %v1045, %v1041
    %v1102 = vpack.c.b16 %v1046, %v1042
    %v1103 = vpack.c.b16 %v1047, %v1043
    %v1104 = vpack.c.b16 %v1052, %v1048
    %v1105 = vpack.c.b16 %v1053, %v1049
    %v1106 = vpack.c.b16 %v1054, %v1050
    %v1107 = vpack.c.b16 %v1055, %v1051
    %v1108 = vpack.c.b16 %v1060, %v1056
    %v1109 = vpack.c.b16 %v1061, %v1057
    %v1110 = vpack.c.b16 %v1062, %v1058
    %v1111 = vpack.c.b16 %v1063, %v1059
    %v1112 = vpack.c.b16 %v1068, %v1064
    %v1113 = vpack.c.b16 %v1069, %v1065
    %v1114 = vpack.c.b16 %v1070, %v1066
    %v1115 = vpack.c.b16 %v1071, %v1067
    %v1116 = vpack.c.b16 %v1076, %v1072
    %v1117 = vpack.c.b16 %v1077, %v1073
    %v1118 = vpack.c.b16 %v1078, %v1074
    %v1119 = vpack.c.b16 %v1079, %v1075
    %v1120 = vpack.c.b16 %v1084, %v1080
    %v1121 = vpack.c.b16 %v1085, %v1081
    %v1122 = vpack.c.b16 %v1086, %v1082
    %v1123 = vpack.c.b16 %v1087, %v1083
    %v1124 = vpack.c.b16 %v1092, %v1088
    %v1125 = vpack.c.b16 %v1093, %v1089
    %v1126 = vpack.c.b16 %v1094, %v1090
    %v1127 = vpack.c.b16 %v1095, %v1091
    %1160 = vmatprep.subr.bf16.mxu0 %v1125
    %1161 = vmatpush1.bf16.msra.mxu0 %v1124
    %1162 = vmatprep.subr.bf16.mxu0 %v1121
    %1163 = vmatpush1.bf16.msra.mxu0 %v1120
    %1164 = vmatprep.subr.bf16.mxu0 %v1117
    %1165 = vmatpush1.bf16.msra.mxu0 %v1116
    %1166 = vmatprep.subr.bf16.mxu0 %v1113
    %1167 = vmatpush1.bf16.msra.mxu0 %v1112
    %1168 = vmatprep.subr.bf16.mxu0 %v1109
    %1169 = vmatpush1.bf16.msra.mxu0 %v1108
    %1170 = vmatprep.subr.bf16.mxu0 %v1105
    %1171 = vmatpush1.bf16.msra.mxu0 %v1104
    %1172 = vmatprep.subr.bf16.mxu0 %v1101
    %1173 = vmatpush1.bf16.msra.mxu0 %v1100
    %1174 = vmatprep.subr.bf16.mxu0 %v1097
    %1175 = vmatpush1.bf16.msra.mxu0 %v1096
    %1176 = vmatprep.subr.bf16.mxu0 0
    %1177 = vmatpush2.bf16.msra.mxu0 0
    %1178 = vmatprep.subr.bf16.mxu0 0
    %1179 = vmatpush2.bf16.msra.mxu0 0
    %1180 = vmatprep.subr.bf16.mxu0 0
    %1181 = vmatpush2.bf16.msra.mxu0 0
    %1182 = vmatprep.subr.bf16.mxu0 0
    %1183 = vmatpush2.bf16.msra.mxu0 0
    %1184 = vmatprep.subr.bf16.mxu0 0
    %1185 = vmatpush2.bf16.msra.mxu0 0
    %1186 = vmatprep.subr.bf16.mxu0 0
    %1187 = vmatpush2.bf16.msra.mxu0 0
    %1188 = vmatprep.subr.bf16.mxu0 0
    %1189 = vmatpush2.bf16.msra.mxu0 0
    %1190 = vmatprep.subr.bf16.mxu0 0
    %1191 = vmatpush2.bf16.msra.mxu0 0
    %1192 = vmatprep.mubr.bf16.mxu0 0
    %1193 = vmatmul.mubr.bf16.gmra.mxu0 %v967
    %v1194 = vpop.f32.mrf.mxu0
    %v1195 = vadd.f32 0.0, %v1194
    %v1196 = vpop.f32.mrf.mxu0
    %v1197 = vadd.f32 0.0, %v1196
    %v1198 = vpop.f32.mrf.mxu0
    %v1199 = vpop.f32.mrf.mxu0
    %1200 = vdwg.mxu0
    %1201 = vmatprep.subr.bf16.mxu0 %v1127
    %1202 = vmatpush1.bf16.msra.mxu0 %v1126
    %1203 = vmatprep.subr.bf16.mxu0 %v1123
    %1204 = vmatpush1.bf16.msra.mxu0 %v1122
    %1205 = vmatprep.subr.bf16.mxu0 %v1119
    %1206 = vmatpush1.bf16.msra.mxu0 %v1118
    %1207 = vmatprep.subr.bf16.mxu0 %v1115
    %1208 = vmatpush1.bf16.msra.mxu0 %v1114
    %1209 = vmatprep.subr.bf16.mxu0 %v1111
    %1210 = vmatpush1.bf16.msra.mxu0 %v1110
    %1211 = vmatprep.subr.bf16.mxu0 %v1107
    %1212 = vmatpush1.bf16.msra.mxu0 %v1106
    %1213 = vmatprep.subr.bf16.mxu0 %v1103
    %1214 = vmatpush1.bf16.msra.mxu0 %v1102
    %1215 = vmatprep.subr.bf16.mxu0 %v1099
    %1216 = vmatpush1.bf16.msra.mxu0 %v1098
    %1217 = vmatprep.subr.bf16.mxu0 0
    %1218 = vmatpush2.bf16.msra.mxu0 0
    %1219 = vmatprep.subr.bf16.mxu0 0
    %1220 = vmatpush2.bf16.msra.mxu0 0
    %1221 = vmatprep.subr.bf16.mxu0 0
    %1222 = vmatpush2.bf16.msra.mxu0 0
    %1223 = vmatprep.subr.bf16.mxu0 0
    %1224 = vmatpush2.bf16.msra.mxu0 0
    %1225 = vmatprep.subr.bf16.mxu0 0
    %1226 = vmatpush2.bf16.msra.mxu0 0
    %1227 = vmatprep.subr.bf16.mxu0 0
    %1228 = vmatpush2.bf16.msra.mxu0 0
    %1229 = vmatprep.subr.bf16.mxu0 0
    %1230 = vmatpush2.bf16.msra.mxu0 0
    %1231 = vmatprep.subr.bf16.mxu0 0
    %1232 = vmatpush2.bf16.msra.mxu0 0
    %1233 = vmatprep.mubr.bf16.mxu0 0
    %1234 = vmatmul.mubr.bf16.gmra.mxu0 %v967
    %v1235 = vpop.f32.mrf.mxu0
    %v1236 = vadd.f32 0.0, %v1235
    %v1237 = vpop.f32.mrf.mxu0
    %v1238 = vadd.f32 0.0, %v1237
    %v1239 = vpop.f32.mrf.mxu0
    %v1240 = vpop.f32.mrf.mxu0
    %1241 = vdwg.mxu0
    %v1242 = vadd.f32 %v963, %v1195
    %v1243 = vadd.f32 %v964, %v1197
    %v1244 = vadd.f32 %v965, %v1236
    %v1245 = vadd.f32 %v966, %v1238
    %v1246 = vxor.u32 %v1242, 2147483648
    %v1247 = vxor.u32 %v1243, 2147483648
    %v1248 = vxor.u32 %v1244, 2147483648
    %v1249 = vmul.f32 %v1246, 1.442695
    %v1250 = vpow.pop %v1249
    %v1251 = vmul.f32 %v1247, 1.442695
    %v1252 = vpow.pop %v1251
    %v1253 = vmul.f32 %v1248, 1.442695
    %v1254 = vpow.pop %v1253
    %v1255 = vadd.f32 %v1250, 1.0
    %v1256 = vadd.f32 %v1252, 1.0
    %v1257 = vadd.f32 %v1254, 1.0
    %v1258 = vrcp.pop %v1255
    %v1259 = vmul.f32 1.0, %v1258
    %v1260 = vrcp.pop %v1256
    %v1261 = vmul.f32 1.0, %v1260
    %v1262 = vrcp.pop %v1257
    %v1263 = vmul.f32 1.0, %v1262
    %v1264 = vtanh.pop %v1245
    %v1265 = vmul.f32 %v1261, %v957
    %v1266 = vmul.f32 %v1259, %v1264
    %v1267 = vadd.f32 %v1265, %v1266
    %v1268 = vtanh.pop %v1267
    %v1269 = vmul.f32 %v1263, %v1268
    %s1270 = scalar_lea.vmem [#allocation3], 16
    %1271 = vst [vmem:[%s1270] sm:$0xff] %v1269
    %s1272 = scalar_lea.vmem [#allocation2], 96
    %v1273 = vld [vmem:[%s1272] sm:$0xff]
    %v1274 = vld [vmem:[%s1272 + $0x8] sm:$0xff]
    %v1275 = vld [vmem:[%s1272 + $0x10] sm:$0xff]
    %v1276 = vld [vmem:[%s1272 + $0x18] sm:$0xff]
    %v1277 = vpack.c.bf16 %v1269, %v1269
    %v1278 = vld [vmem:[#allocation4] sm:$0xff]
    %v1279 = vld [vmem:[#allocation4 + $0x8] sm:$0xff]
    %v1280 = vld [vmem:[#allocation4 + $0x10] sm:$0xff]
    %v1281 = vld [vmem:[#allocation4 + $0x18] sm:$0xff]
    %v1282 = vld [vmem:[#allocation4 + $0x20] sm:$0xff]
    %v1283 = vld [vmem:[#allocation4 + $0x28] sm:$0xff]
    %v1284 = vld [vmem:[#allocation4 + $0x30] sm:$0xff]
    %v1285 = vld [vmem:[#allocation4 + $0x38] sm:$0xff]
    %v1286 = vld [vmem:[#allocation4 + $0x40] sm:$0xff]
    %v1287 = vld [vmem:[#allocation4 + $0x48] sm:$0xff]
    %v1288 = vld [vmem:[#allocation4 + $0x50] sm:$0xff]
    %v1289 = vld [vmem:[#allocation4 + $0x58] sm:$0xff]
    %v1290 = vld [vmem:[#allocation4 + $0x60] sm:$0xff]
    %v1291 = vld [vmem:[#allocation4 + $0x68] sm:$0xff]
    %v1292 = vld [vmem:[#allocation4 + $0x70] sm:$0xff]
    %v1293 = vld [vmem:[#allocation4 + $0x78] sm:$0xff]
    %v1294 = vld [vmem:[#allocation4 + $0x80] sm:$0xff]
    %v1295 = vld [vmem:[#allocation4 + $0x88] sm:$0xff]
    %v1296 = vld [vmem:[#allocation4 + $0x90] sm:$0xff]
    %v1297 = vld [vmem:[#allocation4 + $0x98] sm:$0xff]
    %v1298 = vld [vmem:[#allocation4 + $0xa0] sm:$0xff]
    %v1299 = vld [vmem:[#allocation4 + $0xa8] sm:$0xff]
    %v1300 = vld [vmem:[#allocation4 + $0xb0] sm:$0xff]
    %v1301 = vld [vmem:[#allocation4 + $0xb8] sm:$0xff]
    %v1302 = vld [vmem:[#allocation4 + $0xc0] sm:$0xff]
    %v1303 = vld [vmem:[#allocation4 + $0xc8] sm:$0xff]
    %v1304 = vld [vmem:[#allocation4 + $0xd0] sm:$0xff]
    %v1305 = vld [vmem:[#allocation4 + $0xd8] sm:$0xff]
    %v1306 = vld [vmem:[#allocation4 + $0xe0] sm:$0xff]
    %v1307 = vld [vmem:[#allocation4 + $0xe8] sm:$0xff]
    %v1308 = vld [vmem:[#allocation4 + $0xf0] sm:$0xff]
    %v1309 = vld [vmem:[#allocation4 + $0xf8] sm:$0xff]
    %v1342 = vunpack.c.l.b16 %v1278
    %v1343 = vunpack.c.h.b16 %v1278
    %v1344 = vunpack.c.l.b16 %v1279
    %v1345 = vunpack.c.h.b16 %v1279
    %v1346 = vunpack.c.l.b16 %v1280
    %v1347 = vunpack.c.h.b16 %v1280
    %v1348 = vunpack.c.l.b16 %v1281
    %v1349 = vunpack.c.h.b16 %v1281
    %v1350 = vunpack.c.l.b16 %v1282
    %v1351 = vunpack.c.h.b16 %v1282
    %v1352 = vunpack.c.l.b16 %v1283
    %v1353 = vunpack.c.h.b16 %v1283
    %v1354 = vunpack.c.l.b16 %v1284
    %v1355 = vunpack.c.h.b16 %v1284
    %v1356 = vunpack.c.l.b16 %v1285
    %v1357 = vunpack.c.h.b16 %v1285
    %v1358 = vunpack.c.l.b16 %v1286
    %v1359 = vunpack.c.h.b16 %v1286
    %v1360 = vunpack.c.l.b16 %v1287
    %v1361 = vunpack.c.h.b16 %v1287
    %v1362 = vunpack.c.l.b16 %v1288
    %v1363 = vunpack.c.h.b16 %v1288
    %v1364 = vunpack.c.l.b16 %v1289
    %v1365 = vunpack.c.h.b16 %v1289
    %v1366 = vunpack.c.l.b16 %v1290
    %v1367 = vunpack.c.h.b16 %v1290
    %v1368 = vunpack.c.l.b16 %v1291
    %v1369 = vunpack.c.h.b16 %v1291
    %v1370 = vunpack.c.l.b16 %v1292
    %v1371 = vunpack.c.h.b16 %v1292
    %v1372 = vunpack.c.l.b16 %v1293
    %v1373 = vunpack.c.h.b16 %v1293
    %v1374 = vunpack.c.l.b16 %v1294
    %v1375 = vunpack.c.h.b16 %v1294
    %v1376 = vunpack.c.l.b16 %v1295
    %v1377 = vunpack.c.h.b16 %v1295
    %v1378 = vunpack.c.l.b16 %v1296
    %v1379 = vunpack.c.h.b16 %v1296
    %v1380 = vunpack.c.l.b16 %v1297
    %v1381 = vunpack.c.h.b16 %v1297
    %v1382 = vunpack.c.l.b16 %v1298
    %v1383 = vunpack.c.h.b16 %v1298
    %v1384 = vunpack.c.l.b16 %v1299
    %v1385 = vunpack.c.h.b16 %v1299
    %v1386 = vunpack.c.l.b16 %v1300
    %v1387 = vunpack.c.h.b16 %v1300
    %v1388 = vunpack.c.l.b16 %v1301
    %v1389 = vunpack.c.h.b16 %v1301
    %v1390 = vunpack.c.l.b16 %v1302
    %v1391 = vunpack.c.h.b16 %v1302
    %v1392 = vunpack.c.l.b16 %v1303
    %v1393 = vunpack.c.h.b16 %v1303
    %v1394 = vunpack.c.l.b16 %v1304
    %v1395 = vunpack.c.h.b16 %v1304
    %v1396 = vunpack.c.l.b16 %v1305
    %v1397 = vunpack.c.h.b16 %v1305
    %v1398 = vunpack.c.l.b16 %v1306
    %v1399 = vunpack.c.h.b16 %v1306
    %v1400 = vunpack.c.l.b16 %v1307
    %v1401 = vunpack.c.h.b16 %v1307
    %v1402 = vunpack.c.l.b16 %v1308
    %v1403 = vunpack.c.h.b16 %v1308
    %v1404 = vunpack.c.l.b16 %v1309
    %v1405 = vunpack.c.h.b16 %v1309
    %v1406 = vpack.c.b16 %v1346, %v1342
    %v1407 = vpack.c.b16 %v1347, %v1343
    %v1408 = vpack.c.b16 %v1348, %v1344
    %v1409 = vpack.c.b16 %v1349, %v1345
    %v1410 = vpack.c.b16 %v1354, %v1350
    %v1411 = vpack.c.b16 %v1355, %v1351
    %v1412 = vpack.c.b16 %v1356, %v1352
    %v1413 = vpack.c.b16 %v1357, %v1353
    %v1414 = vpack.c.b16 %v1362, %v1358
    %v1415 = vpack.c.b16 %v1363, %v1359
    %v1416 = vpack.c.b16 %v1364, %v1360
    %v1417 = vpack.c.b16 %v1365, %v1361
    %v1418 = vpack.c.b16 %v1370, %v1366
    %v1419 = vpack.c.b16 %v1371, %v1367
    %v1420 = vpack.c.b16 %v1372, %v1368
    %v1421 = vpack.c.b16 %v1373, %v1369
    %v1422 = vpack.c.b16 %v1378, %v1374
    %v1423 = vpack.c.b16 %v1379, %v1375
    %v1424 = vpack.c.b16 %v1380, %v1376
    %v1425 = vpack.c.b16 %v1381, %v1377
    %v1426 = vpack.c.b16 %v1386, %v1382
    %v1427 = vpack.c.b16 %v1387, %v1383
    %v1428 = vpack.c.b16 %v1388, %v1384
    %v1429 = vpack.c.b16 %v1389, %v1385
    %v1430 = vpack.c.b16 %v1394, %v1390
    %v1431 = vpack.c.b16 %v1395, %v1391
    %v1432 = vpack.c.b16 %v1396, %v1392
    %v1433 = vpack.c.b16 %v1397, %v1393
    %v1434 = vpack.c.b16 %v1402, %v1398
    %v1435 = vpack.c.b16 %v1403, %v1399
    %v1436 = vpack.c.b16 %v1404, %v1400
    %v1437 = vpack.c.b16 %v1405, %v1401
    %1470 = vmatprep.subr.bf16.mxu0 %v1435
    %1471 = vmatpush1.bf16.msra.mxu0 %v1434
    %1472 = vmatprep.subr.bf16.mxu0 %v1431
    %1473 = vmatpush1.bf16.msra.mxu0 %v1430
    %1474 = vmatprep.subr.bf16.mxu0 %v1427
    %1475 = vmatpush1.bf16.msra.mxu0 %v1426
    %1476 = vmatprep.subr.bf16.mxu0 %v1423
    %1477 = vmatpush1.bf16.msra.mxu0 %v1422
    %1478 = vmatprep.subr.bf16.mxu0 %v1419
    %1479 = vmatpush1.bf16.msra.mxu0 %v1418
    %1480 = vmatprep.subr.bf16.mxu0 %v1415
    %1481 = vmatpush1.bf16.msra.mxu0 %v1414
    %1482 = vmatprep.subr.bf16.mxu0 %v1411
    %1483 = vmatpush1.bf16.msra.mxu0 %v1410
    %1484 = vmatprep.subr.bf16.mxu0 %v1407
    %1485 = vmatpush1.bf16.msra.mxu0 %v1406
    %1486 = vmatprep.subr.bf16.mxu0 0
    %1487 = vmatpush2.bf16.msra.mxu0 0
    %1488 = vmatprep.subr.bf16.mxu0 0
    %1489 = vmatpush2.bf16.msra.mxu0 0
    %1490 = vmatprep.subr.bf16.mxu0 0
    %1491 = vmatpush2.bf16.msra.mxu0 0
    %1492 = vmatprep.subr.bf16.mxu0 0
    %1493 = vmatpush2.bf16.msra.mxu0 0
    %1494 = vmatprep.subr.bf16.mxu0 0
    %1495 = vmatpush2.bf16.msra.mxu0 0
    %1496 = vmatprep.subr.bf16.mxu0 0
    %1497 = vmatpush2.bf16.msra.mxu0 0
    %1498 = vmatprep.subr.bf16.mxu0 0
    %1499 = vmatpush2.bf16.msra.mxu0 0
    %1500 = vmatprep.subr.bf16.mxu0 0
    %1501 = vmatpush2.bf16.msra.mxu0 0
    %1502 = vmatprep.mubr.bf16.mxu0 0
    %1503 = vmatmul.mubr.bf16.gmra.mxu0 %v1277
    %v1504 = vpop.f32.mrf.mxu0
    %v1505 = vadd.f32 0.0, %v1504
    %v1506 = vpop.f32.mrf.mxu0
    %v1507 = vadd.f32 0.0, %v1506
    %v1508 = vpop.f32.mrf.mxu0
    %v1509 = vpop.f32.mrf.mxu0
    %1510 = vdwg.mxu0
    %1511 = vmatprep.subr.bf16.mxu0 %v1437
    %1512 = vmatpush1.bf16.msra.mxu0 %v1436
    %1513 = vmatprep.subr.bf16.mxu0 %v1433
    %1514 = vmatpush1.bf16.msra.mxu0 %v1432
    %1515 = vmatprep.subr.bf16.mxu0 %v1429
    %1516 = vmatpush1.bf16.msra.mxu0 %v1428
    %1517 = vmatprep.subr.bf16.mxu0 %v1425
    %1518 = vmatpush1.bf16.msra.mxu0 %v1424
    %1519 = vmatprep.subr.bf16.mxu0 %v1421
    %1520 = vmatpush1.bf16.msra.mxu0 %v1420
    %1521 = vmatprep.subr.bf16.mxu0 %v1417
    %1522 = vmatpush1.bf16.msra.mxu0 %v1416
    %1523 = vmatprep.subr.bf16.mxu0 %v1413
    %1524 = vmatpush1.bf16.msra.mxu0 %v1412
    %1525 = vmatprep.subr.bf16.mxu0 %v1409
    %1526 = vmatpush1.bf16.msra.mxu0 %v1408
    %1527 = vmatprep.subr.bf16.mxu0 0
    %1528 = vmatpush2.bf16.msra.mxu0 0
    %1529 = vmatprep.subr.bf16.mxu0 0
    %1530 = vmatpush2.bf16.msra.mxu0 0
    %1531 = vmatprep.subr.bf16.mxu0 0
    %1532 = vmatpush2.bf16.msra.mxu0 0
    %1533 = vmatprep.subr.bf16.mxu0 0
    %1534 = vmatpush2.bf16.msra.mxu0 0
    %1535 = vmatprep.subr.bf16.mxu0 0
    %1536 = vmatpush2.bf16.msra.mxu0 0
    %1537 = vmatprep.subr.bf16.mxu0 0
    %1538 = vmatpush2.bf16.msra.mxu0 0
    %1539 = vmatprep.subr.bf16.mxu0 0
    %1540 = vmatpush2.bf16.msra.mxu0 0
    %1541 = vmatprep.subr.bf16.mxu0 0
    %1542 = vmatpush2.bf16.msra.mxu0 0
    %1543 = vmatprep.mubr.bf16.mxu0 0
    %1544 = vmatmul.mubr.bf16.gmra.mxu0 %v1277
    %v1545 = vpop.f32.mrf.mxu0
    %v1546 = vadd.f32 0.0, %v1545
    %v1547 = vpop.f32.mrf.mxu0
    %v1548 = vadd.f32 0.0, %v1547
    %v1549 = vpop.f32.mrf.mxu0
    %v1550 = vpop.f32.mrf.mxu0
    %1551 = vdwg.mxu0
    %v1552 = vadd.f32 %v1273, %v1505
    %v1553 = vadd.f32 %v1274, %v1507
    %v1554 = vadd.f32 %v1275, %v1546
    %v1555 = vadd.f32 %v1276, %v1548
    %v1556 = vxor.u32 %v1552, 2147483648
    %v1557 = vxor.u32 %v1553, 2147483648
    %v1558 = vxor.u32 %v1554, 2147483648
    %v1559 = vmul.f32 %v1556, 1.442695
    %v1560 = vpow.pop %v1559
    %v1561 = vmul.f32 %v1557, 1.442695
    %v1562 = vpow.pop %v1561
    %v1563 = vmul.f32 %v1558, 1.442695
    %v1564 = vpow.pop %v1563
    %v1565 = vadd.f32 %v1560, 1.0
    %v1566 = vadd.f32 %v1562, 1.0
    %v1567 = vadd.f32 %v1564, 1.0
    %v1568 = vrcp.pop %v1565
    %v1569 = vmul.f32 1.0, %v1568
    %v1570 = vrcp.pop %v1566
    %v1571 = vmul.f32 1.0, %v1570
    %v1572 = vrcp.pop %v1567
    %v1573 = vmul.f32 1.0, %v1572
    %v1574 = vtanh.pop %v1555
    %v1575 = vmul.f32 %v1571, %v1267
    %v1576 = vmul.f32 %v1569, %v1574
    %v1577 = vadd.f32 %v1575, %v1576
    %v1578 = vtanh.pop %v1577
    %v1579 = vmul.f32 %v1573, %v1578
    %s1580 = scalar_lea.vmem [#allocation3], 24
    %1581 = vst [vmem:[%s1580] sm:$0xff] %v1579
    %s1582 = scalar_lea.vmem [#allocation2], 128
    %v1583 = vld [vmem:[%s1582] sm:$0xff]
    %v1584 = vld [vmem:[%s1582 + $0x8] sm:$0xff]
    %v1585 = vld [vmem:[%s1582 + $0x10] sm:$0xff]
    %v1586 = vld [vmem:[%s1582 + $0x18] sm:$0xff]
    %v1587 = vpack.c.bf16 %v1579, %v1579
    %v1588 = vld [vmem:[#allocation4] sm:$0xff]
    %v1589 = vld [vmem:[#allocation4 + $0x8] sm:$0xff]
    %v1590 = vld [vmem:[#allocation4 + $0x10] sm:$0xff]
    %v1591 = vld [vmem:[#allocation4 + $0x18] sm:$0xff]
    %v1592 = vld [vmem:[#allocation4 + $0x20] sm:$0xff]
    %v1593 = vld [vmem:[#allocation4 + $0x28] sm:$0xff]
    %v1594 = vld [vmem:[#allocation4 + $0x30] sm:$0xff]
    %v1595 = vld [vmem:[#allocation4 + $0x38] sm:$0xff]
    %v1596 = vld [vmem:[#allocation4 + $0x40] sm:$0xff]
    %v1597 = vld [vmem:[#allocation4 + $0x48] sm:$0xff]
    %v1598 = vld [vmem:[#allocation4 + $0x50] sm:$0xff]
    %v1599 = vld [vmem:[#allocation4 + $0x58] sm:$0xff]
    %v1600 = vld [vmem:[#allocation4 + $0x60] sm:$0xff]
    %v1601 = vld [vmem:[#allocation4 + $0x68] sm:$0xff]
    %v1602 = vld [vmem:[#allocation4 + $0x70] sm:$0xff]
    %v1603 = vld [vmem:[#allocation4 + $0x78] sm:$0xff]
    %v1604 = vld [vmem:[#allocation4 + $0x80] sm:$0xff]
    %v1605 = vld [vmem:[#allocation4 + $0x88] sm:$0xff]
    %v1606 = vld [vmem:[#allocation4 + $0x90] sm:$0xff]
    %v1607 = vld [vmem:[#allocation4 + $0x98] sm:$0xff]
    %v1608 = vld [vmem:[#allocation4 + $0xa0] sm:$0xff]
    %v1609 = vld [vmem:[#allocation4 + $0xa8] sm:$0xff]
    %v1610 = vld [vmem:[#allocation4 + $0xb0] sm:$0xff]
    %v1611 = vld [vmem:[#allocation4 + $0xb8] sm:$0xff]
    %v1612 = vld [vmem:[#allocation4 + $0xc0] sm:$0xff]
    %v1613 = vld [vmem:[#allocation4 + $0xc8] sm:$0xff]
    %v1614 = vld [vmem:[#allocation4 + $0xd0] sm:$0xff]
    %v1615 = vld [vmem:[#allocation4 + $0xd8] sm:$0xff]
    %v1616 = vld [vmem:[#allocation4 + $0xe0] sm:$0xff]
    %v1617 = vld [vmem:[#allocation4 + $0xe8] sm:$0xff]
    %v1618 = vld [vmem:[#allocation4 + $0xf0] sm:$0xff]
    %v1619 = vld [vmem:[#allocation4 + $0xf8] sm:$0xff]
    %v1652 = vunpack.c.l.b16 %v1588
    %v1653 = vunpack.c.h.b16 %v1588
    %v1654 = vunpack.c.l.b16 %v1589
    %v1655 = vunpack.c.h.b16 %v1589
    %v1656 = vunpack.c.l.b16 %v1590
    %v1657 = vunpack.c.h.b16 %v1590
    %v1658 = vunpack.c.l.b16 %v1591
    %v1659 = vunpack.c.h.b16 %v1591
    %v1660 = vunpack.c.l.b16 %v1592
    %v1661 = vunpack.c.h.b16 %v1592
    %v1662 = vunpack.c.l.b16 %v1593
    %v1663 = vunpack.c.h.b16 %v1593
    %v1664 = vunpack.c.l.b16 %v1594
    %v1665 = vunpack.c.h.b16 %v1594
    %v1666 = vunpack.c.l.b16 %v1595
    %v1667 = vunpack.c.h.b16 %v1595
    %v1668 = vunpack.c.l.b16 %v1596
    %v1669 = vunpack.c.h.b16 %v1596
    %v1670 = vunpack.c.l.b16 %v1597
    %v1671 = vunpack.c.h.b16 %v1597
    %v1672 = vunpack.c.l.b16 %v1598
    %v1673 = vunpack.c.h.b16 %v1598
    %v1674 = vunpack.c.l.b16 %v1599
    %v1675 = vunpack.c.h.b16 %v1599
    %v1676 = vunpack.c.l.b16 %v1600
    %v1677 = vunpack.c.h.b16 %v1600
    %v1678 = vunpack.c.l.b16 %v1601
    %v1679 = vunpack.c.h.b16 %v1601
    %v1680 = vunpack.c.l.b16 %v1602
    %v1681 = vunpack.c.h.b16 %v1602
    %v1682 = vunpack.c.l.b16 %v1603
    %v1683 = vunpack.c.h.b16 %v1603
    %v1684 = vunpack.c.l.b16 %v1604
    %v1685 = vunpack.c.h.b16 %v1604
    %v1686 = vunpack.c.l.b16 %v1605
    %v1687 = vunpack.c.h.b16 %v1605
    %v1688 = vunpack.c.l.b16 %v1606
    %v1689 = vunpack.c.h.b16 %v1606
    %v1690 = vunpack.c.l.b16 %v1607
    %v1691 = vunpack.c.h.b16 %v1607
    %v1692 = vunpack.c.l.b16 %v1608
    %v1693 = vunpack.c.h.b16 %v1608
    %v1694 = vunpack.c.l.b16 %v1609
    %v1695 = vunpack.c.h.b16 %v1609
    %v1696 = vunpack.c.l.b16 %v1610
    %v1697 = vunpack.c.h.b16 %v1610
    %v1698 = vunpack.c.l.b16 %v1611
    %v1699 = vunpack.c.h.b16 %v1611
    %v1700 = vunpack.c.l.b16 %v1612
    %v1701 = vunpack.c.h.b16 %v1612
    %v1702 = vunpack.c.l.b16 %v1613
    %v1703 = vunpack.c.h.b16 %v1613
    %v1704 = vunpack.c.l.b16 %v1614
    %v1705 = vunpack.c.h.b16 %v1614
    %v1706 = vunpack.c.l.b16 %v1615
    %v1707 = vunpack.c.h.b16 %v1615
    %v1708 = vunpack.c.l.b16 %v1616
    %v1709 = vunpack.c.h.b16 %v1616
    %v1710 = vunpack.c.l.b16 %v1617
    %v1711 = vunpack.c.h.b16 %v1617
    %v1712 = vunpack.c.l.b16 %v1618
    %v1713 = vunpack.c.h.b16 %v1618
    %v1714 = vunpack.c.l.b16 %v1619
    %v1715 = vunpack.c.h.b16 %v1619
    %v1716 = vpack.c.b16 %v1656, %v1652
    %v1717 = vpack.c.b16 %v1657, %v1653
    %v1718 = vpack.c.b16 %v1658, %v1654
    %v1719 = vpack.c.b16 %v1659, %v1655
    %v1720 = vpack.c.b16 %v1664, %v1660
    %v1721 = vpack.c.b16 %v1665, %v1661
    %v1722 = vpack.c.b16 %v1666, %v1662
    %v1723 = vpack.c.b16 %v1667, %v1663
    %v1724 = vpack.c.b16 %v1672, %v1668
    %v1725 = vpack.c.b16 %v1673, %v1669
    %v1726 = vpack.c.b16 %v1674, %v1670
    %v1727 = vpack.c.b16 %v1675, %v1671
    %v1728 = vpack.c.b16 %v1680, %v1676
    %v1729 = vpack.c.b16 %v1681, %v1677
    %v1730 = vpack.c.b16 %v1682, %v1678
    %v1731 = vpack.c.b16 %v1683, %v1679
    %v1732 = vpack.c.b16 %v1688, %v1684
    %v1733 = vpack.c.b16 %v1689, %v1685
    %v1734 = vpack.c.b16 %v1690, %v1686
    %v1735 = vpack.c.b16 %v1691, %v1687
    %v1736 = vpack.c.b16 %v1696, %v1692
    %v1737 = vpack.c.b16 %v1697, %v1693
    %v1738 = vpack.c.b16 %v1698, %v1694
    %v1739 = vpack.c.b16 %v1699, %v1695
    %v1740 = vpack.c.b16 %v1704, %v1700
    %v1741 = vpack.c.b16 %v1705, %v1701
    %v1742 = vpack.c.b16 %v1706, %v1702
    %v1743 = vpack.c.b16 %v1707, %v1703
    %v1744 = vpack.c.b16 %v1712, %v1708
    %v1745 = vpack.c.b16 %v1713, %v1709
    %v1746 = vpack.c.b16 %v1714, %v1710
    %v1747 = vpack.c.b16 %v1715, %v1711
    %1780 = vmatprep.subr.bf16.mxu0 %v1745
    %1781 = vmatpush1.bf16.msra.mxu0 %v1744
    %1782 = vmatprep.subr.bf16.mxu0 %v1741
    %1783 = vmatpush1.bf16.msra.mxu0 %v1740
    %1784 = vmatprep.subr.bf16.mxu0 %v1737
    %1785 = vmatpush1.bf16.msra.mxu0 %v1736
    %1786 = vmatprep.subr.bf16.mxu0 %v1733
    %1787 = vmatpush1.bf16.msra.mxu0 %v1732
    %1788 = vmatprep.subr.bf16.mxu0 %v1729
    %1789 = vmatpush1.bf16.msra.mxu0 %v1728
    %1790 = vmatprep.subr.bf16.mxu0 %v1725
    %1791 = vmatpush1.bf16.msra.mxu0 %v1724
    %1792 = vmatprep.subr.bf16.mxu0 %v1721
    %1793 = vmatpush1.bf16.msra.mxu0 %v1720
    %1794 = vmatprep.subr.bf16.mxu0 %v1717
    %1795 = vmatpush1.bf16.msra.mxu0 %v1716
    %1796 = vmatprep.subr.bf16.mxu0 0
    %1797 = vmatpush2.bf16.msra.mxu0 0
    %1798 = vmatprep.subr.bf16.mxu0 0
    %1799 = vmatpush2.bf16.msra.mxu0 0
    %1800 = vmatprep.subr.bf16.mxu0 0
    %1801 = vmatpush2.bf16.msra.mxu0 0
    %1802 = vmatprep.subr.bf16.mxu0 0
    %1803 = vmatpush2.bf16.msra.mxu0 0
    %1804 = vmatprep.subr.bf16.mxu0 0
    %1805 = vmatpush2.bf16.msra.mxu0 0
    %1806 = vmatprep.subr.bf16.mxu0 0
    %1807 = vmatpush2.bf16.msra.mxu0 0
    %1808 = vmatprep.subr.bf16.mxu0 0
    %1809 = vmatpush2.bf16.msra.mxu0 0
    %1810 = vmatprep.subr.bf16.mxu0 0
    %1811 = vmatpush2.bf16.msra.mxu0 0
    %1812 = vmatprep.mubr.bf16.mxu0 0
    %1813 = vmatmul.mubr.bf16.gmra.mxu0 %v1587
    %v1814 = vpop.f32.mrf.mxu0
    %v1815 = vadd.f32 0.0, %v1814
    %v1816 = vpop.f32.mrf.mxu0
    %v1817 = vadd.f32 0.0, %v1816
    %v1818 = vpop.f32.mrf.mxu0
    %v1819 = vpop.f32.mrf.mxu0
    %1820 = vdwg.mxu0
    %1821 = vmatprep.subr.bf16.mxu0 %v1747
    %1822 = vmatpush1.bf16.msra.mxu0 %v1746
    %1823 = vmatprep.subr.bf16.mxu0 %v1743
    %1824 = vmatpush1.bf16.msra.mxu0 %v1742
    %1825 = vmatprep.subr.bf16.mxu0 %v1739
    %1826 = vmatpush1.bf16.msra.mxu0 %v1738
    %1827 = vmatprep.subr.bf16.mxu0 %v1735
    %1828 = vmatpush1.bf16.msra.mxu0 %v1734
    %1829 = vmatprep.subr.bf16.mxu0 %v1731
    %1830 = vmatpush1.bf16.msra.mxu0 %v1730
    %1831 = vmatprep.subr.bf16.mxu0 %v1727
    %1832 = vmatpush1.bf16.msra.mxu0 %v1726
    %1833 = vmatprep.subr.bf16.mxu0 %v1723
    %1834 = vmatpush1.bf16.msra.mxu0 %v1722
    %1835 = vmatprep.subr.bf16.mxu0 %v1719
    %1836 = vmatpush1.bf16.msra.mxu0 %v1718
    %1837 = vmatprep.subr.bf16.mxu0 0
    %1838 = vmatpush2.bf16.msra.mxu0 0
    %1839 = vmatprep.subr.bf16.mxu0 0
    %1840 = vmatpush2.bf16.msra.mxu0 0
    %1841 = vmatprep.subr.bf16.mxu0 0
    %1842 = vmatpush2.bf16.msra.mxu0 0
    %1843 = vmatprep.subr.bf16.mxu0 0
    %1844 = vmatpush2.bf16.msra.mxu0 0
    %1845 = vmatprep.subr.bf16.mxu0 0
    %1846 = vmatpush2.bf16.msra.mxu0 0
    %1847 = vmatprep.subr.bf16.mxu0 0
    %1848 = vmatpush2.bf16.msra.mxu0 0
    %1849 = vmatprep.subr.bf16.mxu0 0
    %1850 = vmatpush2.bf16.msra.mxu0 0
    %1851 = vmatprep.subr.bf16.mxu0 0
    %1852 = vmatpush2.bf16.msra.mxu0 0
    %1853 = vmatprep.mubr.bf16.mxu0 0
    %1854 = vmatmul.mubr.bf16.gmra.mxu0 %v1587
    %v1855 = vpop.f32.mrf.mxu0
    %v1856 = vadd.f32 0.0, %v1855
    %v1857 = vpop.f32.mrf.mxu0
    %v1858 = vadd.f32 0.0, %v1857
    %v1859 = vpop.f32.mrf.mxu0
    %v1860 = vpop.f32.mrf.mxu0
    %1861 = vdwg.mxu0
    %v1862 = vadd.f32 %v1583, %v1815
    %v1863 = vadd.f32 %v1584, %v1817
    %v1864 = vadd.f32 %v1585, %v1856
    %v1865 = vadd.f32 %v1586, %v1858
    %v1866 = vxor.u32 %v1862, 2147483648
    %v1867 = vxor.u32 %v1863, 2147483648
    %v1868 = vxor.u32 %v1864, 2147483648
    %v1869 = vmul.f32 %v1866, 1.442695
    %v1870 = vpow.pop %v1869
    %v1871 = vmul.f32 %v1867, 1.442695
    %v1872 = vpow.pop %v1871
    %v1873 = vmul.f32 %v1868, 1.442695
    %v1874 = vpow.pop %v1873
    %v1875 = vadd.f32 %v1870, 1.0
    %v1876 = vadd.f32 %v1872, 1.0
    %v1877 = vadd.f32 %v1874, 1.0
    %v1878 = vrcp.pop %v1875
    %v1879 = vmul.f32 1.0, %v1878
    %v1880 = vrcp.pop %v1876
    %v1881 = vmul.f32 1.0, %v1880
    %v1882 = vrcp.pop %v1877
    %v1883 = vmul.f32 1.0, %v1882
    %v1884 = vtanh.pop %v1865
    %v1885 = vmul.f32 %v1881, %v1577
    %v1886 = vmul.f32 %v1879, %v1884
    %v1887 = vadd.f32 %v1885, %v1886
    %v1888 = vtanh.pop %v1887
    %v1889 = vmul.f32 %v1883, %v1888
    %s1890 = scalar_lea.vmem [#allocation3], 32
    %1891 = vst [vmem:[%s1890] sm:$0xff] %v1889
    %s1892 = scalar_lea.vmem [#allocation2], 160
    %v1893 = vld [vmem:[%s1892] sm:$0xff]
    %v1894 = vld [vmem:[%s1892 + $0x8] sm:$0xff]
    %v1895 = vld [vmem:[%s1892 + $0x10] sm:$0xff]
    %v1896 = vld [vmem:[%s1892 + $0x18] sm:$0xff]
    %v1897 = vpack.c.bf16 %v1889, %v1889
    %v1898 = vld [vmem:[#allocation4] sm:$0xff]
    %v1899 = vld [vmem:[#allocation4 + $0x8] sm:$0xff]
    %v1900 = vld [vmem:[#allocation4 + $0x10] sm:$0xff]
    %v1901 = vld [vmem:[#allocation4 + $0x18] sm:$0xff]
    %v1902 = vld [vmem:[#allocation4 + $0x20] sm:$0xff]
    %v1903 = vld [vmem:[#allocation4 + $0x28] sm:$0xff]
    %v1904 = vld [vmem:[#allocation4 + $0x30] sm:$0xff]
    %v1905 = vld [vmem:[#allocation4 + $0x38] sm:$0xff]
    %v1906 = vld [vmem:[#allocation4 + $0x40] sm:$0xff]
    %v1907 = vld [vmem:[#allocation4 + $0x48] sm:$0xff]
    %v1908 = vld [vmem:[#allocation4 + $0x50] sm:$0xff]
    %v1909 = vld [vmem:[#allocation4 + $0x58] sm:$0xff]
    %v1910 = vld [vmem:[#allocation4 + $0x60] sm:$0xff]
    %v1911 = vld [vmem:[#allocation4 + $0x68] sm:$0xff]
    %v1912 = vld [vmem:[#allocation4 + $0x70] sm:$0xff]
    %v1913 = vld [vmem:[#allocation4 + $0x78] sm:$0xff]
    %v1914 = vld [vmem:[#allocation4 + $0x80] sm:$0xff]
    %v1915 = vld [vmem:[#allocation4 + $0x88] sm:$0xff]
    %v1916 = vld [vmem:[#allocation4 + $0x90] sm:$0xff]
    %v1917 = vld [vmem:[#allocation4 + $0x98] sm:$0xff]
    %v1918 = vld [vmem:[#allocation4 + $0xa0] sm:$0xff]
    %v1919 = vld [vmem:[#allocation4 + $0xa8] sm:$0xff]
    %v1920 = vld [vmem:[#allocation4 + $0xb0] sm:$0xff]
    %v1921 = vld [vmem:[#allocation4 + $0xb8] sm:$0xff]
    %v1922 = vld [vmem:[#allocation4 + $0xc0] sm:$0xff]
    %v1923 = vld [vmem:[#allocation4 + $0xc8] sm:$0xff]
    %v1924 = vld [vmem:[#allocation4 + $0xd0] sm:$0xff]
    %v1925 = vld [vmem:[#allocation4 + $0xd8] sm:$0xff]
    %v1926 = vld [vmem:[#allocation4 + $0xe0] sm:$0xff]
    %v1927 = vld [vmem:[#allocation4 + $0xe8] sm:$0xff]
    %v1928 = vld [vmem:[#allocation4 + $0xf0] sm:$0xff]
    %v1929 = vld [vmem:[#allocation4 + $0xf8] sm:$0xff]
    %v1962 = vunpack.c.l.b16 %v1898
    %v1963 = vunpack.c.h.b16 %v1898
    %v1964 = vunpack.c.l.b16 %v1899
    %v1965 = vunpack.c.h.b16 %v1899
    %v1966 = vunpack.c.l.b16 %v1900
    %v1967 = vunpack.c.h.b16 %v1900
    %v1968 = vunpack.c.l.b16 %v1901
    %v1969 = vunpack.c.h.b16 %v1901
    %v1970 = vunpack.c.l.b16 %v1902
    %v1971 = vunpack.c.h.b16 %v1902
    %v1972 = vunpack.c.l.b16 %v1903
    %v1973 = vunpack.c.h.b16 %v1903
    %v1974 = vunpack.c.l.b16 %v1904
    %v1975 = vunpack.c.h.b16 %v1904
    %v1976 = vunpack.c.l.b16 %v1905
    %v1977 = vunpack.c.h.b16 %v1905
    %v1978 = vunpack.c.l.b16 %v1906
    %v1979 = vunpack.c.h.b16 %v1906
    %v1980 = vunpack.c.l.b16 %v1907
    %v1981 = vunpack.c.h.b16 %v1907
    %v1982 = vunpack.c.l.b16 %v1908
    %v1983 = vunpack.c.h.b16 %v1908
    %v1984 = vunpack.c.l.b16 %v1909
    %v1985 = vunpack.c.h.b16 %v1909
    %v1986 = vunpack.c.l.b16 %v1910
    %v1987 = vunpack.c.h.b16 %v1910
    %v1988 = vunpack.c.l.b16 %v1911
    %v1989 = vunpack.c.h.b16 %v1911
    %v1990 = vunpack.c.l.b16 %v1912
    %v1991 = vunpack.c.h.b16 %v1912
    %v1992 = vunpack.c.l.b16 %v1913
    %v1993 = vunpack.c.h.b16 %v1913
    %v1994 = vunpack.c.l.b16 %v1914
    %v1995 = vunpack.c.h.b16 %v1914
    %v1996 = vunpack.c.l.b16 %v1915
    %v1997 = vunpack.c.h.b16 %v1915
    %v1998 = vunpack.c.l.b16 %v1916
    %v1999 = vunpack.c.h.b16 %v1916
    %v2000 = vunpack.c.l.b16 %v1917
    %v2001 = vunpack.c.h.b16 %v1917
    %v2002 = vunpack.c.l.b16 %v1918
    %v2003 = vunpack.c.h.b16 %v1918
    %v2004 = vunpack.c.l.b16 %v1919
    %v2005 = vunpack.c.h.b16 %v1919
    %v2006 = vunpack.c.l.b16 %v1920
    %v2007 = vunpack.c.h.b16 %v1920
    %v2008 = vunpack.c.l.b16 %v1921
    %v2009 = vunpack.c.h.b16 %v1921
    %v2010 = vunpack.c.l.b16 %v1922
    %v2011 = vunpack.c.h.b16 %v1922
    %v2012 = vunpack.c.l.b16 %v1923
    %v2013 = vunpack.c.h.b16 %v1923
    %v2014 = vunpack.c.l.b16 %v1924
    %v2015 = vunpack.c.h.b16 %v1924
    %v2016 = vunpack.c.l.b16 %v1925
    %v2017 = vunpack.c.h.b16 %v1925
    %v2018 = vunpack.c.l.b16 %v1926
    %v2019 = vunpack.c.h.b16 %v1926
    %v2020 = vunpack.c.l.b16 %v1927
    %v2021 = vunpack.c.h.b16 %v1927
    %v2022 = vunpack.c.l.b16 %v1928
    %v2023 = vunpack.c.h.b16 %v1928
    %v2024 = vunpack.c.l.b16 %v1929
    %v2025 = vunpack.c.h.b16 %v1929
    %v2026 = vpack.c.b16 %v1966, %v1962
    %v2027 = vpack.c.b16 %v1967, %v1963
    %v2028 = vpack.c.b16 %v1968, %v1964
    %v2029 = vpack.c.b16 %v1969, %v1965
    %v2030 = vpack.c.b16 %v1974, %v1970
    %v2031 = vpack.c.b16 %v1975, %v1971
    %v2032 = vpack.c.b16 %v1976, %v1972
    %v2033 = vpack.c.b16 %v1977, %v1973
    %v2034 = vpack.c.b16 %v1982, %v1978
    %v2035 = vpack.c.b16 %v1983, %v1979
    %v2036 = vpack.c.b16 %v1984, %v1980
    %v2037 = vpack.c.b16 %v1985, %v1981
    %v2038 = vpack.c.b16 %v1990, %v1986
    %v2039 = vpack.c.b16 %v1991, %v1987
    %v2040 = vpack.c.b16 %v1992, %v1988
    %v2041 = vpack.c.b16 %v1993, %v1989
    %v2042 = vpack.c.b16 %v1998, %v1994
    %v2043 = vpack.c.b16 %v1999, %v1995
    %v2044 = vpack.c.b16 %v2000, %v1996
    %v2045 = vpack.c.b16 %v2001, %v1997
    %v2046 = vpack.c.b16 %v2006, %v2002
    %v2047 = vpack.c.b16 %v2007, %v2003
    %v2048 = vpack.c.b16 %v2008, %v2004
    %v2049 = vpack.c.b16 %v2009, %v2005
    %v2050 = vpack.c.b16 %v2014, %v2010
    %v2051 = vpack.c.b16 %v2015, %v2011
    %v2052 = vpack.c.b16 %v2016, %v2012
    %v2053 = vpack.c.b16 %v2017, %v2013
    %v2054 = vpack.c.b16 %v2022, %v2018
    %v2055 = vpack.c.b16 %v2023, %v2019
    %v2056 = vpack.c.b16 %v2024, %v2020
    %v2057 = vpack.c.b16 %v2025, %v2021
    %2090 = vmatprep.subr.bf16.mxu0 %v2055
    %2091 = vmatpush1.bf16.msra.mxu0 %v2054
    %2092 = vmatprep.subr.bf16.mxu0 %v2051
    %2093 = vmatpush1.bf16.msra.mxu0 %v2050
    %2094 = vmatprep.subr.bf16.mxu0 %v2047
    %2095 = vmatpush1.bf16.msra.mxu0 %v2046
    %2096 = vmatprep.subr.bf16.mxu0 %v2043
    %2097 = vmatpush1.bf16.msra.mxu0 %v2042
    %2098 = vmatprep.subr.bf16.mxu0 %v2039
    %2099 = vmatpush1.bf16.msra.mxu0 %v2038
    %2100 = vmatprep.subr.bf16.mxu0 %v2035
    %2101 = vmatpush1.bf16.msra.mxu0 %v2034
    %2102 = vmatprep.subr.bf16.mxu0 %v2031
    %2103 = vmatpush1.bf16.msra.mxu0 %v2030
    %2104 = vmatprep.subr.bf16.mxu0 %v2027
    %2105 = vmatpush1.bf16.msra.mxu0 %v2026
    %2106 = vmatprep.subr.bf16.mxu0 0
    %2107 = vmatpush2.bf16.msra.mxu0 0
    %2108 = vmatprep.subr.bf16.mxu0 0
    %2109 = vmatpush2.bf16.msra.mxu0 0
    %2110 = vmatprep.subr.bf16.mxu0 0
    %2111 = vmatpush2.bf16.msra.mxu0 0
    %2112 = vmatprep.subr.bf16.mxu0 0
    %2113 = vmatpush2.bf16.msra.mxu0 0
    %2114 = vmatprep.subr.bf16.mxu0 0
    %2115 = vmatpush2.bf16.msra.mxu0 0
    %2116 = vmatprep.subr.bf16.mxu0 0
    %2117 = vmatpush2.bf16.msra.mxu0 0
    %2118 = vmatprep.subr.bf16.mxu0 0
    %2119 = vmatpush2.bf16.msra.mxu0 0
    %2120 = vmatprep.subr.bf16.mxu0 0
    %2121 = vmatpush2.bf16.msra.mxu0 0
    %2122 = vmatprep.mubr.bf16.mxu0 0
    %2123 = vmatmul.mubr.bf16.gmra.mxu0 %v1897
    %v2124 = vpop.f32.mrf.mxu0
    %v2125 = vadd.f32 0.0, %v2124
    %v2126 = vpop.f32.mrf.mxu0
    %v2127 = vadd.f32 0.0, %v2126
    %v2128 = vpop.f32.mrf.mxu0
    %v2129 = vpop.f32.mrf.mxu0
    %2130 = vdwg.mxu0
    %2131 = vmatprep.subr.bf16.mxu0 %v2057
    %2132 = vmatpush1.bf16.msra.mxu0 %v2056
    %2133 = vmatprep.subr.bf16.mxu0 %v2053
    %2134 = vmatpush1.bf16.msra.mxu0 %v2052
    %2135 = vmatprep.subr.bf16.mxu0 %v2049
    %2136 = vmatpush1.bf16.msra.mxu0 %v2048
    %2137 = vmatprep.subr.bf16.mxu0 %v2045
    %2138 = vmatpush1.bf16.msra.mxu0 %v2044
    %2139 = vmatprep.subr.bf16.mxu0 %v2041
    %2140 = vmatpush1.bf16.msra.mxu0 %v2040
    %2141 = vmatprep.subr.bf16.mxu0 %v2037
    %2142 = vmatpush1.bf16.msra.mxu0 %v2036
    %2143 = vmatprep.subr.bf16.mxu0 %v2033
    %2144 = vmatpush1.bf16.msra.mxu0 %v2032
    %2145 = vmatprep.subr.bf16.mxu0 %v2029
    %2146 = vmatpush1.bf16.msra.mxu0 %v2028
    %2147 = vmatprep.subr.bf16.mxu0 0
    %2148 = vmatpush2.bf16.msra.mxu0 0
    %2149 = vmatprep.subr.bf16.mxu0 0
    %2150 = vmatpush2.bf16.msra.mxu0 0
    %2151 = vmatprep.subr.bf16.mxu0 0
    %2152 = vmatpush2.bf16.msra.mxu0 0
    %2153 = vmatprep.subr.bf16.mxu0 0
    %2154 = vmatpush2.bf16.msra.mxu0 0
    %2155 = vmatprep.subr.bf16.mxu0 0
    %2156 = vmatpush2.bf16.msra.mxu0 0
    %2157 = vmatprep.subr.bf16.mxu0 0
    %2158 = vmatpush2.bf16.msra.mxu0 0
    %2159 = vmatprep.subr.bf16.mxu0 0
    %2160 = vmatpush2.bf16.msra.mxu0 0
    %2161 = vmatprep.subr.bf16.mxu0 0
    %2162 = vmatpush2.bf16.msra.mxu0 0
    %2163 = vmatprep.mubr.bf16.mxu0 0
    %2164 = vmatmul.mubr.bf16.gmra.mxu0 %v1897
    %v2165 = vpop.f32.mrf.mxu0
    %v2166 = vadd.f32 0.0, %v2165
    %v2167 = vpop.f32.mrf.mxu0
    %v2168 = vadd.f32 0.0, %v2167
    %v2169 = vpop.f32.mrf.mxu0
    %v2170 = vpop.f32.mrf.mxu0
    %2171 = vdwg.mxu0
    %v2172 = vadd.f32 %v1893, %v2125
    %v2173 = vadd.f32 %v1894, %v2127
    %v2174 = vadd.f32 %v1895, %v2166
    %v2175 = vadd.f32 %v1896, %v2168
    %v2176 = vxor.u32 %v2172, 2147483648
    %v2177 = vxor.u32 %v2173, 2147483648
    %v2178 = vxor.u32 %v2174, 2147483648
    %v2179 = vmul.f32 %v2176, 1.442695
    %v2180 = vpow.pop %v2179
    %v2181 = vmul.f32 %v2177, 1.442695
    %v2182 = vpow.pop %v2181
    %v2183 = vmul.f32 %v2178, 1.442695
    %v2184 = vpow.pop %v2183
    %v2185 = vadd.f32 %v2180, 1.0
    %v2186 = vadd.f32 %v2182, 1.0
    %v2187 = vadd.f32 %v2184, 1.0
    %v2188 = vrcp.pop %v2185
    %v2189 = vmul.f32 1.0, %v2188
    %v2190 = vrcp.pop %v2186
    %v2191 = vmul.f32 1.0, %v2190
    %v2192 = vrcp.pop %v2187
    %v2193 = vmul.f32 1.0, %v2192
    %v2194 = vtanh.pop %v2175
    %v2195 = vmul.f32 %v2191, %v1887
    %v2196 = vmul.f32 %v2189, %v2194
    %v2197 = vadd.f32 %v2195, %v2196
    %v2198 = vtanh.pop %v2197
    %v2199 = vmul.f32 %v2193, %v2198
    %s2200 = scalar_lea.vmem [#allocation3], 40
    %2201 = vst [vmem:[%s2200] sm:$0xff] %v2199
    %s2202 = scalar_lea.vmem [#allocation2], 192
    %v2203 = vld [vmem:[%s2202] sm:$0xff]
    %v2204 = vld [vmem:[%s2202 + $0x8] sm:$0xff]
    %v2205 = vld [vmem:[%s2202 + $0x10] sm:$0xff]
    %v2206 = vld [vmem:[%s2202 + $0x18] sm:$0xff]
    %v2207 = vpack.c.bf16 %v2199, %v2199
    %v2208 = vld [vmem:[#allocation4] sm:$0xff]
    %v2209 = vld [vmem:[#allocation4 + $0x8] sm:$0xff]
    %v2210 = vld [vmem:[#allocation4 + $0x10] sm:$0xff]
    %v2211 = vld [vmem:[#allocation4 + $0x18] sm:$0xff]
    %v2212 = vld [vmem:[#allocation4 + $0x20] sm:$0xff]
    %v2213 = vld [vmem:[#allocation4 + $0x28] sm:$0xff]
    %v2214 = vld [vmem:[#allocation4 + $0x30] sm:$0xff]
    %v2215 = vld [vmem:[#allocation4 + $0x38] sm:$0xff]
    %v2216 = vld [vmem:[#allocation4 + $0x40] sm:$0xff]
    %v2217 = vld [vmem:[#allocation4 + $0x48] sm:$0xff]
    %v2218 = vld [vmem:[#allocation4 + $0x50] sm:$0xff]
    %v2219 = vld [vmem:[#allocation4 + $0x58] sm:$0xff]
    %v2220 = vld [vmem:[#allocation4 + $0x60] sm:$0xff]
    %v2221 = vld [vmem:[#allocation4 + $0x68] sm:$0xff]
    %v2222 = vld [vmem:[#allocation4 + $0x70] sm:$0xff]
    %v2223 = vld [vmem:[#allocation4 + $0x78] sm:$0xff]
    %v2224 = vld [vmem:[#allocation4 + $0x80] sm:$0xff]
    %v2225 = vld [vmem:[#allocation4 + $0x88] sm:$0xff]
    %v2226 = vld [vmem:[#allocation4 + $0x90] sm:$0xff]
    %v2227 = vld [vmem:[#allocation4 + $0x98] sm:$0xff]
    %v2228 = vld [vmem:[#allocation4 + $0xa0] sm:$0xff]
    %v2229 = vld [vmem:[#allocation4 + $0xa8] sm:$0xff]
    %v2230 = vld [vmem:[#allocation4 + $0xb0] sm:$0xff]
    %v2231 = vld [vmem:[#allocation4 + $0xb8] sm:$0xff]
    %v2232 = vld [vmem:[#allocation4 + $0xc0] sm:$0xff]
    %v2233 = vld [vmem:[#allocation4 + $0xc8] sm:$0xff]
    %v2234 = vld [vmem:[#allocation4 + $0xd0] sm:$0xff]
    %v2235 = vld [vmem:[#allocation4 + $0xd8] sm:$0xff]
    %v2236 = vld [vmem:[#allocation4 + $0xe0] sm:$0xff]
    %v2237 = vld [vmem:[#allocation4 + $0xe8] sm:$0xff]
    %v2238 = vld [vmem:[#allocation4 + $0xf0] sm:$0xff]
    %v2239 = vld [vmem:[#allocation4 + $0xf8] sm:$0xff]
    %v2272 = vunpack.c.l.b16 %v2208
    %v2273 = vunpack.c.h.b16 %v2208
    %v2274 = vunpack.c.l.b16 %v2209
    %v2275 = vunpack.c.h.b16 %v2209
    %v2276 = vunpack.c.l.b16 %v2210
    %v2277 = vunpack.c.h.b16 %v2210
    %v2278 = vunpack.c.l.b16 %v2211
    %v2279 = vunpack.c.h.b16 %v2211
    %v2280 = vunpack.c.l.b16 %v2212
    %v2281 = vunpack.c.h.b16 %v2212
    %v2282 = vunpack.c.l.b16 %v2213
    %v2283 = vunpack.c.h.b16 %v2213
    %v2284 = vunpack.c.l.b16 %v2214
    %v2285 = vunpack.c.h.b16 %v2214
    %v2286 = vunpack.c.l.b16 %v2215
    %v2287 = vunpack.c.h.b16 %v2215
    %v2288 = vunpack.c.l.b16 %v2216
    %v2289 = vunpack.c.h.b16 %v2216
    %v2290 = vunpack.c.l.b16 %v2217
    %v2291 = vunpack.c.h.b16 %v2217
    %v2292 = vunpack.c.l.b16 %v2218
    %v2293 = vunpack.c.h.b16 %v2218
    %v2294 = vunpack.c.l.b16 %v2219
    %v2295 = vunpack.c.h.b16 %v2219
    %v2296 = vunpack.c.l.b16 %v2220
    %v2297 = vunpack.c.h.b16 %v2220
    %v2298 = vunpack.c.l.b16 %v2221
    %v2299 = vunpack.c.h.b16 %v2221
    %v2300 = vunpack.c.l.b16 %v2222
    %v2301 = vunpack.c.h.b16 %v2222
    %v2302 = vunpack.c.l.b16 %v2223
    %v2303 = vunpack.c.h.b16 %v2223
    %v2304 = vunpack.c.l.b16 %v2224
    %v2305 = vunpack.c.h.b16 %v2224
    %v2306 = vunpack.c.l.b16 %v2225
    %v2307 = vunpack.c.h.b16 %v2225
    %v2308 = vunpack.c.l.b16 %v2226
    %v2309 = vunpack.c.h.b16 %v2226
    %v2310 = vunpack.c.l.b16 %v2227
    %v2311 = vunpack.c.h.b16 %v2227
    %v2312 = vunpack.c.l.b16 %v2228
    %v2313 = vunpack.c.h.b16 %v2228
    %v2314 = vunpack.c.l.b16 %v2229
    %v2315 = vunpack.c.h.b16 %v2229
    %v2316 = vunpack.c.l.b16 %v2230
    %v2317 = vunpack.c.h.b16 %v2230
    %v2318 = vunpack.c.l.b16 %v2231
    %v2319 = vunpack.c.h.b16 %v2231
    %v2320 = vunpack.c.l.b16 %v2232
    %v2321 = vunpack.c.h.b16 %v2232
    %v2322 = vunpack.c.l.b16 %v2233
    %v2323 = vunpack.c.h.b16 %v2233
    %v2324 = vunpack.c.l.b16 %v2234
    %v2325 = vunpack.c.h.b16 %v2234
    %v2326 = vunpack.c.l.b16 %v2235
    %v2327 = vunpack.c.h.b16 %v2235
    %v2328 = vunpack.c.l.b16 %v2236
    %v2329 = vunpack.c.h.b16 %v2236
    %v2330 = vunpack.c.l.b16 %v2237
    %v2331 = vunpack.c.h.b16 %v2237
    %v2332 = vunpack.c.l.b16 %v2238
    %v2333 = vunpack.c.h.b16 %v2238
    %v2334 = vunpack.c.l.b16 %v2239
    %v2335 = vunpack.c.h.b16 %v2239
    %v2336 = vpack.c.b16 %v2276, %v2272
    %v2337 = vpack.c.b16 %v2277, %v2273
    %v2338 = vpack.c.b16 %v2278, %v2274
    %v2339 = vpack.c.b16 %v2279, %v2275
    %v2340 = vpack.c.b16 %v2284, %v2280
    %v2341 = vpack.c.b16 %v2285, %v2281
    %v2342 = vpack.c.b16 %v2286, %v2282
    %v2343 = vpack.c.b16 %v2287, %v2283
    %v2344 = vpack.c.b16 %v2292, %v2288
    %v2345 = vpack.c.b16 %v2293, %v2289
    %v2346 = vpack.c.b16 %v2294, %v2290
    %v2347 = vpack.c.b16 %v2295, %v2291
    %v2348 = vpack.c.b16 %v2300, %v2296
    %v2349 = vpack.c.b16 %v2301, %v2297
    %v2350 = vpack.c.b16 %v2302, %v2298
    %v2351 = vpack.c.b16 %v2303, %v2299
    %v2352 = vpack.c.b16 %v2308, %v2304
    %v2353 = vpack.c.b16 %v2309, %v2305
    %v2354 = vpack.c.b16 %v2310, %v2306
    %v2355 = vpack.c.b16 %v2311, %v2307
    %v2356 = vpack.c.b16 %v2316, %v2312
    %v2357 = vpack.c.b16 %v2317, %v2313
    %v2358 = vpack.c.b16 %v2318, %v2314
    %v2359 = vpack.c.b16 %v2319, %v2315
    %v2360 = vpack.c.b16 %v2324, %v2320
    %v2361 = vpack.c.b16 %v2325, %v2321
    %v2362 = vpack.c.b16 %v2326, %v2322
    %v2363 = vpack.c.b16 %v2327, %v2323
    %v2364 = vpack.c.b16 %v2332, %v2328
    %v2365 = vpack.c.b16 %v2333, %v2329
    %v2366 = vpack.c.b16 %v2334, %v2330
    %v2367 = vpack.c.b16 %v2335, %v2331
    %2400 = vmatprep.subr.bf16.mxu0 %v2365
    %2401 = vmatpush1.bf16.msra.mxu0 %v2364
    %2402 = vmatprep.subr.bf16.mxu0 %v2361
    %2403 = vmatpush1.bf16.msra.mxu0 %v2360
    %2404 = vmatprep.subr.bf16.mxu0 %v2357
    %2405 = vmatpush1.bf16.msra.mxu0 %v2356
    %2406 = vmatprep.subr.bf16.mxu0 %v2353
    %2407 = vmatpush1.bf16.msra.mxu0 %v2352
    %2408 = vmatprep.subr.bf16.mxu0 %v2349
    %2409 = vmatpush1.bf16.msra.mxu0 %v2348
    %2410 = vmatprep.subr.bf16.mxu0 %v2345
    %2411 = vmatpush1.bf16.msra.mxu0 %v2344
    %2412 = vmatprep.subr.bf16.mxu0 %v2341
    %2413 = vmatpush1.bf16.msra.mxu0 %v2340
    %2414 = vmatprep.subr.bf16.mxu0 %v2337
    %2415 = vmatpush1.bf16.msra.mxu0 %v2336
    %2416 = vmatprep.subr.bf16.mxu0 0
    %2417 = vmatpush2.bf16.msra.mxu0 0
    %2418 = vmatprep.subr.bf16.mxu0 0
    %2419 = vmatpush2.bf16.msra.mxu0 0
    %2420 = vmatprep.subr.bf16.mxu0 0
    %2421 = vmatpush2.bf16.msra.mxu0 0
    %2422 = vmatprep.subr.bf16.mxu0 0
    %2423 = vmatpush2.bf16.msra.mxu0 0
    %2424 = vmatprep.subr.bf16.mxu0 0
    %2425 = vmatpush2.bf16.msra.mxu0 0
    %2426 = vmatprep.subr.bf16.mxu0 0
    %2427 = vmatpush2.bf16.msra.mxu0 0
    %2428 = vmatprep.subr.bf16.mxu0 0
    %2429 = vmatpush2.bf16.msra.mxu0 0
    %2430 = vmatprep.subr.bf16.mxu0 0
    %2431 = vmatpush2.bf16.msra.mxu0 0
    %2432 = vmatprep.mubr.bf16.mxu0 0
    %2433 = vmatmul.mubr.bf16.gmra.mxu0 %v2207
    %v2434 = vpop.f32.mrf.mxu0
    %v2435 = vadd.f32 0.0, %v2434
    %v2436 = vpop.f32.mrf.mxu0
    %v2437 = vadd.f32 0.0, %v2436
    %v2438 = vpop.f32.mrf.mxu0
    %v2439 = vpop.f32.mrf.mxu0
    %2440 = vdwg.mxu0
    %2441 = vmatprep.subr.bf16.mxu0 %v2367
    %2442 = vmatpush1.bf16.msra.mxu0 %v2366
    %2443 = vmatprep.subr.bf16.mxu0 %v2363
    %2444 = vmatpush1.bf16.msra.mxu0 %v2362
    %2445 = vmatprep.subr.bf16.mxu0 %v2359
    %2446 = vmatpush1.bf16.msra.mxu0 %v2358
    %2447 = vmatprep.subr.bf16.mxu0 %v2355
    %2448 = vmatpush1.bf16.msra.mxu0 %v2354
    %2449 = vmatprep.subr.bf16.mxu0 %v2351
    %2450 = vmatpush1.bf16.msra.mxu0 %v2350
    %2451 = vmatprep.subr.bf16.mxu0 %v2347
    %2452 = vmatpush1.bf16.msra.mxu0 %v2346
    %2453 = vmatprep.subr.bf16.mxu0 %v2343
    %2454 = vmatpush1.bf16.msra.mxu0 %v2342
    %2455 = vmatprep.subr.bf16.mxu0 %v2339
    %2456 = vmatpush1.bf16.msra.mxu0 %v2338
    %2457 = vmatprep.subr.bf16.mxu0 0
    %2458 = vmatpush2.bf16.msra.mxu0 0
    %2459 = vmatprep.subr.bf16.mxu0 0
    %2460 = vmatpush2.bf16.msra.mxu0 0
    %2461 = vmatprep.subr.bf16.mxu0 0
    %2462 = vmatpush2.bf16.msra.mxu0 0
    %2463 = vmatprep.subr.bf16.mxu0 0
    %2464 = vmatpush2.bf16.msra.mxu0 0
    %2465 = vmatprep.subr.bf16.mxu0 0
    %2466 = vmatpush2.bf16.msra.mxu0 0
    %2467 = vmatprep.subr.bf16.mxu0 0
    %2468 = vmatpush2.bf16.msra.mxu0 0
    %2469 = vmatprep.subr.bf16.mxu0 0
    %2470 = vmatpush2.bf16.msra.mxu0 0
    %2471 = vmatprep.subr.bf16.mxu0 0
    %2472 = vmatpush2.bf16.msra.mxu0 0
    %2473 = vmatprep.mubr.bf16.mxu0 0
    %2474 = vmatmul.mubr.bf16.gmra.mxu0 %v2207
    %v2475 = vpop.f32.mrf.mxu0
    %v2476 = vadd.f32 0.0, %v2475
    %v2477 = vpop.f32.mrf.mxu0
    %v2478 = vadd.f32 0.0, %v2477
    %v2479 = vpop.f32.mrf.mxu0
    %v2480 = vpop.f32.mrf.mxu0
    %2481 = vdwg.mxu0
    %v2482 = vadd.f32 %v2203, %v2435
    %v2483 = vadd.f32 %v2204, %v2437
    %v2484 = vadd.f32 %v2205, %v2476
    %v2485 = vadd.f32 %v2206, %v2478
    %v2486 = vxor.u32 %v2482, 2147483648
    %v2487 = vxor.u32 %v2483, 2147483648
    %v2488 = vxor.u32 %v2484, 2147483648
    %v2489 = vmul.f32 %v2486, 1.442695
    %v2490 = vpow.pop %v2489
    %v2491 = vmul.f32 %v2487, 1.442695
    %v2492 = vpow.pop %v2491
    %v2493 = vmul.f32 %v2488, 1.442695
    %v2494 = vpow.pop %v2493
    %v2495 = vadd.f32 %v2490, 1.0
    %v2496 = vadd.f32 %v2492, 1.0
    %v2497 = vadd.f32 %v2494, 1.0
    %v2498 = vrcp.pop %v2495
    %v2499 = vmul.f32 1.0, %v2498
    %v2500 = vrcp.pop %v2496
    %v2501 = vmul.f32 1.0, %v2500
    %v2502 = vrcp.pop %v2497
    %v2503 = vmul.f32 1.0, %v2502
    %v2504 = vtanh.pop %v2485
    %v2505 = vmul.f32 %v2501, %v2197
    %v2506 = vmul.f32 %v2499, %v2504
    %v2507 = vadd.f32 %v2505, %v2506
    %v2508 = vtanh.pop %v2507
    %v2509 = vmul.f32 %v2503, %v2508
    %s2510 = scalar_lea.vmem [#allocation3], 48
    %2511 = vst [vmem:[%s2510] sm:$0xff] %v2509
    %s2512 = scalar_lea.vmem [#allocation2], 224
    %v2513 = vld [vmem:[%s2512] sm:$0xff]
    %v2514 = vld [vmem:[%s2512 + $0x8] sm:$0xff]
    %v2515 = vld [vmem:[%s2512 + $0x10] sm:$0xff]
    %v2516 = vld [vmem:[%s2512 + $0x18] sm:$0xff]
    %v2517 = vpack.c.bf16 %v2509, %v2509
    %v2518 = vld [vmem:[#allocation4] sm:$0xff]
    %v2519 = vld [vmem:[#allocation4 + $0x8] sm:$0xff]
    %v2520 = vld [vmem:[#allocation4 + $0x10] sm:$0xff]
    %v2521 = vld [vmem:[#allocation4 + $0x18] sm:$0xff]
    %v2522 = vld [vmem:[#allocation4 + $0x20] sm:$0xff]
    %v2523 = vld [vmem:[#allocation4 + $0x28] sm:$0xff]
    %v2524 = vld [vmem:[#allocation4 + $0x30] sm:$0xff]
    %v2525 = vld [vmem:[#allocation4 + $0x38] sm:$0xff]
    %v2526 = vld [vmem:[#allocation4 + $0x40] sm:$0xff]
    %v2527 = vld [vmem:[#allocation4 + $0x48] sm:$0xff]
    %v2528 = vld [vmem:[#allocation4 + $0x50] sm:$0xff]
    %v2529 = vld [vmem:[#allocation4 + $0x58] sm:$0xff]
    %v2530 = vld [vmem:[#allocation4 + $0x60] sm:$0xff]
    %v2531 = vld [vmem:[#allocation4 + $0x68] sm:$0xff]
    %v2532 = vld [vmem:[#allocation4 + $0x70] sm:$0xff]
    %v2533 = vld [vmem:[#allocation4 + $0x78] sm:$0xff]
    %v2534 = vld [vmem:[#allocation4 + $0x80] sm:$0xff]
    %v2535 = vld [vmem:[#allocation4 + $0x88] sm:$0xff]
    %v2536 = vld [vmem:[#allocation4 + $0x90] sm:$0xff]
    %v2537 = vld [vmem:[#allocation4 + $0x98] sm:$0xff]
    %v2538 = vld [vmem:[#allocation4 + $0xa0] sm:$0xff]
    %v2539 = vld [vmem:[#allocation4 + $0xa8] sm:$0xff]
    %v2540 = vld [vmem:[#allocation4 + $0xb0] sm:$0xff]
    %v2541 = vld [vmem:[#allocation4 + $0xb8] sm:$0xff]
    %v2542 = vld [vmem:[#allocation4 + $0xc0] sm:$0xff]
    %v2543 = vld [vmem:[#allocation4 + $0xc8] sm:$0xff]
    %v2544 = vld [vmem:[#allocation4 + $0xd0] sm:$0xff]
    %v2545 = vld [vmem:[#allocation4 + $0xd8] sm:$0xff]
    %v2546 = vld [vmem:[#allocation4 + $0xe0] sm:$0xff]
    %v2547 = vld [vmem:[#allocation4 + $0xe8] sm:$0xff]
    %v2548 = vld [vmem:[#allocation4 + $0xf0] sm:$0xff]
    %v2549 = vld [vmem:[#allocation4 + $0xf8] sm:$0xff]
    %v2582 = vunpack.c.l.b16 %v2518
    %v2583 = vunpack.c.h.b16 %v2518
    %v2584 = vunpack.c.l.b16 %v2519
    %v2585 = vunpack.c.h.b16 %v2519
    %v2586 = vunpack.c.l.b16 %v2520
    %v2587 = vunpack.c.h.b16 %v2520
    %v2588 = vunpack.c.l.b16 %v2521
    %v2589 = vunpack.c.h.b16 %v2521
    %v2590 = vunpack.c.l.b16 %v2522
    %v2591 = vunpack.c.h.b16 %v2522
    %v2592 = vunpack.c.l.b16 %v2523
    %v2593 = vunpack.c.h.b16 %v2523
    %v2594 = vunpack.c.l.b16 %v2524
    %v2595 = vunpack.c.h.b16 %v2524
    %v2596 = vunpack.c.l.b16 %v2525
    %v2597 = vunpack.c.h.b16 %v2525
    %v2598 = vunpack.c.l.b16 %v2526
    %v2599 = vunpack.c.h.b16 %v2526
    %v2600 = vunpack.c.l.b16 %v2527
    %v2601 = vunpack.c.h.b16 %v2527
    %v2602 = vunpack.c.l.b16 %v2528
    %v2603 = vunpack.c.h.b16 %v2528
    %v2604 = vunpack.c.l.b16 %v2529
    %v2605 = vunpack.c.h.b16 %v2529
    %v2606 = vunpack.c.l.b16 %v2530
    %v2607 = vunpack.c.h.b16 %v2530
    %v2608 = vunpack.c.l.b16 %v2531
    %v2609 = vunpack.c.h.b16 %v2531
    %v2610 = vunpack.c.l.b16 %v2532
    %v2611 = vunpack.c.h.b16 %v2532
    %v2612 = vunpack.c.l.b16 %v2533
    %v2613 = vunpack.c.h.b16 %v2533
    %v2614 = vunpack.c.l.b16 %v2534
    %v2615 = vunpack.c.h.b16 %v2534
    %v2616 = vunpack.c.l.b16 %v2535
    %v2617 = vunpack.c.h.b16 %v2535
    %v2618 = vunpack.c.l.b16 %v2536
    %v2619 = vunpack.c.h.b16 %v2536
    %v2620 = vunpack.c.l.b16 %v2537
    %v2621 = vunpack.c.h.b16 %v2537
    %v2622 = vunpack.c.l.b16 %v2538
    %v2623 = vunpack.c.h.b16 %v2538
    %v2624 = vunpack.c.l.b16 %v2539
    %v2625 = vunpack.c.h.b16 %v2539
    %v2626 = vunpack.c.l.b16 %v2540
    %v2627 = vunpack.c.h.b16 %v2540
    %v2628 = vunpack.c.l.b16 %v2541
    %v2629 = vunpack.c.h.b16 %v2541
    %v2630 = vunpack.c.l.b16 %v2542
    %v2631 = vunpack.c.h.b16 %v2542
    %v2632 = vunpack.c.l.b16 %v2543
    %v2633 = vunpack.c.h.b16 %v2543
    %v2634 = vunpack.c.l.b16 %v2544
    %v2635 = vunpack.c.h.b16 %v2544
    %v2636 = vunpack.c.l.b16 %v2545
    %v2637 = vunpack.c.h.b16 %v2545
    %v2638 = vunpack.c.l.b16 %v2546
    %v2639 = vunpack.c.h.b16 %v2546
    %v2640 = vunpack.c.l.b16 %v2547
    %v2641 = vunpack.c.h.b16 %v2547
    %v2642 = vunpack.c.l.b16 %v2548
    %v2643 = vunpack.c.h.b16 %v2548
    %v2644 = vunpack.c.l.b16 %v2549
    %v2645 = vunpack.c.h.b16 %v2549
    %v2646 = vpack.c.b16 %v2586, %v2582
    %v2647 = vpack.c.b16 %v2587, %v2583
    %v2648 = vpack.c.b16 %v2588, %v2584
    %v2649 = vpack.c.b16 %v2589, %v2585
    %v2650 = vpack.c.b16 %v2594, %v2590
    %v2651 = vpack.c.b16 %v2595, %v2591
    %v2652 = vpack.c.b16 %v2596, %v2592
    %v2653 = vpack.c.b16 %v2597, %v2593
    %v2654 = vpack.c.b16 %v2602, %v2598
    %v2655 = vpack.c.b16 %v2603, %v2599
    %v2656 = vpack.c.b16 %v2604, %v2600
    %v2657 = vpack.c.b16 %v2605, %v2601
    %v2658 = vpack.c.b16 %v2610, %v2606
    %v2659 = vpack.c.b16 %v2611, %v2607
    %v2660 = vpack.c.b16 %v2612, %v2608
    %v2661 = vpack.c.b16 %v2613, %v2609
    %v2662 = vpack.c.b16 %v2618, %v2614
    %v2663 = vpack.c.b16 %v2619, %v2615
    %v2664 = vpack.c.b16 %v2620, %v2616
    %v2665 = vpack.c.b16 %v2621, %v2617
    %v2666 = vpack.c.b16 %v2626, %v2622
    %v2667 = vpack.c.b16 %v2627, %v2623
    %v2668 = vpack.c.b16 %v2628, %v2624
    %v2669 = vpack.c.b16 %v2629, %v2625
    %v2670 = vpack.c.b16 %v2634, %v2630
    %v2671 = vpack.c.b16 %v2635, %v2631
    %v2672 = vpack.c.b16 %v2636, %v2632
    %v2673 = vpack.c.b16 %v2637, %v2633
    %v2674 = vpack.c.b16 %v2642, %v2638
    %v2675 = vpack.c.b16 %v2643, %v2639
    %v2676 = vpack.c.b16 %v2644, %v2640
    %v2677 = vpack.c.b16 %v2645, %v2641
    %2710 = vmatprep.subr.bf16.mxu0 %v2675
    %2711 = vmatpush1.bf16.msra.mxu0 %v2674
    %2712 = vmatprep.subr.bf16.mxu0 %v2671
    %2713 = vmatpush1.bf16.msra.mxu0 %v2670
    %2714 = vmatprep.subr.bf16.mxu0 %v2667
    %2715 = vmatpush1.bf16.msra.mxu0 %v2666
    %2716 = vmatprep.subr.bf16.mxu0 %v2663
    %2717 = vmatpush1.bf16.msra.mxu0 %v2662
    %2718 = vmatprep.subr.bf16.mxu0 %v2659
    %2719 = vmatpush1.bf16.msra.mxu0 %v2658
    %2720 = vmatprep.subr.bf16.mxu0 %v2655
    %2721 = vmatpush1.bf16.msra.mxu0 %v2654
    %2722 = vmatprep.subr.bf16.mxu0 %v2651
    %2723 = vmatpush1.bf16.msra.mxu0 %v2650
    %2724 = vmatprep.subr.bf16.mxu0 %v2647
    %2725 = vmatpush1.bf16.msra.mxu0 %v2646
    %2726 = vmatprep.subr.bf16.mxu0 0
    %2727 = vmatpush2.bf16.msra.mxu0 0
    %2728 = vmatprep.subr.bf16.mxu0 0
    %2729 = vmatpush2.bf16.msra.mxu0 0
    %2730 = vmatprep.subr.bf16.mxu0 0
    %2731 = vmatpush2.bf16.msra.mxu0 0
    %2732 = vmatprep.subr.bf16.mxu0 0
    %2733 = vmatpush2.bf16.msra.mxu0 0
    %2734 = vmatprep.subr.bf16.mxu0 0
    %2735 = vmatpush2.bf16.msra.mxu0 0
    %2736 = vmatprep.subr.bf16.mxu0 0
    %2737 = vmatpush2.bf16.msra.mxu0 0
    %2738 = vmatprep.subr.bf16.mxu0 0
    %2739 = vmatpush2.bf16.msra.mxu0 0
    %2740 = vmatprep.subr.bf16.mxu0 0
    %2741 = vmatpush2.bf16.msra.mxu0 0
    %2742 = vmatprep.mubr.bf16.mxu0 0
    %2743 = vmatmul.mubr.bf16.gmra.mxu0 %v2517
    %v2744 = vpop.f32.mrf.mxu0
    %v2745 = vadd.f32 0.0, %v2744
    %v2746 = vpop.f32.mrf.mxu0
    %v2747 = vadd.f32 0.0, %v2746
    %v2748 = vpop.f32.mrf.mxu0
    %v2749 = vpop.f32.mrf.mxu0
    %2750 = vdwg.mxu0
    %2751 = vmatprep.subr.bf16.mxu0 %v2677
    %2752 = vmatpush1.bf16.msra.mxu0 %v2676
    %2753 = vmatprep.subr.bf16.mxu0 %v2673
    %2754 = vmatpush1.bf16.msra.mxu0 %v2672
    %2755 = vmatprep.subr.bf16.mxu0 %v2669
    %2756 = vmatpush1.bf16.msra.mxu0 %v2668
    %2757 = vmatprep.subr.bf16.mxu0 %v2665
    %2758 = vmatpush1.bf16.msra.mxu0 %v2664
    %2759 = vmatprep.subr.bf16.mxu0 %v2661
    %2760 = vmatpush1.bf16.msra.mxu0 %v2660
    %2761 = vmatprep.subr.bf16.mxu0 %v2657
    %2762 = vmatpush1.bf16.msra.mxu0 %v2656
    %2763 = vmatprep.subr.bf16.mxu0 %v2653
    %2764 = vmatpush1.bf16.msra.mxu0 %v2652
    %2765 = vmatprep.subr.bf16.mxu0 %v2649
    %2766 = vmatpush1.bf16.msra.mxu0 %v2648
    %2767 = vmatprep.subr.bf16.mxu0 0
    %2768 = vmatpush2.bf16.msra.mxu0 0
    %2769 = vmatprep.subr.bf16.mxu0 0
    %2770 = vmatpush2.bf16.msra.mxu0 0
    %2771 = vmatprep.subr.bf16.mxu0 0
    %2772 = vmatpush2.bf16.msra.mxu0 0
    %2773 = vmatprep.subr.bf16.mxu0 0
    %2774 = vmatpush2.bf16.msra.mxu0 0
    %2775 = vmatprep.subr.bf16.mxu0 0
    %2776 = vmatpush2.bf16.msra.mxu0 0
    %2777 = vmatprep.subr.bf16.mxu0 0
    %2778 = vmatpush2.bf16.msra.mxu0 0
    %2779 = vmatprep.subr.bf16.mxu0 0
    %2780 = vmatpush2.bf16.msra.mxu0 0
    %2781 = vmatprep.subr.bf16.mxu0 0
    %2782 = vmatpush2.bf16.msra.mxu0 0
    %2783 = vmatprep.mubr.bf16.mxu0 0
    %2784 = vmatmul.mubr.bf16.gmra.mxu0 %v2517
    %v2785 = vpop.f32.mrf.mxu0
    %v2786 = vadd.f32 0.0, %v2785
    %v2787 = vpop.f32.mrf.mxu0
    %v2788 = vadd.f32 0.0, %v2787
    %v2789 = vpop.f32.mrf.mxu0
    %v2790 = vpop.f32.mrf.mxu0
    %2791 = vdwg.mxu0
    %v2792 = vadd.f32 %v2513, %v2745
    %v2793 = vadd.f32 %v2514, %v2747
    %v2794 = vadd.f32 %v2515, %v2786
    %v2795 = vadd.f32 %v2516, %v2788
    %v2796 = vxor.u32 %v2792, 2147483648
    %v2797 = vxor.u32 %v2793, 2147483648
    %v2798 = vxor.u32 %v2794, 2147483648
    %v2799 = vmul.f32 %v2796, 1.442695
    %v2800 = vpow.pop %v2799
    %v2801 = vmul.f32 %v2797, 1.442695
    %v2802 = vpow.pop %v2801
    %v2803 = vmul.f32 %v2798, 1.442695
    %v2804 = vpow.pop %v2803
    %v2805 = vadd.f32 %v2800, 1.0
    %v2806 = vadd.f32 %v2802, 1.0
    %v2807 = vadd.f32 %v2804, 1.0
    %v2808 = vrcp.pop %v2805
    %v2809 = vmul.f32 1.0, %v2808
    %v2810 = vrcp.pop %v2806
    %v2811 = vmul.f32 1.0, %v2810
    %v2812 = vrcp.pop %v2807
    %v2813 = vmul.f32 1.0, %v2812
    %v2814 = vtanh.pop %v2795
    %v2815 = vmul.f32 %v2811, %v2507
    %v2816 = vmul.f32 %v2809, %v2814
    %v2817 = vadd.f32 %v2815, %v2816
    %v2818 = vtanh.pop %v2817
    %v2819 = vmul.f32 %v2813, %v2818
    %s2820 = scalar_lea.vmem [#allocation3], 56
    %2821 = vst [vmem:[%s2820] sm:$0xff] %v2819
    %v2822 = vld [vmem:[#allocation3] sm:$0xff]
    %v2823 = vld [vmem:[#allocation3 + $0x8] sm:$0xff]
    %v2824 = vld [vmem:[#allocation3 + $0x10] sm:$0xff]
    %v2825 = vld [vmem:[#allocation3 + $0x18] sm:$0xff]
    %v2826 = vld [vmem:[#allocation3 + $0x20] sm:$0xff]
    %v2827 = vld [vmem:[#allocation3 + $0x28] sm:$0xff]
    %v2828 = vld [vmem:[#allocation3 + $0x30] sm:$0xff]
    %v2829 = vld [vmem:[#allocation3 + $0x38] sm:$0xff]
    %v2830 = vpack.c.bf16 %v2822, %v2822
    %v2831 = vpack.c.bf16 %v2823, %v2823
    %v2832 = vpack.c.bf16 %v2824, %v2824
    %v2833 = vpack.c.bf16 %v2825, %v2825
    %v2834 = vpack.c.bf16 %v2826, %v2826
    %v2835 = vpack.c.bf16 %v2827, %v2827
    %v2836 = vpack.c.bf16 %v2828, %v2828
    %v2837 = vpack.c.bf16 %v2829, %v2829
    %v2838 = vld [vmem:[#allocation6] sm:$0xff]
    %v2839 = vld [vmem:[#allocation6 + $0x8] sm:$0xff]
    %v2840 = vld [vmem:[#allocation6 + $0x10] sm:$0xff]
    %v2841 = vld [vmem:[#allocation6 + $0x18] sm:$0xff]
    %v2842 = vld [vmem:[#allocation6 + $0x20] sm:$0xff]
    %v2843 = vld [vmem:[#allocation6 + $0x28] sm:$0xff]
    %v2844 = vld [vmem:[#allocation6 + $0x30] sm:$0xff]
    %v2845 = vld [vmem:[#allocation6 + $0x38] sm:$0xff]
    %v2846 = vld [vmem:[#allocation6 + $0x40] sm:$0xff]
    %v2847 = vld [vmem:[#allocation6 + $0x48] sm:$0xff]
    %v2848 = vld [vmem:[#allocation6 + $0x50] sm:$0xff]
    %v2849 = vld [vmem:[#allocation6 + $0x58] sm:$0xff]
    %v2850 = vld [vmem:[#allocation6 + $0x60] sm:$0xff]
    %v2851 = vld [vmem:[#allocation6 + $0x68] sm:$0xff]
    %v2852 = vld [vmem:[#allocation6 + $0x70] sm:$0xff]
    %v2853 = vld [vmem:[#allocation6 + $0x78] sm:$0xff]
    %v2854 = vld [vmem:[#allocation6 + $0x80] sm:$0xff]
    %v2855 = vld [vmem:[#allocation6 + $0x88] sm:$0xff]
    %v2856 = vld [vmem:[#allocation6 + $0x90] sm:$0xff]
    %v2857 = vld [vmem:[#allocation6 + $0x98] sm:$0xff]
    %v2858 = vld [vmem:[#allocation6 + $0xa0] sm:$0xff]
    %v2859 = vld [vmem:[#allocation6 + $0xa8] sm:$0xff]
    %v2860 = vld [vmem:[#allocation6 + $0xb0] sm:$0xff]
    %v2861 = vld [vmem:[#allocation6 + $0xb8] sm:$0xff]
    %v2862 = vld [vmem:[#allocation6 + $0xc0] sm:$0xff]
    %v2863 = vld [vmem:[#allocation6 + $0xc8] sm:$0xff]
    %v2864 = vld [vmem:[#allocation6 + $0xd0] sm:$0xff]
    %v2865 = vld [vmem:[#allocation6 + $0xd8] sm:$0xff]
    %v2866 = vld [vmem:[#allocation6 + $0xe0] sm:$0xff]
    %v2867 = vld [vmem:[#allocation6 + $0xe8] sm:$0xff]
    %v2868 = vld [vmem:[#allocation6 + $0xf0] sm:$0xff]
    %v2869 = vld [vmem:[#allocation6 + $0xf8] sm:$0xff]
    %v2870 = vld [vmem:[%s6] sm:$0xf]
    %v2872 = vlaneseq
    %v2873 = vshrl.u32 %v2872, 7
    %v2874 = vsub.s32 0, %v2873
    %v2875 = vrot.slane %v2870, %v2874
    %v2876 = vlaneseq
    %v2877 = vshrl.u32 %v2876, 7
    %v2878 = vsub.s32 1, %v2877
    %v2879 = vrot.slane %v2870, %v2878
    %v2880 = vlaneseq
    %v2881 = vshrl.u32 %v2880, 7
    %v2882 = vsub.s32 2, %v2881
    %v2883 = vrot.slane %v2870, %v2882
    %v2884 = vlaneseq
    %v2885 = vshrl.u32 %v2884, 7
    %v2886 = vsub.s32 3, %v2885
    %v2887 = vrot.slane %v2870, %v2886
    %v2900 = vunpack.c.l.b16 %v2830
    %v2901 = vunpack.c.l.b16 %v2831
    %v2902 = vunpack.c.l.b16 %v2832
    %v2903 = vunpack.c.l.b16 %v2833
    %v2904 = vunpack.c.l.b16 %v2834
    %v2905 = vunpack.c.l.b16 %v2835
    %v2906 = vunpack.c.l.b16 %v2836
    %v2907 = vunpack.c.l.b16 %v2837
    %v2908 = vpack.c.b16 %v2901, %v2900
    %v2909 = vpack.c.b16 %v2903, %v2902
    %v2910 = vpack.c.b16 %v2905, %v2904
    %v2911 = vpack.c.b16 %v2907, %v2906
    %v2948 = vunpack.c.l.b16 %v2838
    %v2949 = vunpack.c.h.b16 %v2838
    %v2950 = vunpack.c.l.b16 %v2839
    %v2951 = vunpack.c.h.b16 %v2839
    %v2952 = vunpack.c.l.b16 %v2840
    %v2953 = vunpack.c.h.b16 %v2840
    %v2954 = vunpack.c.l.b16 %v2841
    %v2955 = vunpack.c.h.b16 %v2841
    %v2956 = vunpack.c.l.b16 %v2842
    %v2957 = vunpack.c.h.b16 %v2842
    %v2958 = vunpack.c.l.b16 %v2843
    %v2959 = vunpack.c.h.b16 %v2843
    %v2960 = vunpack.c.l.b16 %v2844
    %v2961 = vunpack.c.h.b16 %v2844
    %v2962 = vunpack.c.l.b16 %v2845
    %v2963 = vunpack.c.h.b16 %v2845
    %v2964 = vunpack.c.l.b16 %v2846
    %v2965 = vunpack.c.h.b16 %v2846
    %v2966 = vunpack.c.l.b16 %v2847
    %v2967 = vunpack.c.h.b16 %v2847
    %v2968 = vunpack.c.l.b16 %v2848
    %v2969 = vunpack.c.h.b16 %v2848
    %v2970 = vunpack.c.l.b16 %v2849
    %v2971 = vunpack.c.h.b16 %v2849
    %v2972 = vunpack.c.l.b16 %v2850
    %v2973 = vunpack.c.h.b16 %v2850
    %v2974 = vunpack.c.l.b16 %v2851
    %v2975 = vunpack.c.h.b16 %v2851
    %v2976 = vunpack.c.l.b16 %v2852
    %v2977 = vunpack.c.h.b16 %v2852
    %v2978 = vunpack.c.l.b16 %v2853
    %v2979 = vunpack.c.h.b16 %v2853
    %v2980 = vunpack.c.l.b16 %v2854
    %v2981 = vunpack.c.h.b16 %v2854
    %v2982 = vunpack.c.l.b16 %v2855
    %v2983 = vunpack.c.h.b16 %v2855
    %v2984 = vunpack.c.l.b16 %v2856
    %v2985 = vunpack.c.h.b16 %v2856
    %v2986 = vunpack.c.l.b16 %v2857
    %v2987 = vunpack.c.h.b16 %v2857
    %v2988 = vunpack.c.l.b16 %v2858
    %v2989 = vunpack.c.h.b16 %v2858
    %v2990 = vunpack.c.l.b16 %v2859
    %v2991 = vunpack.c.h.b16 %v2859
    %v2992 = vunpack.c.l.b16 %v2860
    %v2993 = vunpack.c.h.b16 %v2860
    %v2994 = vunpack.c.l.b16 %v2861
    %v2995 = vunpack.c.h.b16 %v2861
    %v2996 = vunpack.c.l.b16 %v2862
    %v2997 = vunpack.c.h.b16 %v2862
    %v2998 = vunpack.c.l.b16 %v2863
    %v2999 = vunpack.c.h.b16 %v2863
    %v3000 = vunpack.c.l.b16 %v2864
    %v3001 = vunpack.c.h.b16 %v2864
    %v3002 = vunpack.c.l.b16 %v2865
    %v3003 = vunpack.c.h.b16 %v2865
    %v3004 = vunpack.c.l.b16 %v2866
    %v3005 = vunpack.c.h.b16 %v2866
    %v3006 = vunpack.c.l.b16 %v2867
    %v3007 = vunpack.c.h.b16 %v2867
    %v3008 = vunpack.c.l.b16 %v2868
    %v3009 = vunpack.c.h.b16 %v2868
    %v3010 = vunpack.c.l.b16 %v2869
    %v3011 = vunpack.c.h.b16 %v2869
    %v3012 = vpack.c.b16 %v2952, %v2948
    %v3013 = vpack.c.b16 %v2953, %v2949
    %v3014 = vpack.c.b16 %v2954, %v2950
    %v3015 = vpack.c.b16 %v2955, %v2951
    %v3016 = vpack.c.b16 %v2960, %v2956
    %v3017 = vpack.c.b16 %v2961, %v2957
    %v3018 = vpack.c.b16 %v2962, %v2958
    %v3019 = vpack.c.b16 %v2963, %v2959
    %v3020 = vpack.c.b16 %v2968, %v2964
    %v3021 = vpack.c.b16 %v2969, %v2965
    %v3022 = vpack.c.b16 %v2970, %v2966
    %v3023 = vpack.c.b16 %v2971, %v2967
    %v3024 = vpack.c.b16 %v2976, %v2972
    %v3025 = vpack.c.b16 %v2977, %v2973
    %v3026 = vpack.c.b16 %v2978, %v2974
    %v3027 = vpack.c.b16 %v2979, %v2975
    %v3028 = vpack.c.b16 %v2984, %v2980
    %v3029 = vpack.c.b16 %v2985, %v2981
    %v3030 = vpack.c.b16 %v2986, %v2982
    %v3031 = vpack.c.b16 %v2987, %v2983
    %v3032 = vpack.c.b16 %v2992, %v2988
    %v3033 = vpack.c.b16 %v2993, %v2989
    %v3034 = vpack.c.b16 %v2994, %v2990
    %v3035 = vpack.c.b16 %v2995, %v2991
    %v3036 = vpack.c.b16 %v3000, %v2996
    %v3037 = vpack.c.b16 %v3001, %v2997
    %v3038 = vpack.c.b16 %v3002, %v2998
    %v3039 = vpack.c.b16 %v3003, %v2999
    %v3040 = vpack.c.b16 %v3008, %v3004
    %v3041 = vpack.c.b16 %v3009, %v3005
    %v3042 = vpack.c.b16 %v3010, %v3006
    %v3043 = vpack.c.b16 %v3011, %v3007
    %3076 = vmatprep.subr.bf16.mxu0 %v3041
    %3077 = vmatpush1.bf16.msra.mxu0 %v3040
    %3078 = vmatprep.subr.bf16.mxu0 %v3037
    %3079 = vmatpush1.bf16.msra.mxu0 %v3036
    %3080 = vmatprep.subr.bf16.mxu0 %v3033
    %3081 = vmatpush1.bf16.msra.mxu0 %v3032
    %3082 = vmatprep.subr.bf16.mxu0 %v3029
    %3083 = vmatpush1.bf16.msra.mxu0 %v3028
    %3084 = vmatprep.subr.bf16.mxu0 %v3025
    %3085 = vmatpush1.bf16.msra.mxu0 %v3024
    %3086 = vmatprep.subr.bf16.mxu0 %v3021
    %3087 = vmatpush1.bf16.msra.mxu0 %v3020
    %3088 = vmatprep.subr.bf16.mxu0 %v3017
    %3089 = vmatpush1.bf16.msra.mxu0 %v3016
    %3090 = vmatprep.subr.bf16.mxu0 %v3013
    %3091 = vmatpush1.bf16.msra.mxu0 %v3012
    %3092 = vmatprep.subr.bf16.mxu0 0
    %3093 = vmatpush2.bf16.msra.mxu0 0
    %3094 = vmatprep.subr.bf16.mxu0 0
    %3095 = vmatpush2.bf16.msra.mxu0 0
    %3096 = vmatprep.subr.bf16.mxu0 0
    %3097 = vmatpush2.bf16.msra.mxu0 0
    %3098 = vmatprep.subr.bf16.mxu0 0
    %3099 = vmatpush2.bf16.msra.mxu0 0
    %3100 = vmatprep.subr.bf16.mxu0 0
    %3101 = vmatpush2.bf16.msra.mxu0 0
    %3102 = vmatprep.subr.bf16.mxu0 0
    %3103 = vmatpush2.bf16.msra.mxu0 0
    %3104 = vmatprep.subr.bf16.mxu0 0
    %3105 = vmatpush2.bf16.msra.mxu0 0
    %3106 = vmatprep.subr.bf16.mxu0 0
    %3107 = vmatpush2.bf16.msra.mxu0 0
    %3108 = vmatprep.mubr.bf16.mxu0 0
    %3109 = vmatmul.mubr.bf16.gmra.mxu0 %v2908
    %v3110 = vpop.f32.mrf.mxu0
    %v3111 = vadd.f32 %v2875, %v3110
    %v3112 = vpop.f32.mrf.mxu0
    %v3113 = vadd.f32 %v2879, %v3112
    %v3114 = vpop.f32.mrf.mxu0
    %v3115 = vadd.f32 %v2875, %v3114
    %v3116 = vpop.f32.mrf.mxu0
    %v3117 = vadd.f32 %v2879, %v3116
    %3118 = vmatprep.mubr.bf16.mxu0 0
    %3119 = vmatmul.mubr.bf16.gmra.mxu0 %v2909
    %v3120 = vpop.f32.mrf.mxu0
    %v3121 = vadd.f32 %v2875, %v3120
    %v3122 = vpop.f32.mrf.mxu0
    %v3123 = vadd.f32 %v2879, %v3122
    %v3124 = vpop.f32.mrf.mxu0
    %v3125 = vadd.f32 %v2875, %v3124
    %v3126 = vpop.f32.mrf.mxu0
    %v3127 = vadd.f32 %v2879, %v3126
    %3128 = vmatprep.mubr.bf16.mxu0 0
    %3129 = vmatmul.mubr.bf16.gmra.mxu0 %v2910
    %v3130 = vpop.f32.mrf.mxu0
    %v3131 = vadd.f32 %v2875, %v3130
    %v3132 = vpop.f32.mrf.mxu0
    %v3133 = vadd.f32 %v2879, %v3132
    %v3134 = vpop.f32.mrf.mxu0
    %v3135 = vadd.f32 %v2875, %v3134
    %v3136 = vpop.f32.mrf.mxu0
    %v3137 = vadd.f32 %v2879, %v3136
    %3138 = vmatprep.mubr.bf16.mxu0 0
    %3139 = vmatmul.mubr.bf16.gmra.mxu0 %v2911
    %v3140 = vpop.f32.mrf.mxu0
    %v3141 = vadd.f32 %v2875, %v3140
    %v3142 = vpop.f32.mrf.mxu0
    %v3143 = vadd.f32 %v2879, %v3142
    %v3144 = vpop.f32.mrf.mxu0
    %v3145 = vadd.f32 %v2875, %v3144
    %v3146 = vpop.f32.mrf.mxu0
    %v3147 = vadd.f32 %v2879, %v3146
    %3148 = vdwg.mxu0
    %3149 = vmatprep.subr.bf16.mxu0 %v3043
    %3150 = vmatpush1.bf16.msra.mxu0 %v3042
    %3151 = vmatprep.subr.bf16.mxu0 %v3039
    %3152 = vmatpush1.bf16.msra.mxu0 %v3038
    %3153 = vmatprep.subr.bf16.mxu0 %v3035
    %3154 = vmatpush1.bf16.msra.mxu0 %v3034
    %3155 = vmatprep.subr.bf16.mxu0 %v3031
    %3156 = vmatpush1.bf16.msra.mxu0 %v3030
    %3157 = vmatprep.subr.bf16.mxu0 %v3027
    %3158 = vmatpush1.bf16.msra.mxu0 %v3026
    %3159 = vmatprep.subr.bf16.mxu0 %v3023
    %3160 = vmatpush1.bf16.msra.mxu0 %v3022
    %3161 = vmatprep.subr.bf16.mxu0 %v3019
    %3162 = vmatpush1.bf16.msra.mxu0 %v3018
    %3163 = vmatprep.subr.bf16.mxu0 %v3015
    %3164 = vmatpush1.bf16.msra.mxu0 %v3014
    %3165 = vmatprep.subr.bf16.mxu0 0
    %3166 = vmatpush2.bf16.msra.mxu0 0
    %3167 = vmatprep.subr.bf16.mxu0 0
    %3168 = vmatpush2.bf16.msra.mxu0 0
    %3169 = vmatprep.subr.bf16.mxu0 0
    %3170 = vmatpush2.bf16.msra.mxu0 0
    %3171 = vmatprep.subr.bf16.mxu0 0
    %3172 = vmatpush2.bf16.msra.mxu0 0
    %3173 = vmatprep.subr.bf16.mxu0 0
    %3174 = vmatpush2.bf16.msra.mxu0 0
    %3175 = vmatprep.subr.bf16.mxu0 0
    %3176 = vmatpush2.bf16.msra.mxu0 0
    %3177 = vmatprep.subr.bf16.mxu0 0
    %3178 = vmatpush2.bf16.msra.mxu0 0
    %3179 = vmatprep.subr.bf16.mxu0 0
    %3180 = vmatpush2.bf16.msra.mxu0 0
    %3181 = vmatprep.mubr.bf16.mxu0 0
    %3182 = vmatmul.mubr.bf16.gmra.mxu0 %v2908
    %v3183 = vpop.f32.mrf.mxu0
    %v3184 = vadd.f32 %v2883, %v3183
    %v3185 = vpop.f32.mrf.mxu0
    %v3186 = vadd.f32 %v2887, %v3185
    %v3187 = vpop.f32.mrf.mxu0
    %v3188 = vadd.f32 %v2883, %v3187
    %v3189 = vpop.f32.mrf.mxu0
    %v3190 = vadd.f32 %v2887, %v3189
    %3191 = vmatprep.mubr.bf16.mxu0 0
    %3192 = vmatmul.mubr.bf16.gmra.mxu0 %v2909
    %v3193 = vpop.f32.mrf.mxu0
    %v3194 = vadd.f32 %v2883, %v3193
    %v3195 = vpop.f32.mrf.mxu0
    %v3196 = vadd.f32 %v2887, %v3195
    %v3197 = vpop.f32.mrf.mxu0
    %v3198 = vadd.f32 %v2883, %v3197
    %v3199 = vpop.f32.mrf.mxu0
    %v3200 = vadd.f32 %v2887, %v3199
    %3201 = vmatprep.mubr.bf16.mxu0 0
    %3202 = vmatmul.mubr.bf16.gmra.mxu0 %v2910
    %v3203 = vpop.f32.mrf.mxu0
    %v3204 = vadd.f32 %v2883, %v3203
    %v3205 = vpop.f32.mrf.mxu0
    %v3206 = vadd.f32 %v2887, %v3205
    %v3207 = vpop.f32.mrf.mxu0
    %v3208 = vadd.f32 %v2883, %v3207
    %v3209 = vpop.f32.mrf.mxu0
    %v3210 = vadd.f32 %v2887, %v3209
    %3211 = vmatprep.mubr.bf16.mxu0 0
    %3212 = vmatmul.mubr.bf16.gmra.mxu0 %v2911
    %v3213 = vpop.f32.mrf.mxu0
    %v3214 = vadd.f32 %v2883, %v3213
    %v3215 = vpop.f32.mrf.mxu0
    %v3216 = vadd.f32 %v2887, %v3215
    %v3217 = vpop.f32.mrf.mxu0
    %v3218 = vadd.f32 %v2883, %v3217
    %v3219 = vpop.f32.mrf.mxu0
    %v3220 = vadd.f32 %v2887, %v3219
    %3221 = vdwg.mxu0
    %3222 = vst [vmem:[#allocation2] sm:$0xff] %v3111
    %3223 = vst [vmem:[#allocation2 + $0x8] sm:$0xff] %v3113
    %3224 = vst [vmem:[#allocation2 + $0x10] sm:$0xff] %v3184
    %3225 = vst [vmem:[#allocation2 + $0x18] sm:$0xff] %v3186
    %3226 = vst [vmem:[#allocation2 + $0x20] sm:$0xff] %v3115
    %3227 = vst [vmem:[#allocation2 + $0x28] sm:$0xff] %v3117
    %3228 = vst [vmem:[#allocation2 + $0x30] sm:$0xff] %v3188
    %3229 = vst [vmem:[#allocation2 + $0x38] sm:$0xff] %v3190
    %3230 = vst [vmem:[#allocation2 + $0x40] sm:$0xff] %v3121
    %3231 = vst [vmem:[#allocation2 + $0x48] sm:$0xff] %v3123
    %3232 = vst [vmem:[#allocation2 + $0x50] sm:$0xff] %v3194
    %3233 = vst [vmem:[#allocation2 + $0x58] sm:$0xff] %v3196
    %3234 = vst [vmem:[#allocation2 + $0x60] sm:$0xff] %v3125
    %3235 = vst [vmem:[#allocation2 + $0x68] sm:$0xff] %v3127
    %3236 = vst [vmem:[#allocation2 + $0x70] sm:$0xff] %v3198
    %3237 = vst [vmem:[#allocation2 + $0x78] sm:$0xff] %v3200
    %3238 = vst [vmem:[#allocation2 + $0x80] sm:$0xff] %v3131
    %3239 = vst [vmem:[#allocation2 + $0x88] sm:$0xff] %v3133
    %3240 = vst [vmem:[#allocation2 + $0x90] sm:$0xff] %v3204
    %3241 = vst [vmem:[#allocation2 + $0x98] sm:$0xff] %v3206
    %3242 = vst [vmem:[#allocation2 + $0xa0] sm:$0xff] %v3135
    %3243 = vst [vmem:[#allocation2 + $0xa8] sm:$0xff] %v3137
    %3244 = vst [vmem:[#allocation2 + $0xb0] sm:$0xff] %v3208
    %3245 = vst [vmem:[#allocation2 + $0xb8] sm:$0xff] %v3210
    %3246 = vst [vmem:[#allocation2 + $0xc0] sm:$0xff] %v3141
    %3247 = vst [vmem:[#allocation2 + $0xc8] sm:$0xff] %v3143
    %3248 = vst [vmem:[#allocation2 + $0xd0] sm:$0xff] %v3214
    %3249 = vst [vmem:[#allocation2 + $0xd8] sm:$0xff] %v3216
    %3250 = vst [vmem:[#allocation2 + $0xe0] sm:$0xff] %v3145
    %3251 = vst [vmem:[#allocation2 + $0xe8] sm:$0xff] %v3147
    %3252 = vst [vmem:[#allocation2 + $0xf0] sm:$0xff] %v3218
    %3253 = vst [vmem:[#allocation2 + $0xf8] sm:$0xff] %v3220
    %v3254 = vld [vmem:[#allocation2] sm:$0xff]
    %v3255 = vld [vmem:[#allocation2 + $0x8] sm:$0xff]
    %v3256 = vld [vmem:[#allocation2 + $0x10] sm:$0xff]
    %v3257 = vld [vmem:[#allocation2 + $0x18] sm:$0xff]
    %v3258 = vld [vmem:[#allocation8] sm:$0xff]
    %v3259 = vld [vmem:[#allocation8 + $0x8] sm:$0xff]
    %v3260 = vld [vmem:[#allocation8 + $0x10] sm:$0xff]
    %v3261 = vld [vmem:[#allocation8 + $0x18] sm:$0xff]
    %v3262 = vld [vmem:[#allocation8 + $0x20] sm:$0xff]
    %v3263 = vld [vmem:[#allocation8 + $0x28] sm:$0xff]
    %v3264 = vld [vmem:[#allocation8 + $0x30] sm:$0xff]
    %v3265 = vld [vmem:[#allocation8 + $0x38] sm:$0xff]
    %v3266 = vld [vmem:[#allocation8 + $0x40] sm:$0xff]
    %v3267 = vld [vmem:[#allocation8 + $0x48] sm:$0xff]
    %v3268 = vld [vmem:[#allocation8 + $0x50] sm:$0xff]
    %v3269 = vld [vmem:[#allocation8 + $0x58] sm:$0xff]
    %v3270 = vld [vmem:[#allocation8 + $0x60] sm:$0xff]
    %v3271 = vld [vmem:[#allocation8 + $0x68] sm:$0xff]
    %v3272 = vld [vmem:[#allocation8 + $0x70] sm:$0xff]
    %v3273 = vld [vmem:[#allocation8 + $0x78] sm:$0xff]
    %v3274 = vld [vmem:[#allocation8 + $0x80] sm:$0xff]
    %v3275 = vld [vmem:[#allocation8 + $0x88] sm:$0xff]
    %v3276 = vld [vmem:[#allocation8 + $0x90] sm:$0xff]
    %v3277 = vld [vmem:[#allocation8 + $0x98] sm:$0xff]
    %v3278 = vld [vmem:[#allocation8 + $0xa0] sm:$0xff]
    %v3279 = vld [vmem:[#allocation8 + $0xa8] sm:$0xff]
    %v3280 = vld [vmem:[#allocation8 + $0xb0] sm:$0xff]
    %v3281 = vld [vmem:[#allocation8 + $0xb8] sm:$0xff]
    %v3282 = vld [vmem:[#allocation8 + $0xc0] sm:$0xff]
    %v3283 = vld [vmem:[#allocation8 + $0xc8] sm:$0xff]
    %v3284 = vld [vmem:[#allocation8 + $0xd0] sm:$0xff]
    %v3285 = vld [vmem:[#allocation8 + $0xd8] sm:$0xff]
    %v3286 = vld [vmem:[#allocation8 + $0xe0] sm:$0xff]
    %v3287 = vld [vmem:[#allocation8 + $0xe8] sm:$0xff]
    %v3288 = vld [vmem:[#allocation8 + $0xf0] sm:$0xff]
    %v3289 = vld [vmem:[#allocation8 + $0xf8] sm:$0xff]
    %v3322 = vunpack.c.l.b16 %v3258
    %v3323 = vunpack.c.h.b16 %v3258
    %v3324 = vunpack.c.l.b16 %v3259
    %v3325 = vunpack.c.h.b16 %v3259
    %v3326 = vunpack.c.l.b16 %v3260
    %v3327 = vunpack.c.h.b16 %v3260
    %v3328 = vunpack.c.l.b16 %v3261
    %v3329 = vunpack.c.h.b16 %v3261
    %v3330 = vunpack.c.l.b16 %v3262
    %v3331 = vunpack.c.h.b16 %v3262
    %v3332 = vunpack.c.l.b16 %v3263
    %v3333 = vunpack.c.h.b16 %v3263
    %v3334 = vunpack.c.l.b16 %v3264
    %v3335 = vunpack.c.h.b16 %v3264
    %v3336 = vunpack.c.l.b16 %v3265
    %v3337 = vunpack.c.h.b16 %v3265
    %v3338 = vunpack.c.l.b16 %v3266
    %v3339 = vunpack.c.h.b16 %v3266
    %v3340 = vunpack.c.l.b16 %v3267
    %v3341 = vunpack.c.h.b16 %v3267
    %v3342 = vunpack.c.l.b16 %v3268
    %v3343 = vunpack.c.h.b16 %v3268
    %v3344 = vunpack.c.l.b16 %v3269
    %v3345 = vunpack.c.h.b16 %v3269
    %v3346 = vunpack.c.l.b16 %v3270
    %v3347 = vunpack.c.h.b16 %v3270
    %v3348 = vunpack.c.l.b16 %v3271
    %v3349 = vunpack.c.h.b16 %v3271
    %v3350 = vunpack.c.l.b16 %v3272
    %v3351 = vunpack.c.h.b16 %v3272
    %v3352 = vunpack.c.l.b16 %v3273
    %v3353 = vunpack.c.h.b16 %v3273
    %v3354 = vunpack.c.l.b16 %v3274
    %v3355 = vunpack.c.h.b16 %v3274
    %v3356 = vunpack.c.l.b16 %v3275
    %v3357 = vunpack.c.h.b16 %v3275
    %v3358 = vunpack.c.l.b16 %v3276
    %v3359 = vunpack.c.h.b16 %v3276
    %v3360 = vunpack.c.l.b16 %v3277
    %v3361 = vunpack.c.h.b16 %v3277
    %v3362 = vunpack.c.l.b16 %v3278
    %v3363 = vunpack.c.h.b16 %v3278
    %v3364 = vunpack.c.l.b16 %v3279
    %v3365 = vunpack.c.h.b16 %v3279
    %v3366 = vunpack.c.l.b16 %v3280
    %v3367 = vunpack.c.h.b16 %v3280
    %v3368 = vunpack.c.l.b16 %v3281
    %v3369 = vunpack.c.h.b16 %v3281
    %v3370 = vunpack.c.l.b16 %v3282
    %v3371 = vunpack.c.h.b16 %v3282
    %v3372 = vunpack.c.l.b16 %v3283
    %v3373 = vunpack.c.h.b16 %v3283
    %v3374 = vunpack.c.l.b16 %v3284
    %v3375 = vunpack.c.h.b16 %v3284
    %v3376 = vunpack.c.l.b16 %v3285
    %v3377 = vunpack.c.h.b16 %v3285
    %v3378 = vunpack.c.l.b16 %v3286
    %v3379 = vunpack.c.h.b16 %v3286
    %v3380 = vunpack.c.l.b16 %v3287
    %v3381 = vunpack.c.h.b16 %v3287
    %v3382 = vunpack.c.l.b16 %v3288
    %v3383 = vunpack.c.h.b16 %v3288
    %v3384 = vunpack.c.l.b16 %v3289
    %v3385 = vunpack.c.h.b16 %v3289
    %v3386 = vpack.c.b16 %v3326, %v3322
    %v3387 = vpack.c.b16 %v3327, %v3323
    %v3388 = vpack.c.b16 %v3328, %v3324
    %v3389 = vpack.c.b16 %v3329, %v3325
    %v3390 = vpack.c.b16 %v3334, %v3330
    %v3391 = vpack.c.b16 %v3335, %v3331
    %v3392 = vpack.c.b16 %v3336, %v3332
    %v3393 = vpack.c.b16 %v3337, %v3333
    %v3394 = vpack.c.b16 %v3342, %v3338
    %v3395 = vpack.c.b16 %v3343, %v3339
    %v3396 = vpack.c.b16 %v3344, %v3340
    %v3397 = vpack.c.b16 %v3345, %v3341
    %v3398 = vpack.c.b16 %v3350, %v3346
    %v3399 = vpack.c.b16 %v3351, %v3347
    %v3400 = vpack.c.b16 %v3352, %v3348
    %v3401 = vpack.c.b16 %v3353, %v3349
    %v3402 = vpack.c.b16 %v3358, %v3354
    %v3403 = vpack.c.b16 %v3359, %v3355
    %v3404 = vpack.c.b16 %v3360, %v3356
    %v3405 = vpack.c.b16 %v3361, %v3357
    %v3406 = vpack.c.b16 %v3366, %v3362
    %v3407 = vpack.c.b16 %v3367, %v3363
    %v3408 = vpack.c.b16 %v3368, %v3364
    %v3409 = vpack.c.b16 %v3369, %v3365
    %v3410 = vpack.c.b16 %v3374, %v3370
    %v3411 = vpack.c.b16 %v3375, %v3371
    %v3412 = vpack.c.b16 %v3376, %v3372
    %v3413 = vpack.c.b16 %v3377, %v3373
    %v3414 = vpack.c.b16 %v3382, %v3378
    %v3415 = vpack.c.b16 %v3383, %v3379
    %v3416 = vpack.c.b16 %v3384, %v3380
    %v3417 = vpack.c.b16 %v3385, %v3381
    %3450 = vmatprep.subr.bf16.mxu0 %v3415
    %3451 = vmatpush1.bf16.msra.mxu0 %v3414
    %3452 = vmatprep.subr.bf16.mxu0 %v3411
    %3453 = vmatpush1.bf16.msra.mxu0 %v3410
    %3454 = vmatprep.subr.bf16.mxu0 %v3407
    %3455 = vmatpush1.bf16.msra.mxu0 %v3406
    %3456 = vmatprep.subr.bf16.mxu0 %v3403
    %3457 = vmatpush1.bf16.msra.mxu0 %v3402
    %3458 = vmatprep.subr.bf16.mxu0 %v3399
    %3459 = vmatpush1.bf16.msra.mxu0 %v3398
    %3460 = vmatprep.subr.bf16.mxu0 %v3395
    %3461 = vmatpush1.bf16.msra.mxu0 %v3394
    %3462 = vmatprep.subr.bf16.mxu0 %v3391
    %3463 = vmatpush1.bf16.msra.mxu0 %v3390
    %3464 = vmatprep.subr.bf16.mxu0 %v3387
    %3465 = vmatpush1.bf16.msra.mxu0 %v3386
    %3466 = vmatprep.subr.bf16.mxu0 0
    %3467 = vmatpush2.bf16.msra.mxu0 0
    %3468 = vmatprep.subr.bf16.mxu0 0
    %3469 = vmatpush2.bf16.msra.mxu0 0
    %3470 = vmatprep.subr.bf16.mxu0 0
    %3471 = vmatpush2.bf16.msra.mxu0 0
    %3472 = vmatprep.subr.bf16.mxu0 0
    %3473 = vmatpush2.bf16.msra.mxu0 0
    %3474 = vmatprep.subr.bf16.mxu0 0
    %3475 = vmatpush2.bf16.msra.mxu0 0
    %3476 = vmatprep.subr.bf16.mxu0 0
    %3477 = vmatpush2.bf16.msra.mxu0 0
    %3478 = vmatprep.subr.bf16.mxu0 0
    %3479 = vmatpush2.bf16.msra.mxu0 0
    %3480 = vmatprep.subr.bf16.mxu0 0
    %3481 = vmatpush2.bf16.msra.mxu0 0
    %3482 = vmatprep.mubr.bf16.mxu0 0
    %3483 = vmatmul.mubr.bf16.gmra.mxu0 0
    %v3484 = vpop.f32.mrf.mxu0
    %v3485 = vadd.f32 0.0, %v3484
    %v3486 = vpop.f32.mrf.mxu0
    %v3487 = vadd.f32 0.0, %v3486
    %v3488 = vpop.f32.mrf.mxu0
    %v3489 = vpop.f32.mrf.mxu0
    %3490 = vdwg.mxu0
    %3491 = vmatprep.subr.bf16.mxu0 %v3417
    %3492 = vmatpush1.bf16.msra.mxu0 %v3416
    %3493 = vmatprep.subr.bf16.mxu0 %v3413
    %3494 = vmatpush1.bf16.msra.mxu0 %v3412
    %3495 = vmatprep.subr.bf16.mxu0 %v3409
    %3496 = vmatpush1.bf16.msra.mxu0 %v3408
    %3497 = vmatprep.subr.bf16.mxu0 %v3405
    %3498 = vmatpush1.bf16.msra.mxu0 %v3404
    %3499 = vmatprep.subr.bf16.mxu0 %v3401
    %3500 = vmatpush1.bf16.msra.mxu0 %v3400
    %3501 = vmatprep.subr.bf16.mxu0 %v3397
    %3502 = vmatpush1.bf16.msra.mxu0 %v3396
    %3503 = vmatprep.subr.bf16.mxu0 %v3393
    %3504 = vmatpush1.bf16.msra.mxu0 %v3392
    %3505 = vmatprep.subr.bf16.mxu0 %v3389
    %3506 = vmatpush1.bf16.msra.mxu0 %v3388
    %3507 = vmatprep.subr.bf16.mxu0 0
    %3508 = vmatpush2.bf16.msra.mxu0 0
    %3509 = vmatprep.subr.bf16.mxu0 0
    %3510 = vmatpush2.bf16.msra.mxu0 0
    %3511 = vmatprep.subr.bf16.mxu0 0
    %3512 = vmatpush2.bf16.msra.mxu0 0
    %3513 = vmatprep.subr.bf16.mxu0 0
    %3514 = vmatpush2.bf16.msra.mxu0 0
    %3515 = vmatprep.subr.bf16.mxu0 0
    %3516 = vmatpush2.bf16.msra.mxu0 0
    %3517 = vmatprep.subr.bf16.mxu0 0
    %3518 = vmatpush2.bf16.msra.mxu0 0
    %3519 = vmatprep.subr.bf16.mxu0 0
    %3520 = vmatpush2.bf16.msra.mxu0 0
    %3521 = vmatprep.subr.bf16.mxu0 0
    %3522 = vmatpush2.bf16.msra.mxu0 0
    %3523 = vmatprep.mubr.bf16.mxu0 0
    %3524 = vmatmul.mubr.bf16.gmra.mxu0 0
    %v3525 = vpop.f32.mrf.mxu0
    %v3526 = vadd.f32 0.0, %v3525
    %v3527 = vpop.f32.mrf.mxu0
    %v3528 = vadd.f32 0.0, %v3527
    %v3529 = vpop.f32.mrf.mxu0
    %v3530 = vpop.f32.mrf.mxu0
    %3531 = vdwg.mxu0
    %v3532 = vadd.f32 %v3254, %v3485
    %v3533 = vadd.f32 %v3255, %v3487
    %v3534 = vadd.f32 %v3256, %v3526
    %v3535 = vadd.f32 %v3257, %v3528
    %v3536 = vxor.u32 %v3532, 2147483648
    %v3537 = vxor.u32 %v3533, 2147483648
    %v3538 = vxor.u32 %v3534, 2147483648
    %v3539 = vmul.f32 %v3536, 1.442695
    %v3540 = vpow.pop %v3539
    %v3541 = vmul.f32 %v3537, 1.442695
    %v3542 = vpow.pop %v3541
    %v3543 = vmul.f32 %v3538, 1.442695
    %v3544 = vpow.pop %v3543
    %v3545 = vadd.f32 %v3540, 1.0
    %v3546 = vadd.f32 %v3542, 1.0
    %v3547 = vadd.f32 %v3544, 1.0
    %v3548 = vrcp.pop %v3545
    %v3549 = vmul.f32 1.0, %v3548
    %v3550 = vrcp.pop %v3546
    %v3551 = vmul.f32 1.0, %v3550
    %v3552 = vrcp.pop %v3547
    %v3553 = vmul.f32 1.0, %v3552
    %v3554 = vtanh.pop %v3535
    %v3555 = vmul.f32 %v3551, 0.0
    %v3556 = vmul.f32 %v3549, %v3554
    %v3557 = vadd.f32 %v3555, %v3556
    %v3558 = vtanh.pop %v3557
    %v3559 = vmul.f32 %v3553, %v3558
    %3560 = vst [vmem:[#allocation3] sm:$0xff] %v3559
    %v3561 = vld [vmem:[%s652] sm:$0xff]
    %v3562 = vld [vmem:[%s652 + $0x8] sm:$0xff]
    %v3563 = vld [vmem:[%s652 + $0x10] sm:$0xff]
    %v3564 = vld [vmem:[%s652 + $0x18] sm:$0xff]
    %v3565 = vpack.c.bf16 %v3559, %v3559
    %v3566 = vld [vmem:[#allocation8] sm:$0xff]
    %v3567 = vld [vmem:[#allocation8 + $0x8] sm:$0xff]
    %v3568 = vld [vmem:[#allocation8 + $0x10] sm:$0xff]
    %v3569 = vld [vmem:[#allocation8 + $0x18] sm:$0xff]
    %v3570 = vld [vmem:[#allocation8 + $0x20] sm:$0xff]
    %v3571 = vld [vmem:[#allocation8 + $0x28] sm:$0xff]
    %v3572 = vld [vmem:[#allocation8 + $0x30] sm:$0xff]
    %v3573 = vld [vmem:[#allocation8 + $0x38] sm:$0xff]
    %v3574 = vld [vmem:[#allocation8 + $0x40] sm:$0xff]
    %v3575 = vld [vmem:[#allocation8 + $0x48] sm:$0xff]
    %v3576 = vld [vmem:[#allocation8 + $0x50] sm:$0xff]
    %v3577 = vld [vmem:[#allocation8 + $0x58] sm:$0xff]
    %v3578 = vld [vmem:[#allocation8 + $0x60] sm:$0xff]
    %v3579 = vld [vmem:[#allocation8 + $0x68] sm:$0xff]
    %v3580 = vld [vmem:[#allocation8 + $0x70] sm:$0xff]
    %v3581 = vld [vmem:[#allocation8 + $0x78] sm:$0xff]
    %v3582 = vld [vmem:[#allocation8 + $0x80] sm:$0xff]
    %v3583 = vld [vmem:[#allocation8 + $0x88] sm:$0xff]
    %v3584 = vld [vmem:[#allocation8 + $0x90] sm:$0xff]
    %v3585 = vld [vmem:[#allocation8 + $0x98] sm:$0xff]
    %v3586 = vld [vmem:[#allocation8 + $0xa0] sm:$0xff]
    %v3587 = vld [vmem:[#allocation8 + $0xa8] sm:$0xff]
    %v3588 = vld [vmem:[#allocation8 + $0xb0] sm:$0xff]
    %v3589 = vld [vmem:[#allocation8 + $0xb8] sm:$0xff]
    %v3590 = vld [vmem:[#allocation8 + $0xc0] sm:$0xff]
    %v3591 = vld [vmem:[#allocation8 + $0xc8] sm:$0xff]
    %v3592 = vld [vmem:[#allocation8 + $0xd0] sm:$0xff]
    %v3593 = vld [vmem:[#allocation8 + $0xd8] sm:$0xff]
    %v3594 = vld [vmem:[#allocation8 + $0xe0] sm:$0xff]
    %v3595 = vld [vmem:[#allocation8 + $0xe8] sm:$0xff]
    %v3596 = vld [vmem:[#allocation8 + $0xf0] sm:$0xff]
    %v3597 = vld [vmem:[#allocation8 + $0xf8] sm:$0xff]
    %v3630 = vunpack.c.l.b16 %v3566
    %v3631 = vunpack.c.h.b16 %v3566
    %v3632 = vunpack.c.l.b16 %v3567
    %v3633 = vunpack.c.h.b16 %v3567
    %v3634 = vunpack.c.l.b16 %v3568
    %v3635 = vunpack.c.h.b16 %v3568
    %v3636 = vunpack.c.l.b16 %v3569
    %v3637 = vunpack.c.h.b16 %v3569
    %v3638 = vunpack.c.l.b16 %v3570
    %v3639 = vunpack.c.h.b16 %v3570
    %v3640 = vunpack.c.l.b16 %v3571
    %v3641 = vunpack.c.h.b16 %v3571
    %v3642 = vunpack.c.l.b16 %v3572
    %v3643 = vunpack.c.h.b16 %v3572
    %v3644 = vunpack.c.l.b16 %v3573
    %v3645 = vunpack.c.h.b16 %v3573
    %v3646 = vunpack.c.l.b16 %v3574
    %v3647 = vunpack.c.h.b16 %v3574
    %v3648 = vunpack.c.l.b16 %v3575
    %v3649 = vunpack.c.h.b16 %v3575
    %v3650 = vunpack.c.l.b16 %v3576
    %v3651 = vunpack.c.h.b16 %v3576
    %v3652 = vunpack.c.l.b16 %v3577
    %v3653 = vunpack.c.h.b16 %v3577
    %v3654 = vunpack.c.l.b16 %v3578
    %v3655 = vunpack.c.h.b16 %v3578
    %v3656 = vunpack.c.l.b16 %v3579
    %v3657 = vunpack.c.h.b16 %v3579
    %v3658 = vunpack.c.l.b16 %v3580
    %v3659 = vunpack.c.h.b16 %v3580
    %v3660 = vunpack.c.l.b16 %v3581
    %v3661 = vunpack.c.h.b16 %v3581
    %v3662 = vunpack.c.l.b16 %v3582
    %v3663 = vunpack.c.h.b16 %v3582
    %v3664 = vunpack.c.l.b16 %v3583
    %v3665 = vunpack.c.h.b16 %v3583
    %v3666 = vunpack.c.l.b16 %v3584
    %v3667 = vunpack.c.h.b16 %v3584
    %v3668 = vunpack.c.l.b16 %v3585
    %v3669 = vunpack.c.h.b16 %v3585
    %v3670 = vunpack.c.l.b16 %v3586
    %v3671 = vunpack.c.h.b16 %v3586
    %v3672 = vunpack.c.l.b16 %v3587
    %v3673 = vunpack.c.h.b16 %v3587
    %v3674 = vunpack.c.l.b16 %v3588
    %v3675 = vunpack.c.h.b16 %v3588
    %v3676 = vunpack.c.l.b16 %v3589
    %v3677 = vunpack.c.h.b16 %v3589
    %v3678 = vunpack.c.l.b16 %v3590
    %v3679 = vunpack.c.h.b16 %v3590
    %v3680 = vunpack.c.l.b16 %v3591
    %v3681 = vunpack.c.h.b16 %v3591
    %v3682 = vunpack.c.l.b16 %v3592
    %v3683 = vunpack.c.h.b16 %v3592
    %v3684 = vunpack.c.l.b16 %v3593
    %v3685 = vunpack.c.h.b16 %v3593
    %v3686 = vunpack.c.l.b16 %v3594
    %v3687 = vunpack.c.h.b16 %v3594
    %v3688 = vunpack.c.l.b16 %v3595
    %v3689 = vunpack.c.h.b16 %v3595
    %v3690 = vunpack.c.l.b16 %v3596
    %v3691 = vunpack.c.h.b16 %v3596
    %v3692 = vunpack.c.l.b16 %v3597
    %v3693 = vunpack.c.h.b16 %v3597
    %v3694 = vpack.c.b16 %v3634, %v3630
    %v3695 = vpack.c.b16 %v3635, %v3631
    %v3696 = vpack.c.b16 %v3636, %v3632
    %v3697 = vpack.c.b16 %v3637, %v3633
    %v3698 = vpack.c.b16 %v3642, %v3638
    %v3699 = vpack.c.b16 %v3643, %v3639
    %v3700 = vpack.c.b16 %v3644, %v3640
    %v3701 = vpack.c.b16 %v3645, %v3641
    %v3702 = vpack.c.b16 %v3650, %v3646
    %v3703 = vpack.c.b16 %v3651, %v3647
    %v3704 = vpack.c.b16 %v3652, %v3648
    %v3705 = vpack.c.b16 %v3653, %v3649
    %v3706 = vpack.c.b16 %v3658, %v3654
    %v3707 = vpack.c.b16 %v3659, %v3655
    %v3708 = vpack.c.b16 %v3660, %v3656
    %v3709 = vpack.c.b16 %v3661, %v3657
    %v3710 = vpack.c.b16 %v3666, %v3662
    %v3711 = vpack.c.b16 %v3667, %v3663
    %v3712 = vpack.c.b16 %v3668, %v3664
    %v3713 = vpack.c.b16 %v3669, %v3665
    %v3714 = vpack.c.b16 %v3674, %v3670
    %v3715 = vpack.c.b16 %v3675, %v3671
    %v3716 = vpack.c.b16 %v3676, %v3672
    %v3717 = vpack.c.b16 %v3677, %v3673
    %v3718 = vpack.c.b16 %v3682, %v3678
    %v3719 = vpack.c.b16 %v3683, %v3679
    %v3720 = vpack.c.b16 %v3684, %v3680
    %v3721 = vpack.c.b16 %v3685, %v3681
    %v3722 = vpack.c.b16 %v3690, %v3686
    %v3723 = vpack.c.b16 %v3691, %v3687
    %v3724 = vpack.c.b16 %v3692, %v3688
    %v3725 = vpack.c.b16 %v3693, %v3689
    %3758 = vmatprep.subr.bf16.mxu0 %v3723
    %3759 = vmatpush1.bf16.msra.mxu0 %v3722
    %3760 = vmatprep.subr.bf16.mxu0 %v3719
    %3761 = vmatpush1.bf16.msra.mxu0 %v3718
    %3762 = vmatprep.subr.bf16.mxu0 %v3715
    %3763 = vmatpush1.bf16.msra.mxu0 %v3714
    %3764 = vmatprep.subr.bf16.mxu0 %v3711
    %3765 = vmatpush1.bf16.msra.mxu0 %v3710
    %3766 = vmatprep.subr.bf16.mxu0 %v3707
    %3767 = vmatpush1.bf16.msra.mxu0 %v3706
    %3768 = vmatprep.subr.bf16.mxu0 %v3703
    %3769 = vmatpush1.bf16.msra.mxu0 %v3702
    %3770 = vmatprep.subr.bf16.mxu0 %v3699
    %3771 = vmatpush1.bf16.msra.mxu0 %v3698
    %3772 = vmatprep.subr.bf16.mxu0 %v3695
    %3773 = vmatpush1.bf16.msra.mxu0 %v3694
    %3774 = vmatprep.subr.bf16.mxu0 0
    %3775 = vmatpush2.bf16.msra.mxu0 0
    %3776 = vmatprep.subr.bf16.mxu0 0
    %3777 = vmatpush2.bf16.msra.mxu0 0
    %3778 = vmatprep.subr.bf16.mxu0 0
    %3779 = vmatpush2.bf16.msra.mxu0 0
    %3780 = vmatprep.subr.bf16.mxu0 0
    %3781 = vmatpush2.bf16.msra.mxu0 0
    %3782 = vmatprep.subr.bf16.mxu0 0
    %3783 = vmatpush2.bf16.msra.mxu0 0
    %3784 = vmatprep.subr.bf16.mxu0 0
    %3785 = vmatpush2.bf16.msra.mxu0 0
    %3786 = vmatprep.subr.bf16.mxu0 0
    %3787 = vmatpush2.bf16.msra.mxu0 0
    %3788 = vmatprep.subr.bf16.mxu0 0
    %3789 = vmatpush2.bf16.msra.mxu0 0
    %3790 = vmatprep.mubr.bf16.mxu0 0
    %3791 = vmatmul.mubr.bf16.gmra.mxu0 %v3565
    %v3792 = vpop.f32.mrf.mxu0
    %v3793 = vadd.f32 0.0, %v3792
    %v3794 = vpop.f32.mrf.mxu0
    %v3795 = vadd.f32 0.0, %v3794
    %v3796 = vpop.f32.mrf.mxu0
    %v3797 = vpop.f32.mrf.mxu0
    %3798 = vdwg.mxu0
    %3799 = vmatprep.subr.bf16.mxu0 %v3725
    %3800 = vmatpush1.bf16.msra.mxu0 %v3724
    %3801 = vmatprep.subr.bf16.mxu0 %v3721
    %3802 = vmatpush1.bf16.msra.mxu0 %v3720
    %3803 = vmatprep.subr.bf16.mxu0 %v3717
    %3804 = vmatpush1.bf16.msra.mxu0 %v3716
    %3805 = vmatprep.subr.bf16.mxu0 %v3713
    %3806 = vmatpush1.bf16.msra.mxu0 %v3712
    %3807 = vmatprep.subr.bf16.mxu0 %v3709
    %3808 = vmatpush1.bf16.msra.mxu0 %v3708
    %3809 = vmatprep.subr.bf16.mxu0 %v3705
    %3810 = vmatpush1.bf16.msra.mxu0 %v3704
    %3811 = vmatprep.subr.bf16.mxu0 %v3701
    %3812 = vmatpush1.bf16.msra.mxu0 %v3700
    %3813 = vmatprep.subr.bf16.mxu0 %v3697
    %3814 = vmatpush1.bf16.msra.mxu0 %v3696
    %3815 = vmatprep.subr.bf16.mxu0 0
    %3816 = vmatpush2.bf16.msra.mxu0 0
    %3817 = vmatprep.subr.bf16.mxu0 0
    %3818 = vmatpush2.bf16.msra.mxu0 0
    %3819 = vmatprep.subr.bf16.mxu0 0
    %3820 = vmatpush2.bf16.msra.mxu0 0
    %3821 = vmatprep.subr.bf16.mxu0 0
    %3822 = vmatpush2.bf16.msra.mxu0 0
    %3823 = vmatprep.subr.bf16.mxu0 0
    %3824 = vmatpush2.bf16.msra.mxu0 0
    %3825 = vmatprep.subr.bf16.mxu0 0
    %3826 = vmatpush2.bf16.msra.mxu0 0
    %3827 = vmatprep.subr.bf16.mxu0 0
    %3828 = vmatpush2.bf16.msra.mxu0 0
    %3829 = vmatprep.subr.bf16.mxu0 0
    %3830 = vmatpush2.bf16.msra.mxu0 0
    %3831 = vmatprep.mubr.bf16.mxu0 0
    %3832 = vmatmul.mubr.bf16.gmra.mxu0 %v3565
    %v3833 = vpop.f32.mrf.mxu0
    %v3834 = vadd.f32 0.0, %v3833
    %v3835 = vpop.f32.mrf.mxu0
    %v3836 = vadd.f32 0.0, %v3835
    %v3837 = vpop.f32.mrf.mxu0
    %v3838 = vpop.f32.mrf.mxu0
    %3839 = vdwg.mxu0
    %v3840 = vadd.f32 %v3561, %v3793
    %v3841 = vadd.f32 %v3562, %v3795
    %v3842 = vadd.f32 %v3563, %v3834
    %v3843 = vadd.f32 %v3564, %v3836
    %v3844 = vxor.u32 %v3840, 2147483648
    %v3845 = vxor.u32 %v3841, 2147483648
    %v3846 = vxor.u32 %v3842, 2147483648
    %v3847 = vmul.f32 %v3844, 1.442695
    %v3848 = vpow.pop %v3847
    %v3849 = vmul.f32 %v3845, 1.442695
    %v3850 = vpow.pop %v3849
    %v3851 = vmul.f32 %v3846, 1.442695
    %v3852 = vpow.pop %v3851
    %v3853 = vadd.f32 %v3848, 1.0
    %v3854 = vadd.f32 %v3850, 1.0
    %v3855 = vadd.f32 %v3852, 1.0
    %v3856 = vrcp.pop %v3853
    %v3857 = vmul.f32 1.0, %v3856
    %v3858 = vrcp.pop %v3854
    %v3859 = vmul.f32 1.0, %v3858
    %v3860 = vrcp.pop %v3855
    %v3861 = vmul.f32 1.0, %v3860
    %v3862 = vtanh.pop %v3843
    %v3863 = vmul.f32 %v3859, %v3557
    %v3864 = vmul.f32 %v3857, %v3862
    %v3865 = vadd.f32 %v3863, %v3864
    %v3866 = vtanh.pop %v3865
    %v3867 = vmul.f32 %v3861, %v3866
    %3868 = vst [vmem:[%s960] sm:$0xff] %v3867
    %v3869 = vld [vmem:[%s962] sm:$0xff]
    %v3870 = vld [vmem:[%s962 + $0x8] sm:$0xff]
    %v3871 = vld [vmem:[%s962 + $0x10] sm:$0xff]
    %v3872 = vld [vmem:[%s962 + $0x18] sm:$0xff]
    %v3873 = vpack.c.bf16 %v3867, %v3867
    %v3874 = vld [vmem:[#allocation8] sm:$0xff]
    %v3875 = vld [vmem:[#allocation8 + $0x8] sm:$0xff]
    %v3876 = vld [vmem:[#allocation8 + $0x10] sm:$0xff]
    %v3877 = vld [vmem:[#allocation8 + $0x18] sm:$0xff]
    %v3878 = vld [vmem:[#allocation8 + $0x20] sm:$0xff]
    %v3879 = vld [vmem:[#allocation8 + $0x28] sm:$0xff]
    %v3880 = vld [vmem:[#allocation8 + $0x30] sm:$0xff]
    %v3881 = vld [vmem:[#allocation8 + $0x38] sm:$0xff]
    %v3882 = vld [vmem:[#allocation8 + $0x40] sm:$0xff]
    %v3883 = vld [vmem:[#allocation8 + $0x48] sm:$0xff]
    %v3884 = vld [vmem:[#allocation8 + $0x50] sm:$0xff]
    %v3885 = vld [vmem:[#allocation8 + $0x58] sm:$0xff]
    %v3886 = vld [vmem:[#allocation8 + $0x60] sm:$0xff]
    %v3887 = vld [vmem:[#allocation8 + $0x68] sm:$0xff]
    %v3888 = vld [vmem:[#allocation8 + $0x70] sm:$0xff]
    %v3889 = vld [vmem:[#allocation8 + $0x78] sm:$0xff]
    %v3890 = vld [vmem:[#allocation8 + $0x80] sm:$0xff]
    %v3891 = vld [vmem:[#allocation8 + $0x88] sm:$0xff]
    %v3892 = vld [vmem:[#allocation8 + $0x90] sm:$0xff]
    %v3893 = vld [vmem:[#allocation8 + $0x98] sm:$0xff]
    %v3894 = vld [vmem:[#allocation8 + $0xa0] sm:$0xff]
    %v3895 = vld [vmem:[#allocation8 + $0xa8] sm:$0xff]
    %v3896 = vld [vmem:[#allocation8 + $0xb0] sm:$0xff]
    %v3897 = vld [vmem:[#allocation8 + $0xb8] sm:$0xff]
    %v3898 = vld [vmem:[#allocation8 + $0xc0] sm:$0xff]
    %v3899 = vld [vmem:[#allocation8 + $0xc8] sm:$0xff]
    %v3900 = vld [vmem:[#allocation8 + $0xd0] sm:$0xff]
    %v3901 = vld [vmem:[#allocation8 + $0xd8] sm:$0xff]
    %v3902 = vld [vmem:[#allocation8 + $0xe0] sm:$0xff]
    %v3903 = vld [vmem:[#allocation8 + $0xe8] sm:$0xff]
    %v3904 = vld [vmem:[#allocation8 + $0xf0] sm:$0xff]
    %v3905 = vld [vmem:[#allocation8 + $0xf8] sm:$0xff]
    %v3938 = vunpack.c.l.b16 %v3874
    %v3939 = vunpack.c.h.b16 %v3874
    %v3940 = vunpack.c.l.b16 %v3875
    %v3941 = vunpack.c.h.b16 %v3875
    %v3942 = vunpack.c.l.b16 %v3876
    %v3943 = vunpack.c.h.b16 %v3876
    %v3944 = vunpack.c.l.b16 %v3877
    %v3945 = vunpack.c.h.b16 %v3877
    %v3946 = vunpack.c.l.b16 %v3878
    %v3947 = vunpack.c.h.b16 %v3878
    %v3948 = vunpack.c.l.b16 %v3879
    %v3949 = vunpack.c.h.b16 %v3879
    %v3950 = vunpack.c.l.b16 %v3880
    %v3951 = vunpack.c.h.b16 %v3880
    %v3952 = vunpack.c.l.b16 %v3881
    %v3953 = vunpack.c.h.b16 %v3881
    %v3954 = vunpack.c.l.b16 %v3882
    %v3955 = vunpack.c.h.b16 %v3882
    %v3956 = vunpack.c.l.b16 %v3883
    %v3957 = vunpack.c.h.b16 %v3883
    %v3958 = vunpack.c.l.b16 %v3884
    %v3959 = vunpack.c.h.b16 %v3884
    %v3960 = vunpack.c.l.b16 %v3885
    %v3961 = vunpack.c.h.b16 %v3885
    %v3962 = vunpack.c.l.b16 %v3886
    %v3963 = vunpack.c.h.b16 %v3886
    %v3964 = vunpack.c.l.b16 %v3887
    %v3965 = vunpack.c.h.b16 %v3887
    %v3966 = vunpack.c.l.b16 %v3888
    %v3967 = vunpack.c.h.b16 %v3888
    %v3968 = vunpack.c.l.b16 %v3889
    %v3969 = vunpack.c.h.b16 %v3889
    %v3970 = vunpack.c.l.b16 %v3890
    %v3971 = vunpack.c.h.b16 %v3890
    %v3972 = vunpack.c.l.b16 %v3891
    %v3973 = vunpack.c.h.b16 %v3891
    %v3974 = vunpack.c.l.b16 %v3892
    %v3975 = vunpack.c.h.b16 %v3892
    %v3976 = vunpack.c.l.b16 %v3893
    %v3977 = vunpack.c.h.b16 %v3893
    %v3978 = vunpack.c.l.b16 %v3894
    %v3979 = vunpack.c.h.b16 %v3894
    %v3980 = vunpack.c.l.b16 %v3895
    %v3981 = vunpack.c.h.b16 %v3895
    %v3982 = vunpack.c.l.b16 %v3896
    %v3983 = vunpack.c.h.b16 %v3896
    %v3984 = vunpack.c.l.b16 %v3897
    %v3985 = vunpack.c.h.b16 %v3897
    %v3986 = vunpack.c.l.b16 %v3898
    %v3987 = vunpack.c.h.b16 %v3898
    %v3988 = vunpack.c.l.b16 %v3899
    %v3989 = vunpack.c.h.b16 %v3899
    %v3990 = vunpack.c.l.b16 %v3900
    %v3991 = vunpack.c.h.b16 %v3900
    %v3992 = vunpack.c.l.b16 %v3901
    %v3993 = vunpack.c.h.b16 %v3901
    %v3994 = vunpack.c.l.b16 %v3902
    %v3995 = vunpack.c.h.b16 %v3902
    %v3996 = vunpack.c.l.b16 %v3903
    %v3997 = vunpack.c.h.b16 %v3903
    %v3998 = vunpack.c.l.b16 %v3904
    %v3999 = vunpack.c.h.b16 %v3904
    %v4000 = vunpack.c.l.b16 %v3905
    %v4001 = vunpack.c.h.b16 %v3905
    %v4002 = vpack.c.b16 %v3942, %v3938
    %v4003 = vpack.c.b16 %v3943, %v3939
    %v4004 = vpack.c.b16 %v3944, %v3940
    %v4005 = vpack.c.b16 %v3945, %v3941
    %v4006 = vpack.c.b16 %v3950, %v3946
    %v4007 = vpack.c.b16 %v3951, %v3947
    %v4008 = vpack.c.b16 %v3952, %v3948
    %v4009 = vpack.c.b16 %v3953, %v3949
    %v4010 = vpack.c.b16 %v3958, %v3954
    %v4011 = vpack.c.b16 %v3959, %v3955
    %v4012 = vpack.c.b16 %v3960, %v3956
    %v4013 = vpack.c.b16 %v3961, %v3957
    %v4014 = vpack.c.b16 %v3966, %v3962
    %v4015 = vpack.c.b16 %v3967, %v3963
    %v4016 = vpack.c.b16 %v3968, %v3964
    %v4017 = vpack.c.b16 %v3969, %v3965
    %v4018 = vpack.c.b16 %v3974, %v3970
    %v4019 = vpack.c.b16 %v3975, %v3971
    %v4020 = vpack.c.b16 %v3976, %v3972
    %v4021 = vpack.c.b16 %v3977, %v3973
    %v4022 = vpack.c.b16 %v3982, %v3978
    %v4023 = vpack.c.b16 %v3983, %v3979
    %v4024 = vpack.c.b16 %v3984, %v3980
    %v4025 = vpack.c.b16 %v3985, %v3981
    %v4026 = vpack.c.b16 %v3990, %v3986
    %v4027 = vpack.c.b16 %v3991, %v3987
    %v4028 = vpack.c.b16 %v3992, %v3988
    %v4029 = vpack.c.b16 %v3993, %v3989
    %v4030 = vpack.c.b16 %v3998, %v3994
    %v4031 = vpack.c.b16 %v3999, %v3995
    %v4032 = vpack.c.b16 %v4000, %v3996
    %v4033 = vpack.c.b16 %v4001, %v3997
    %4066 = vmatprep.subr.bf16.mxu0 %v4031
    %4067 = vmatpush1.bf16.msra.mxu0 %v4030
    %4068 = vmatprep.subr.bf16.mxu0 %v4027
    %4069 = vmatpush1.bf16.msra.mxu0 %v4026
    %4070 = vmatprep.subr.bf16.mxu0 %v4023
    %4071 = vmatpush1.bf16.msra.mxu0 %v4022
    %4072 = vmatprep.subr.bf16.mxu0 %v4019
    %4073 = vmatpush1.bf16.msra.mxu0 %v4018
    %4074 = vmatprep.subr.bf16.mxu0 %v4015
    %4075 = vmatpush1.bf16.msra.mxu0 %v4014
    %4076 = vmatprep.subr.bf16.mxu0 %v4011
    %4077 = vmatpush1.bf16.msra.mxu0 %v4010
    %4078 = vmatprep.subr.bf16.mxu0 %v4007
    %4079 = vmatpush1.bf16.msra.mxu0 %v4006
    %4080 = vmatprep.subr.bf16.mxu0 %v4003
    %4081 = vmatpush1.bf16.msra.mxu0 %v4002
    %4082 = vmatprep.subr.bf16.mxu0 0
    %4083 = vmatpush2.bf16.msra.mxu0 0
    %4084 = vmatprep.subr.bf16.mxu0 0
    %4085 = vmatpush2.bf16.msra.mxu0 0
    %4086 = vmatprep.subr.bf16.mxu0 0
    %4087 = vmatpush2.bf16.msra.mxu0 0
    %4088 = vmatprep.subr.bf16.mxu0 0
    %4089 = vmatpush2.bf16.msra.mxu0 0
    %4090 = vmatprep.subr.bf16.mxu0 0
    %4091 = vmatpush2.bf16.msra.mxu0 0
    %4092 = vmatprep.subr.bf16.mxu0 0
    %4093 = vmatpush2.bf16.msra.mxu0 0
    %4094 = vmatprep.subr.bf16.mxu0 0
    %4095 = vmatpush2.bf16.msra.mxu0 0
    %4096 = vmatprep.subr.bf16.mxu0 0
    %4097 = vmatpush2.bf16.msra.mxu0 0
    %4098 = vmatprep.mubr.bf16.mxu0 0
    %4099 = vmatmul.mubr.bf16.gmra.mxu0 %v3873
    %v4100 = vpop.f32.mrf.mxu0
    %v4101 = vadd.f32 0.0, %v4100
    %v4102 = vpop.f32.mrf.mxu0
    %v4103 = vadd.f32 0.0, %v4102
    %v4104 = vpop.f32.mrf.mxu0
    %v4105 = vpop.f32.mrf.mxu0
    %4106 = vdwg.mxu0
    %4107 = vmatprep.subr.bf16.mxu0 %v4033
    %4108 = vmatpush1.bf16.msra.mxu0 %v4032
    %4109 = vmatprep.subr.bf16.mxu0 %v4029
    %4110 = vmatpush1.bf16.msra.mxu0 %v4028
    %4111 = vmatprep.subr.bf16.mxu0 %v4025
    %4112 = vmatpush1.bf16.msra.mxu0 %v4024
    %4113 = vmatprep.subr.bf16.mxu0 %v4021
    %4114 = vmatpush1.bf16.msra.mxu0 %v4020
    %4115 = vmatprep.subr.bf16.mxu0 %v4017
    %4116 = vmatpush1.bf16.msra.mxu0 %v4016
    %4117 = vmatprep.subr.bf16.mxu0 %v4013
    %4118 = vmatpush1.bf16.msra.mxu0 %v4012
    %4119 = vmatprep.subr.bf16.mxu0 %v4009
    %4120 = vmatpush1.bf16.msra.mxu0 %v4008
    %4121 = vmatprep.subr.bf16.mxu0 %v4005
    %4122 = vmatpush1.bf16.msra.mxu0 %v4004
    %4123 = vmatprep.subr.bf16.mxu0 0
    %4124 = vmatpush2.bf16.msra.mxu0 0
    %4125 = vmatprep.subr.bf16.mxu0 0
    %4126 = vmatpush2.bf16.msra.mxu0 0
    %4127 = vmatprep.subr.bf16.mxu0 0
    %4128 = vmatpush2.bf16.msra.mxu0 0
    %4129 = vmatprep.subr.bf16.mxu0 0
    %4130 = vmatpush2.bf16.msra.mxu0 0
    %4131 = vmatprep.subr.bf16.mxu0 0
    %4132 = vmatpush2.bf16.msra.mxu0 0
    %4133 = vmatprep.subr.bf16.mxu0 0
    %4134 = vmatpush2.bf16.msra.mxu0 0
    %4135 = vmatprep.subr.bf16.mxu0 0
    %4136 = vmatpush2.bf16.msra.mxu0 0
    %4137 = vmatprep.subr.bf16.mxu0 0
    %4138 = vmatpush2.bf16.msra.mxu0 0
    %4139 = vmatprep.mubr.bf16.mxu0 0
    %4140 = vmatmul.mubr.bf16.gmra.mxu0 %v3873
    %v4141 = vpop.f32.mrf.mxu0
    %v4142 = vadd.f32 0.0, %v4141
    %v4143 = vpop.f32.mrf.mxu0
    %v4144 = vadd.f32 0.0, %v4143
    %v4145 = vpop.f32.mrf.mxu0
    %v4146 = vpop.f32.mrf.mxu0
    %4147 = vdwg.mxu0
    %v4148 = vadd.f32 %v3869, %v4101
    %v4149 = vadd.f32 %v3870, %v4103
    %v4150 = vadd.f32 %v3871, %v4142
    %v4151 = vadd.f32 %v3872, %v4144
    %v4152 = vxor.u32 %v4148, 2147483648
    %v4153 = vxor.u32 %v4149, 2147483648
    %v4154 = vxor.u32 %v4150, 2147483648
    %v4155 = vmul.f32 %v4152, 1.442695
    %v4156 = vpow.pop %v4155
    %v4157 = vmul.f32 %v4153, 1.442695
    %v4158 = vpow.pop %v4157
    %v4159 = vmul.f32 %v4154, 1.442695
    %v4160 = vpow.pop %v4159
    %v4161 = vadd.f32 %v4156, 1.0
    %v4162 = vadd.f32 %v4158, 1.0
    %v4163 = vadd.f32 %v4160, 1.0
    %v4164 = vrcp.pop %v4161
    %v4165 = vmul.f32 1.0, %v4164
    %v4166 = vrcp.pop %v4162
    %v4167 = vmul.f32 1.0, %v4166
    %v4168 = vrcp.pop %v4163
    %v4169 = vmul.f32 1.0, %v4168
    %v4170 = vtanh.pop %v4151
    %v4171 = vmul.f32 %v4167, %v3865
    %v4172 = vmul.f32 %v4165, %v4170
    %v4173 = vadd.f32 %v4171, %v4172
    %v4174 = vtanh.pop %v4173
    %v4175 = vmul.f32 %v4169, %v4174
    %4176 = vst [vmem:[%s1270] sm:$0xff] %v4175
    %v4177 = vld [vmem:[%s1272] sm:$0xff]
    %v4178 = vld [vmem:[%s1272 + $0x8] sm:$0xff]
    %v4179 = vld [vmem:[%s1272 + $0x10] sm:$0xff]
    %v4180 = vld [vmem:[%s1272 + $0x18] sm:$0xff]
    %v4181 = vpack.c.bf16 %v4175, %v4175
    %v4182 = vld [vmem:[#allocation8] sm:$0xff]
    %v4183 = vld [vmem:[#allocation8 + $0x8] sm:$0xff]
    %v4184 = vld [vmem:[#allocation8 + $0x10] sm:$0xff]
    %v4185 = vld [vmem:[#allocation8 + $0x18] sm:$0xff]
    %v4186 = vld [vmem:[#allocation8 + $0x20] sm:$0xff]
    %v4187 = vld [vmem:[#allocation8 + $0x28] sm:$0xff]
    %v4188 = vld [vmem:[#allocation8 + $0x30] sm:$0xff]
    %v4189 = vld [vmem:[#allocation8 + $0x38] sm:$0xff]
    %v4190 = vld [vmem:[#allocation8 + $0x40] sm:$0xff]
    %v4191 = vld [vmem:[#allocation8 + $0x48] sm:$0xff]
    %v4192 = vld [vmem:[#allocation8 + $0x50] sm:$0xff]
    %v4193 = vld [vmem:[#allocation8 + $0x58] sm:$0xff]
    %v4194 = vld [vmem:[#allocation8 + $0x60] sm:$0xff]
    %v4195 = vld [vmem:[#allocation8 + $0x68] sm:$0xff]
    %v4196 = vld [vmem:[#allocation8 + $0x70] sm:$0xff]
    %v4197 = vld [vmem:[#allocation8 + $0x78] sm:$0xff]
    %v4198 = vld [vmem:[#allocation8 + $0x80] sm:$0xff]
    %v4199 = vld [vmem:[#allocation8 + $0x88] sm:$0xff]
    %v4200 = vld [vmem:[#allocation8 + $0x90] sm:$0xff]
    %v4201 = vld [vmem:[#allocation8 + $0x98] sm:$0xff]
    %v4202 = vld [vmem:[#allocation8 + $0xa0] sm:$0xff]
    %v4203 = vld [vmem:[#allocation8 + $0xa8] sm:$0xff]
    %v4204 = vld [vmem:[#allocation8 + $0xb0] sm:$0xff]
    %v4205 = vld [vmem:[#allocation8 + $0xb8] sm:$0xff]
    %v4206 = vld [vmem:[#allocation8 + $0xc0] sm:$0xff]
    %v4207 = vld [vmem:[#allocation8 + $0xc8] sm:$0xff]
    %v4208 = vld [vmem:[#allocation8 + $0xd0] sm:$0xff]
    %v4209 = vld [vmem:[#allocation8 + $0xd8] sm:$0xff]
    %v4210 = vld [vmem:[#allocation8 + $0xe0] sm:$0xff]
    %v4211 = vld [vmem:[#allocation8 + $0xe8] sm:$0xff]
    %v4212 = vld [vmem:[#allocation8 + $0xf0] sm:$0xff]
    %v4213 = vld [vmem:[#allocation8 + $0xf8] sm:$0xff]
    %v4246 = vunpack.c.l.b16 %v4182
    %v4247 = vunpack.c.h.b16 %v4182
    %v4248 = vunpack.c.l.b16 %v4183
    %v4249 = vunpack.c.h.b16 %v4183
    %v4250 = vunpack.c.l.b16 %v4184
    %v4251 = vunpack.c.h.b16 %v4184
    %v4252 = vunpack.c.l.b16 %v4185
    %v4253 = vunpack.c.h.b16 %v4185
    %v4254 = vunpack.c.l.b16 %v4186
    %v4255 = vunpack.c.h.b16 %v4186
    %v4256 = vunpack.c.l.b16 %v4187
    %v4257 = vunpack.c.h.b16 %v4187
    %v4258 = vunpack.c.l.b16 %v4188
    %v4259 = vunpack.c.h.b16 %v4188
    %v4260 = vunpack.c.l.b16 %v4189
    %v4261 = vunpack.c.h.b16 %v4189
    %v4262 = vunpack.c.l.b16 %v4190
    %v4263 = vunpack.c.h.b16 %v4190
    %v4264 = vunpack.c.l.b16 %v4191
    %v4265 = vunpack.c.h.b16 %v4191
    %v4266 = vunpack.c.l.b16 %v4192
    %v4267 = vunpack.c.h.b16 %v4192
    %v4268 = vunpack.c.l.b16 %v4193
    %v4269 = vunpack.c.h.b16 %v4193
    %v4270 = vunpack.c.l.b16 %v4194
    %v4271 = vunpack.c.h.b16 %v4194
    %v4272 = vunpack.c.l.b16 %v4195
    %v4273 = vunpack.c.h.b16 %v4195
    %v4274 = vunpack.c.l.b16 %v4196
    %v4275 = vunpack.c.h.b16 %v4196
    %v4276 = vunpack.c.l.b16 %v4197
    %v4277 = vunpack.c.h.b16 %v4197
    %v4278 = vunpack.c.l.b16 %v4198
    %v4279 = vunpack.c.h.b16 %v4198
    %v4280 = vunpack.c.l.b16 %v4199
    %v4281 = vunpack.c.h.b16 %v4199
    %v4282 = vunpack.c.l.b16 %v4200
    %v4283 = vunpack.c.h.b16 %v4200
    %v4284 = vunpack.c.l.b16 %v4201
    %v4285 = vunpack.c.h.b16 %v4201
    %v4286 = vunpack.c.l.b16 %v4202
    %v4287 = vunpack.c.h.b16 %v4202
    %v4288 = vunpack.c.l.b16 %v4203
    %v4289 = vunpack.c.h.b16 %v4203
    %v4290 = vunpack.c.l.b16 %v4204
    %v4291 = vunpack.c.h.b16 %v4204
    %v4292 = vunpack.c.l.b16 %v4205
    %v4293 = vunpack.c.h.b16 %v4205
    %v4294 = vunpack.c.l.b16 %v4206
    %v4295 = vunpack.c.h.b16 %v4206
    %v4296 = vunpack.c.l.b16 %v4207
    %v4297 = vunpack.c.h.b16 %v4207
    %v4298 = vunpack.c.l.b16 %v4208
    %v4299 = vunpack.c.h.b16 %v4208
    %v4300 = vunpack.c.l.b16 %v4209
    %v4301 = vunpack.c.h.b16 %v4209
    %v4302 = vunpack.c.l.b16 %v4210
    %v4303 = vunpack.c.h.b16 %v4210
    %v4304 = vunpack.c.l.b16 %v4211
    %v4305 = vunpack.c.h.b16 %v4211
    %v4306 = vunpack.c.l.b16 %v4212
    %v4307 = vunpack.c.h.b16 %v4212
    %v4308 = vunpack.c.l.b16 %v4213
    %v4309 = vunpack.c.h.b16 %v4213
    %v4310 = vpack.c.b16 %v4250, %v4246
    %v4311 = vpack.c.b16 %v4251, %v4247
    %v4312 = vpack.c.b16 %v4252, %v4248
    %v4313 = vpack.c.b16 %v4253, %v4249
    %v4314 = vpack.c.b16 %v4258, %v4254
    %v4315 = vpack.c.b16 %v4259, %v4255
    %v4316 = vpack.c.b16 %v4260, %v4256
    %v4317 = vpack.c.b16 %v4261, %v4257
    %v4318 = vpack.c.b16 %v4266, %v4262
    %v4319 = vpack.c.b16 %v4267, %v4263
    %v4320 = vpack.c.b16 %v4268, %v4264
    %v4321 = vpack.c.b16 %v4269, %v4265
    %v4322 = vpack.c.b16 %v4274, %v4270
    %v4323 = vpack.c.b16 %v4275, %v4271
    %v4324 = vpack.c.b16 %v4276, %v4272
    %v4325 = vpack.c.b16 %v4277, %v4273
    %v4326 = vpack.c.b16 %v4282, %v4278
    %v4327 = vpack.c.b16 %v4283, %v4279
    %v4328 = vpack.c.b16 %v4284, %v4280
    %v4329 = vpack.c.b16 %v4285, %v4281
    %v4330 = vpack.c.b16 %v4290, %v4286
    %v4331 = vpack.c.b16 %v4291, %v4287
    %v4332 = vpack.c.b16 %v4292, %v4288
    %v4333 = vpack.c.b16 %v4293, %v4289
    %v4334 = vpack.c.b16 %v4298, %v4294
    %v4335 = vpack.c.b16 %v4299, %v4295
    %v4336 = vpack.c.b16 %v4300, %v4296
    %v4337 = vpack.c.b16 %v4301, %v4297
    %v4338 = vpack.c.b16 %v4306, %v4302
    %v4339 = vpack.c.b16 %v4307, %v4303
    %v4340 = vpack.c.b16 %v4308, %v4304
    %v4341 = vpack.c.b16 %v4309, %v4305
    %4374 = vmatprep.subr.bf16.mxu0 %v4339
    %4375 = vmatpush1.bf16.msra.mxu0 %v4338
    %4376 = vmatprep.subr.bf16.mxu0 %v4335
    %4377 = vmatpush1.bf16.msra.mxu0 %v4334
    %4378 = vmatprep.subr.bf16.mxu0 %v4331
    %4379 = vmatpush1.bf16.msra.mxu0 %v4330
    %4380 = vmatprep.subr.bf16.mxu0 %v4327
    %4381 = vmatpush1.bf16.msra.mxu0 %v4326
    %4382 = vmatprep.subr.bf16.mxu0 %v4323
    %4383 = vmatpush1.bf16.msra.mxu0 %v4322
    %4384 = vmatprep.subr.bf16.mxu0 %v4319
    %4385 = vmatpush1.bf16.msra.mxu0 %v4318
    %4386 = vmatprep.subr.bf16.mxu0 %v4315
    %4387 = vmatpush1.bf16.msra.mxu0 %v4314
    %4388 = vmatprep.subr.bf16.mxu0 %v4311
    %4389 = vmatpush1.bf16.msra.mxu0 %v4310
    %4390 = vmatprep.subr.bf16.mxu0 0
    %4391 = vmatpush2.bf16.msra.mxu0 0
    %4392 = vmatprep.subr.bf16.mxu0 0
    %4393 = vmatpush2.bf16.msra.mxu0 0
    %4394 = vmatprep.subr.bf16.mxu0 0
    %4395 = vmatpush2.bf16.msra.mxu0 0
    %4396 = vmatprep.subr.bf16.mxu0 0
    %4397 = vmatpush2.bf16.msra.mxu0 0
    %4398 = vmatprep.subr.bf16.mxu0 0
    %4399 = vmatpush2.bf16.msra.mxu0 0
    %4400 = vmatprep.subr.bf16.mxu0 0
    %4401 = vmatpush2.bf16.msra.mxu0 0
    %4402 = vmatprep.subr.bf16.mxu0 0
    %4403 = vmatpush2.bf16.msra.mxu0 0
    %4404 = vmatprep.subr.bf16.mxu0 0
    %4405 = vmatpush2.bf16.msra.mxu0 0
    %4406 = vmatprep.mubr.bf16.mxu0 0
    %4407 = vmatmul.mubr.bf16.gmra.mxu0 %v4181
    %v4408 = vpop.f32.mrf.mxu0
    %v4409 = vadd.f32 0.0, %v4408
    %v4410 = vpop.f32.mrf.mxu0
    %v4411 = vadd.f32 0.0, %v4410
    %v4412 = vpop.f32.mrf.mxu0
    %v4413 = vpop.f32.mrf.mxu0
    %4414 = vdwg.mxu0
    %4415 = vmatprep.subr.bf16.mxu0 %v4341
    %4416 = vmatpush1.bf16.msra.mxu0 %v4340
    %4417 = vmatprep.subr.bf16.mxu0 %v4337
    %4418 = vmatpush1.bf16.msra.mxu0 %v4336
    %4419 = vmatprep.subr.bf16.mxu0 %v4333
    %4420 = vmatpush1.bf16.msra.mxu0 %v4332
    %4421 = vmatprep.subr.bf16.mxu0 %v4329
    %4422 = vmatpush1.bf16.msra.mxu0 %v4328
    %4423 = vmatprep.subr.bf16.mxu0 %v4325
    %4424 = vmatpush1.bf16.msra.mxu0 %v4324
    %4425 = vmatprep.subr.bf16.mxu0 %v4321
    %4426 = vmatpush1.bf16.msra.mxu0 %v4320
    %4427 = vmatprep.subr.bf16.mxu0 %v4317
    %4428 = vmatpush1.bf16.msra.mxu0 %v4316
    %4429 = vmatprep.subr.bf16.mxu0 %v4313
    %4430 = vmatpush1.bf16.msra.mxu0 %v4312
    %4431 = vmatprep.subr.bf16.mxu0 0
    %4432 = vmatpush2.bf16.msra.mxu0 0
    %4433 = vmatprep.subr.bf16.mxu0 0
    %4434 = vmatpush2.bf16.msra.mxu0 0
    %4435 = vmatprep.subr.bf16.mxu0 0
    %4436 = vmatpush2.bf16.msra.mxu0 0
    %4437 = vmatprep.subr.bf16.mxu0 0
    %4438 = vmatpush2.bf16.msra.mxu0 0
    %4439 = vmatprep.subr.bf16.mxu0 0
    %4440 = vmatpush2.bf16.msra.mxu0 0
    %4441 = vmatprep.subr.bf16.mxu0 0
    %4442 = vmatpush2.bf16.msra.mxu0 0
    %4443 = vmatprep.subr.bf16.mxu0 0
    %4444 = vmatpush2.bf16.msra.mxu0 0
    %4445 = vmatprep.subr.bf16.mxu0 0
    %4446 = vmatpush2.bf16.msra.mxu0 0
    %4447 = vmatprep.mubr.bf16.mxu0 0
    %4448 = vmatmul.mubr.bf16.gmra.mxu0 %v4181
    %v4449 = vpop.f32.mrf.mxu0
    %v4450 = vadd.f32 0.0, %v4449
    %v4451 = vpop.f32.mrf.mxu0
    %v4452 = vadd.f32 0.0, %v4451
    %v4453 = vpop.f32.mrf.mxu0
    %v4454 = vpop.f32.mrf.mxu0
    %4455 = vdwg.mxu0
    %v4456 = vadd.f32 %v4177, %v4409
    %v4457 = vadd.f32 %v4178, %v4411
    %v4458 = vadd.f32 %v4179, %v4450
    %v4459 = vadd.f32 %v4180, %v4452
    %v4460 = vxor.u32 %v4456, 2147483648
    %v4461 = vxor.u32 %v4457, 2147483648
    %v4462 = vxor.u32 %v4458, 2147483648
    %v4463 = vmul.f32 %v4460, 1.442695
    %v4464 = vpow.pop %v4463
    %v4465 = vmul.f32 %v4461, 1.442695
    %v4466 = vpow.pop %v4465
    %v4467 = vmul.f32 %v4462, 1.442695
    %v4468 = vpow.pop %v4467
    %v4469 = vadd.f32 %v4464, 1.0
    %v4470 = vadd.f32 %v4466, 1.0
    %v4471 = vadd.f32 %v4468, 1.0
    %v4472 = vrcp.pop %v4469
    %v4473 = vmul.f32 1.0, %v4472
    %v4474 = vrcp.pop %v4470
    %v4475 = vmul.f32 1.0, %v4474
    %v4476 = vrcp.pop %v4471
    %v4477 = vmul.f32 1.0, %v4476
    %v4478 = vtanh.pop %v4459
    %v4479 = vmul.f32 %v4475, %v4173
    %v4480 = vmul.f32 %v4473, %v4478
    %v4481 = vadd.f32 %v4479, %v4480
    %v4482 = vtanh.pop %v4481
    %v4483 = vmul.f32 %v4477, %v4482
    %4484 = vst [vmem:[%s1580] sm:$0xff] %v4483
    %v4485 = vld [vmem:[%s1582] sm:$0xff]
    %v4486 = vld [vmem:[%s1582 + $0x8] sm:$0xff]
    %v4487 = vld [vmem:[%s1582 + $0x10] sm:$0xff]
    %v4488 = vld [vmem:[%s1582 + $0x18] sm:$0xff]
    %v4489 = vpack.c.bf16 %v4483, %v4483
    %v4490 = vld [vmem:[#allocation8] sm:$0xff]
    %v4491 = vld [vmem:[#allocation8 + $0x8] sm:$0xff]
    %v4492 = vld [vmem:[#allocation8 + $0x10] sm:$0xff]
    %v4493 = vld [vmem:[#allocation8 + $0x18] sm:$0xff]
    %v4494 = vld [vmem:[#allocation8 + $0x20] sm:$0xff]
    %v4495 = vld [vmem:[#allocation8 + $0x28] sm:$0xff]
    %v4496 = vld [vmem:[#allocation8 + $0x30] sm:$0xff]
    %v4497 = vld [vmem:[#allocation8 + $0x38] sm:$0xff]
    %v4498 = vld [vmem:[#allocation8 + $0x40] sm:$0xff]
    %v4499 = vld [vmem:[#allocation8 + $0x48] sm:$0xff]
    %v4500 = vld [vmem:[#allocation8 + $0x50] sm:$0xff]
    %v4501 = vld [vmem:[#allocation8 + $0x58] sm:$0xff]
    %v4502 = vld [vmem:[#allocation8 + $0x60] sm:$0xff]
    %v4503 = vld [vmem:[#allocation8 + $0x68] sm:$0xff]
    %v4504 = vld [vmem:[#allocation8 + $0x70] sm:$0xff]
    %v4505 = vld [vmem:[#allocation8 + $0x78] sm:$0xff]
    %v4506 = vld [vmem:[#allocation8 + $0x80] sm:$0xff]
    %v4507 = vld [vmem:[#allocation8 + $0x88] sm:$0xff]
    %v4508 = vld [vmem:[#allocation8 + $0x90] sm:$0xff]
    %v4509 = vld [vmem:[#allocation8 + $0x98] sm:$0xff]
    %v4510 = vld [vmem:[#allocation8 + $0xa0] sm:$0xff]
    %v4511 = vld [vmem:[#allocation8 + $0xa8] sm:$0xff]
    %v4512 = vld [vmem:[#allocation8 + $0xb0] sm:$0xff]
    %v4513 = vld [vmem:[#allocation8 + $0xb8] sm:$0xff]
    %v4514 = vld [vmem:[#allocation8 + $0xc0] sm:$0xff]
    %v4515 = vld [vmem:[#allocation8 + $0xc8] sm:$0xff]
    %v4516 = vld [vmem:[#allocation8 + $0xd0] sm:$0xff]
    %v4517 = vld [vmem:[#allocation8 + $0xd8] sm:$0xff]
    %v4518 = vld [vmem:[#allocation8 + $0xe0] sm:$0xff]
    %v4519 = vld [vmem:[#allocation8 + $0xe8] sm:$0xff]
    %v4520 = vld [vmem:[#allocation8 + $0xf0] sm:$0xff]
    %v4521 = vld [vmem:[#allocation8 + $0xf8] sm:$0xff]
    %v4554 = vunpack.c.l.b16 %v4490
    %v4555 = vunpack.c.h.b16 %v4490
    %v4556 = vunpack.c.l.b16 %v4491
    %v4557 = vunpack.c.h.b16 %v4491
    %v4558 = vunpack.c.l.b16 %v4492
    %v4559 = vunpack.c.h.b16 %v4492
    %v4560 = vunpack.c.l.b16 %v4493
    %v4561 = vunpack.c.h.b16 %v4493
    %v4562 = vunpack.c.l.b16 %v4494
    %v4563 = vunpack.c.h.b16 %v4494
    %v4564 = vunpack.c.l.b16 %v4495
    %v4565 = vunpack.c.h.b16 %v4495
    %v4566 = vunpack.c.l.b16 %v4496
    %v4567 = vunpack.c.h.b16 %v4496
    %v4568 = vunpack.c.l.b16 %v4497
    %v4569 = vunpack.c.h.b16 %v4497
    %v4570 = vunpack.c.l.b16 %v4498
    %v4571 = vunpack.c.h.b16 %v4498
    %v4572 = vunpack.c.l.b16 %v4499
    %v4573 = vunpack.c.h.b16 %v4499
    %v4574 = vunpack.c.l.b16 %v4500
    %v4575 = vunpack.c.h.b16 %v4500
    %v4576 = vunpack.c.l.b16 %v4501
    %v4577 = vunpack.c.h.b16 %v4501
    %v4578 = vunpack.c.l.b16 %v4502
    %v4579 = vunpack.c.h.b16 %v4502
    %v4580 = vunpack.c.l.b16 %v4503
    %v4581 = vunpack.c.h.b16 %v4503
    %v4582 = vunpack.c.l.b16 %v4504
    %v4583 = vunpack.c.h.b16 %v4504
    %v4584 = vunpack.c.l.b16 %v4505
    %v4585 = vunpack.c.h.b16 %v4505
    %v4586 = vunpack.c.l.b16 %v4506
    %v4587 = vunpack.c.h.b16 %v4506
    %v4588 = vunpack.c.l.b16 %v4507
    %v4589 = vunpack.c.h.b16 %v4507
    %v4590 = vunpack.c.l.b16 %v4508
    %v4591 = vunpack.c.h.b16 %v4508
    %v4592 = vunpack.c.l.b16 %v4509
    %v4593 = vunpack.c.h.b16 %v4509
    %v4594 = vunpack.c.l.b16 %v4510
    %v4595 = vunpack.c.h.b16 %v4510
    %v4596 = vunpack.c.l.b16 %v4511
    %v4597 = vunpack.c.h.b16 %v4511
    %v4598 = vunpack.c.l.b16 %v4512
    %v4599 = vunpack.c.h.b16 %v4512
    %v4600 = vunpack.c.l.b16 %v4513
    %v4601 = vunpack.c.h.b16 %v4513
    %v4602 = vunpack.c.l.b16 %v4514
    %v4603 = vunpack.c.h.b16 %v4514
    %v4604 = vunpack.c.l.b16 %v4515
    %v4605 = vunpack.c.h.b16 %v4515
    %v4606 = vunpack.c.l.b16 %v4516
    %v4607 = vunpack.c.h.b16 %v4516
    %v4608 = vunpack.c.l.b16 %v4517
    %v4609 = vunpack.c.h.b16 %v4517
    %v4610 = vunpack.c.l.b16 %v4518
    %v4611 = vunpack.c.h.b16 %v4518
    %v4612 = vunpack.c.l.b16 %v4519
    %v4613 = vunpack.c.h.b16 %v4519
    %v4614 = vunpack.c.l.b16 %v4520
    %v4615 = vunpack.c.h.b16 %v4520
    %v4616 = vunpack.c.l.b16 %v4521
    %v4617 = vunpack.c.h.b16 %v4521
    %v4618 = vpack.c.b16 %v4558, %v4554
    %v4619 = vpack.c.b16 %v4559, %v4555
    %v4620 = vpack.c.b16 %v4560, %v4556
    %v4621 = vpack.c.b16 %v4561, %v4557
    %v4622 = vpack.c.b16 %v4566, %v4562
    %v4623 = vpack.c.b16 %v4567, %v4563
    %v4624 = vpack.c.b16 %v4568, %v4564
    %v4625 = vpack.c.b16 %v4569, %v4565
    %v4626 = vpack.c.b16 %v4574, %v4570
    %v4627 = vpack.c.b16 %v4575, %v4571
    %v4628 = vpack.c.b16 %v4576, %v4572
    %v4629 = vpack.c.b16 %v4577, %v4573
    %v4630 = vpack.c.b16 %v4582, %v4578
    %v4631 = vpack.c.b16 %v4583, %v4579
    %v4632 = vpack.c.b16 %v4584, %v4580
    %v4633 = vpack.c.b16 %v4585, %v4581
    %v4634 = vpack.c.b16 %v4590, %v4586
    %v4635 = vpack.c.b16 %v4591, %v4587
    %v4636 = vpack.c.b16 %v4592, %v4588
    %v4637 = vpack.c.b16 %v4593, %v4589
    %v4638 = vpack.c.b16 %v4598, %v4594
    %v4639 = vpack.c.b16 %v4599, %v4595
    %v4640 = vpack.c.b16 %v4600, %v4596
    %v4641 = vpack.c.b16 %v4601, %v4597
    %v4642 = vpack.c.b16 %v4606, %v4602
    %v4643 = vpack.c.b16 %v4607, %v4603
    %v4644 = vpack.c.b16 %v4608, %v4604
    %v4645 = vpack.c.b16 %v4609, %v4605
    %v4646 = vpack.c.b16 %v4614, %v4610
    %v4647 = vpack.c.b16 %v4615, %v4611
    %v4648 = vpack.c.b16 %v4616, %v4612
    %v4649 = vpack.c.b16 %v4617, %v4613
    %4682 = vmatprep.subr.bf16.mxu0 %v4647
    %4683 = vmatpush1.bf16.msra.mxu0 %v4646
    %4684 = vmatprep.subr.bf16.mxu0 %v4643
    %4685 = vmatpush1.bf16.msra.mxu0 %v4642
    %4686 = vmatprep.subr.bf16.mxu0 %v4639
    %4687 = vmatpush1.bf16.msra.mxu0 %v4638
    %4688 = vmatprep.subr.bf16.mxu0 %v4635
    %4689 = vmatpush1.bf16.msra.mxu0 %v4634
    %4690 = vmatprep.subr.bf16.mxu0 %v4631
    %4691 = vmatpush1.bf16.msra.mxu0 %v4630
    %4692 = vmatprep.subr.bf16.mxu0 %v4627
    %4693 = vmatpush1.bf16.msra.mxu0 %v4626
    %4694 = vmatprep.subr.bf16.mxu0 %v4623
    %4695 = vmatpush1.bf16.msra.mxu0 %v4622
    %4696 = vmatprep.subr.bf16.mxu0 %v4619
    %4697 = vmatpush1.bf16.msra.mxu0 %v4618
    %4698 = vmatprep.subr.bf16.mxu0 0
    %4699 = vmatpush2.bf16.msra.mxu0 0
    %4700 = vmatprep.subr.bf16.mxu0 0
    %4701 = vmatpush2.bf16.msra.mxu0 0
    %4702 = vmatprep.subr.bf16.mxu0 0
    %4703 = vmatpush2.bf16.msra.mxu0 0
    %4704 = vmatprep.subr.bf16.mxu0 0
    %4705 = vmatpush2.bf16.msra.mxu0 0
    %4706 = vmatprep.subr.bf16.mxu0 0
    %4707 = vmatpush2.bf16.msra.mxu0 0
    %4708 = vmatprep.subr.bf16.mxu0 0
    %4709 = vmatpush2.bf16.msra.mxu0 0
    %4710 = vmatprep.subr.bf16.mxu0 0
    %4711 = vmatpush2.bf16.msra.mxu0 0
    %4712 = vmatprep.subr.bf16.mxu0 0
    %4713 = vmatpush2.bf16.msra.mxu0 0
    %4714 = vmatprep.mubr.bf16.mxu0 0
    %4715 = vmatmul.mubr.bf16.gmra.mxu0 %v4489
    %v4716 = vpop.f32.mrf.mxu0
    %v4717 = vadd.f32 0.0, %v4716
    %v4718 = vpop.f32.mrf.mxu0
    %v4719 = vadd.f32 0.0, %v4718
    %v4720 = vpop.f32.mrf.mxu0
    %v4721 = vpop.f32.mrf.mxu0
    %4722 = vdwg.mxu0
    %4723 = vmatprep.subr.bf16.mxu0 %v4649
    %4724 = vmatpush1.bf16.msra.mxu0 %v4648
    %4725 = vmatprep.subr.bf16.mxu0 %v4645
    %4726 = vmatpush1.bf16.msra.mxu0 %v4644
    %4727 = vmatprep.subr.bf16.mxu0 %v4641
    %4728 = vmatpush1.bf16.msra.mxu0 %v4640
    %4729 = vmatprep.subr.bf16.mxu0 %v4637
    %4730 = vmatpush1.bf16.msra.mxu0 %v4636
    %4731 = vmatprep.subr.bf16.mxu0 %v4633
    %4732 = vmatpush1.bf16.msra.mxu0 %v4632
    %4733 = vmatprep.subr.bf16.mxu0 %v4629
    %4734 = vmatpush1.bf16.msra.mxu0 %v4628
    %4735 = vmatprep.subr.bf16.mxu0 %v4625
    %4736 = vmatpush1.bf16.msra.mxu0 %v4624
    %4737 = vmatprep.subr.bf16.mxu0 %v4621
    %4738 = vmatpush1.bf16.msra.mxu0 %v4620
    %4739 = vmatprep.subr.bf16.mxu0 0
    %4740 = vmatpush2.bf16.msra.mxu0 0
    %4741 = vmatprep.subr.bf16.mxu0 0
    %4742 = vmatpush2.bf16.msra.mxu0 0
    %4743 = vmatprep.subr.bf16.mxu0 0
    %4744 = vmatpush2.bf16.msra.mxu0 0
    %4745 = vmatprep.subr.bf16.mxu0 0
    %4746 = vmatpush2.bf16.msra.mxu0 0
    %4747 = vmatprep.subr.bf16.mxu0 0
    %4748 = vmatpush2.bf16.msra.mxu0 0
    %4749 = vmatprep.subr.bf16.mxu0 0
    %4750 = vmatpush2.bf16.msra.mxu0 0
    %4751 = vmatprep.subr.bf16.mxu0 0
    %4752 = vmatpush2.bf16.msra.mxu0 0
    %4753 = vmatprep.subr.bf16.mxu0 0
    %4754 = vmatpush2.bf16.msra.mxu0 0
    %4755 = vmatprep.mubr.bf16.mxu0 0
    %4756 = vmatmul.mubr.bf16.gmra.mxu0 %v4489
    %v4757 = vpop.f32.mrf.mxu0
    %v4758 = vadd.f32 0.0, %v4757
    %v4759 = vpop.f32.mrf.mxu0
    %v4760 = vadd.f32 0.0, %v4759
    %v4761 = vpop.f32.mrf.mxu0
    %v4762 = vpop.f32.mrf.mxu0
    %4763 = vdwg.mxu0
    %v4764 = vadd.f32 %v4485, %v4717
    %v4765 = vadd.f32 %v4486, %v4719
    %v4766 = vadd.f32 %v4487, %v4758
    %v4767 = vadd.f32 %v4488, %v4760
    %v4768 = vxor.u32 %v4764, 2147483648
    %v4769 = vxor.u32 %v4765, 2147483648
    %v4770 = vxor.u32 %v4766, 2147483648
    %v4771 = vmul.f32 %v4768, 1.442695
    %v4772 = vpow.pop %v4771
    %v4773 = vmul.f32 %v4769, 1.442695
    %v4774 = vpow.pop %v4773
    %v4775 = vmul.f32 %v4770, 1.442695
    %v4776 = vpow.pop %v4775
    %v4777 = vadd.f32 %v4772, 1.0
    %v4778 = vadd.f32 %v4774, 1.0
    %v4779 = vadd.f32 %v4776, 1.0
    %v4780 = vrcp.pop %v4777
    %v4781 = vmul.f32 1.0, %v4780
    %v4782 = vrcp.pop %v4778
    %v4783 = vmul.f32 1.0, %v4782
    %v4784 = vrcp.pop %v4779
    %v4785 = vmul.f32 1.0, %v4784
    %v4786 = vtanh.pop %v4767
    %v4787 = vmul.f32 %v4783, %v4481
    %v4788 = vmul.f32 %v4781, %v4786
    %v4789 = vadd.f32 %v4787, %v4788
    %v4790 = vtanh.pop %v4789
    %v4791 = vmul.f32 %v4785, %v4790
    %4792 = vst [vmem:[%s1890] sm:$0xff] %v4791
    %v4793 = vld [vmem:[%s1892] sm:$0xff]
    %v4794 = vld [vmem:[%s1892 + $0x8] sm:$0xff]
    %v4795 = vld [vmem:[%s1892 + $0x10] sm:$0xff]
    %v4796 = vld [vmem:[%s1892 + $0x18] sm:$0xff]
    %v4797 = vpack.c.bf16 %v4791, %v4791
    %v4798 = vld [vmem:[#allocation8] sm:$0xff]
    %v4799 = vld [vmem:[#allocation8 + $0x8] sm:$0xff]
    %v4800 = vld [vmem:[#allocation8 + $0x10] sm:$0xff]
    %v4801 = vld [vmem:[#allocation8 + $0x18] sm:$0xff]
    %v4802 = vld [vmem:[#allocation8 + $0x20] sm:$0xff]
    %v4803 = vld [vmem:[#allocation8 + $0x28] sm:$0xff]
    %v4804 = vld [vmem:[#allocation8 + $0x30] sm:$0xff]
    %v4805 = vld [vmem:[#allocation8 + $0x38] sm:$0xff]
    %v4806 = vld [vmem:[#allocation8 + $0x40] sm:$0xff]
    %v4807 = vld [vmem:[#allocation8 + $0x48] sm:$0xff]
    %v4808 = vld [vmem:[#allocation8 + $0x50] sm:$0xff]
    %v4809 = vld [vmem:[#allocation8 + $0x58] sm:$0xff]
    %v4810 = vld [vmem:[#allocation8 + $0x60] sm:$0xff]
    %v4811 = vld [vmem:[#allocation8 + $0x68] sm:$0xff]
    %v4812 = vld [vmem:[#allocation8 + $0x70] sm:$0xff]
    %v4813 = vld [vmem:[#allocation8 + $0x78] sm:$0xff]
    %v4814 = vld [vmem:[#allocation8 + $0x80] sm:$0xff]
    %v4815 = vld [vmem:[#allocation8 + $0x88] sm:$0xff]
    %v4816 = vld [vmem:[#allocation8 + $0x90] sm:$0xff]
    %v4817 = vld [vmem:[#allocation8 + $0x98] sm:$0xff]
    %v4818 = vld [vmem:[#allocation8 + $0xa0] sm:$0xff]
    %v4819 = vld [vmem:[#allocation8 + $0xa8] sm:$0xff]
    %v4820 = vld [vmem:[#allocation8 + $0xb0] sm:$0xff]
    %v4821 = vld [vmem:[#allocation8 + $0xb8] sm:$0xff]
    %v4822 = vld [vmem:[#allocation8 + $0xc0] sm:$0xff]
    %v4823 = vld [vmem:[#allocation8 + $0xc8] sm:$0xff]
    %v4824 = vld [vmem:[#allocation8 + $0xd0] sm:$0xff]
    %v4825 = vld [vmem:[#allocation8 + $0xd8] sm:$0xff]
    %v4826 = vld [vmem:[#allocation8 + $0xe0] sm:$0xff]
    %v4827 = vld [vmem:[#allocation8 + $0xe8] sm:$0xff]
    %v4828 = vld [vmem:[#allocation8 + $0xf0] sm:$0xff]
    %v4829 = vld [vmem:[#allocation8 + $0xf8] sm:$0xff]
    %v4862 = vunpack.c.l.b16 %v4798
    %v4863 = vunpack.c.h.b16 %v4798
    %v4864 = vunpack.c.l.b16 %v4799
    %v4865 = vunpack.c.h.b16 %v4799
    %v4866 = vunpack.c.l.b16 %v4800
    %v4867 = vunpack.c.h.b16 %v4800
    %v4868 = vunpack.c.l.b16 %v4801
    %v4869 = vunpack.c.h.b16 %v4801
    %v4870 = vunpack.c.l.b16 %v4802
    %v4871 = vunpack.c.h.b16 %v4802
    %v4872 = vunpack.c.l.b16 %v4803
    %v4873 = vunpack.c.h.b16 %v4803
    %v4874 = vunpack.c.l.b16 %v4804
    %v4875 = vunpack.c.h.b16 %v4804
    %v4876 = vunpack.c.l.b16 %v4805
    %v4877 = vunpack.c.h.b16 %v4805
    %v4878 = vunpack.c.l.b16 %v4806
    %v4879 = vunpack.c.h.b16 %v4806
    %v4880 = vunpack.c.l.b16 %v4807
    %v4881 = vunpack.c.h.b16 %v4807
    %v4882 = vunpack.c.l.b16 %v4808
    %v4883 = vunpack.c.h.b16 %v4808
    %v4884 = vunpack.c.l.b16 %v4809
    %v4885 = vunpack.c.h.b16 %v4809
    %v4886 = vunpack.c.l.b16 %v4810
    %v4887 = vunpack.c.h.b16 %v4810
    %v4888 = vunpack.c.l.b16 %v4811
    %v4889 = vunpack.c.h.b16 %v4811
    %v4890 = vunpack.c.l.b16 %v4812
    %v4891 = vunpack.c.h.b16 %v4812
    %v4892 = vunpack.c.l.b16 %v4813
    %v4893 = vunpack.c.h.b16 %v4813
    %v4894 = vunpack.c.l.b16 %v4814
    %v4895 = vunpack.c.h.b16 %v4814
    %v4896 = vunpack.c.l.b16 %v4815
    %v4897 = vunpack.c.h.b16 %v4815
    %v4898 = vunpack.c.l.b16 %v4816
    %v4899 = vunpack.c.h.b16 %v4816
    %v4900 = vunpack.c.l.b16 %v4817
    %v4901 = vunpack.c.h.b16 %v4817
    %v4902 = vunpack.c.l.b16 %v4818
    %v4903 = vunpack.c.h.b16 %v4818
    %v4904 = vunpack.c.l.b16 %v4819
    %v4905 = vunpack.c.h.b16 %v4819
    %v4906 = vunpack.c.l.b16 %v4820
    %v4907 = vunpack.c.h.b16 %v4820
    %v4908 = vunpack.c.l.b16 %v4821
    %v4909 = vunpack.c.h.b16 %v4821
    %v4910 = vunpack.c.l.b16 %v4822
    %v4911 = vunpack.c.h.b16 %v4822
    %v4912 = vunpack.c.l.b16 %v4823
    %v4913 = vunpack.c.h.b16 %v4823
    %v4914 = vunpack.c.l.b16 %v4824
    %v4915 = vunpack.c.h.b16 %v4824
    %v4916 = vunpack.c.l.b16 %v4825
    %v4917 = vunpack.c.h.b16 %v4825
    %v4918 = vunpack.c.l.b16 %v4826
    %v4919 = vunpack.c.h.b16 %v4826
    %v4920 = vunpack.c.l.b16 %v4827
    %v4921 = vunpack.c.h.b16 %v4827
    %v4922 = vunpack.c.l.b16 %v4828
    %v4923 = vunpack.c.h.b16 %v4828
    %v4924 = vunpack.c.l.b16 %v4829
    %v4925 = vunpack.c.h.b16 %v4829
    %v4926 = vpack.c.b16 %v4866, %v4862
    %v4927 = vpack.c.b16 %v4867, %v4863
    %v4928 = vpack.c.b16 %v4868, %v4864
    %v4929 = vpack.c.b16 %v4869, %v4865
    %v4930 = vpack.c.b16 %v4874, %v4870
    %v4931 = vpack.c.b16 %v4875, %v4871
    %v4932 = vpack.c.b16 %v4876, %v4872
    %v4933 = vpack.c.b16 %v4877, %v4873
    %v4934 = vpack.c.b16 %v4882, %v4878
    %v4935 = vpack.c.b16 %v4883, %v4879
    %v4936 = vpack.c.b16 %v4884, %v4880
    %v4937 = vpack.c.b16 %v4885, %v4881
    %v4938 = vpack.c.b16 %v4890, %v4886
    %v4939 = vpack.c.b16 %v4891, %v4887
    %v4940 = vpack.c.b16 %v4892, %v4888
    %v4941 = vpack.c.b16 %v4893, %v4889
    %v4942 = vpack.c.b16 %v4898, %v4894
    %v4943 = vpack.c.b16 %v4899, %v4895
    %v4944 = vpack.c.b16 %v4900, %v4896
    %v4945 = vpack.c.b16 %v4901, %v4897
    %v4946 = vpack.c.b16 %v4906, %v4902
    %v4947 = vpack.c.b16 %v4907, %v4903
    %v4948 = vpack.c.b16 %v4908, %v4904
    %v4949 = vpack.c.b16 %v4909, %v4905
    %v4950 = vpack.c.b16 %v4914, %v4910
    %v4951 = vpack.c.b16 %v4915, %v4911
    %v4952 = vpack.c.b16 %v4916, %v4912
    %v4953 = vpack.c.b16 %v4917, %v4913
    %v4954 = vpack.c.b16 %v4922, %v4918
    %v4955 = vpack.c.b16 %v4923, %v4919
    %v4956 = vpack.c.b16 %v4924, %v4920
    %v4957 = vpack.c.b16 %v4925, %v4921
    %4990 = vmatprep.subr.bf16.mxu0 %v4955
    %4991 = vmatpush1.bf16.msra.mxu0 %v4954
    %4992 = vmatprep.subr.bf16.mxu0 %v4951
    %4993 = vmatpush1.bf16.msra.mxu0 %v4950
    %4994 = vmatprep.subr.bf16.mxu0 %v4947
    %4995 = vmatpush1.bf16.msra.mxu0 %v4946
    %4996 = vmatprep.subr.bf16.mxu0 %v4943
    %4997 = vmatpush1.bf16.msra.mxu0 %v4942
    %4998 = vmatprep.subr.bf16.mxu0 %v4939
    %4999 = vmatpush1.bf16.msra.mxu0 %v4938
    %5000 = vmatprep.subr.bf16.mxu0 %v4935
    %5001 = vmatpush1.bf16.msra.mxu0 %v4934
    %5002 = vmatprep.subr.bf16.mxu0 %v4931
    %5003 = vmatpush1.bf16.msra.mxu0 %v4930
    %5004 = vmatprep.subr.bf16.mxu0 %v4927
    %5005 = vmatpush1.bf16.msra.mxu0 %v4926
    %5006 = vmatprep.subr.bf16.mxu0 0
    %5007 = vmatpush2.bf16.msra.mxu0 0
    %5008 = vmatprep.subr.bf16.mxu0 0
    %5009 = vmatpush2.bf16.msra.mxu0 0
    %5010 = vmatprep.subr.bf16.mxu0 0
    %5011 = vmatpush2.bf16.msra.mxu0 0
    %5012 = vmatprep.subr.bf16.mxu0 0
    %5013 = vmatpush2.bf16.msra.mxu0 0
    %5014 = vmatprep.subr.bf16.mxu0 0
    %5015 = vmatpush2.bf16.msra.mxu0 0
    %5016 = vmatprep.subr.bf16.mxu0 0
    %5017 = vmatpush2.bf16.msra.mxu0 0
    %5018 = vmatprep.subr.bf16.mxu0 0
    %5019 = vmatpush2.bf16.msra.mxu0 0
    %5020 = vmatprep.subr.bf16.mxu0 0
    %5021 = vmatpush2.bf16.msra.mxu0 0
    %5022 = vmatprep.mubr.bf16.mxu0 0
    %5023 = vmatmul.mubr.bf16.gmra.mxu0 %v4797
    %v5024 = vpop.f32.mrf.mxu0
    %v5025 = vadd.f32 0.0, %v5024
    %v5026 = vpop.f32.mrf.mxu0
    %v5027 = vadd.f32 0.0, %v5026
    %v5028 = vpop.f32.mrf.mxu0
    %v5029 = vpop.f32.mrf.mxu0
    %5030 = vdwg.mxu0
    %5031 = vmatprep.subr.bf16.mxu0 %v4957
    %5032 = vmatpush1.bf16.msra.mxu0 %v4956
    %5033 = vmatprep.subr.bf16.mxu0 %v4953
    %5034 = vmatpush1.bf16.msra.mxu0 %v4952
    %5035 = vmatprep.subr.bf16.mxu0 %v4949
    %5036 = vmatpush1.bf16.msra.mxu0 %v4948
    %5037 = vmatprep.subr.bf16.mxu0 %v4945
    %5038 = vmatpush1.bf16.msra.mxu0 %v4944
    %5039 = vmatprep.subr.bf16.mxu0 %v4941
    %5040 = vmatpush1.bf16.msra.mxu0 %v4940
    %5041 = vmatprep.subr.bf16.mxu0 %v4937
    %5042 = vmatpush1.bf16.msra.mxu0 %v4936
    %5043 = vmatprep.subr.bf16.mxu0 %v4933
    %5044 = vmatpush1.bf16.msra.mxu0 %v4932
    %5045 = vmatprep.subr.bf16.mxu0 %v4929
    %5046 = vmatpush1.bf16.msra.mxu0 %v4928
    %5047 = vmatprep.subr.bf16.mxu0 0
    %5048 = vmatpush2.bf16.msra.mxu0 0
    %5049 = vmatprep.subr.bf16.mxu0 0
    %5050 = vmatpush2.bf16.msra.mxu0 0
    %5051 = vmatprep.subr.bf16.mxu0 0
    %5052 = vmatpush2.bf16.msra.mxu0 0
    %5053 = vmatprep.subr.bf16.mxu0 0
    %5054 = vmatpush2.bf16.msra.mxu0 0
    %5055 = vmatprep.subr.bf16.mxu0 0
    %5056 = vmatpush2.bf16.msra.mxu0 0
    %5057 = vmatprep.subr.bf16.mxu0 0
    %5058 = vmatpush2.bf16.msra.mxu0 0
    %5059 = vmatprep.subr.bf16.mxu0 0
    %5060 = vmatpush2.bf16.msra.mxu0 0
    %5061 = vmatprep.subr.bf16.mxu0 0
    %5062 = vmatpush2.bf16.msra.mxu0 0
    %5063 = vmatprep.mubr.bf16.mxu0 0
    %5064 = vmatmul.mubr.bf16.gmra.mxu0 %v4797
    %v5065 = vpop.f32.mrf.mxu0
    %v5066 = vadd.f32 0.0, %v5065
    %v5067 = vpop.f32.mrf.mxu0
    %v5068 = vadd.f32 0.0, %v5067
    %v5069 = vpop.f32.mrf.mxu0
    %v5070 = vpop.f32.mrf.mxu0
    %5071 = vdwg.mxu0
    %v5072 = vadd.f32 %v4793, %v5025
    %v5073 = vadd.f32 %v4794, %v5027
    %v5074 = vadd.f32 %v4795, %v5066
    %v5075 = vadd.f32 %v4796, %v5068
    %v5076 = vxor.u32 %v5072, 2147483648
    %v5077 = vxor.u32 %v5073, 2147483648
    %v5078 = vxor.u32 %v5074, 2147483648
    %v5079 = vmul.f32 %v5076, 1.442695
    %v5080 = vpow.pop %v5079
    %v5081 = vmul.f32 %v5077, 1.442695
    %v5082 = vpow.pop %v5081
    %v5083 = vmul.f32 %v5078, 1.442695
    %v5084 = vpow.pop %v5083
    %v5085 = vadd.f32 %v5080, 1.0
    %v5086 = vadd.f32 %v5082, 1.0
    %v5087 = vadd.f32 %v5084, 1.0
    %v5088 = vrcp.pop %v5085
    %v5089 = vmul.f32 1.0, %v5088
    %v5090 = vrcp.pop %v5086
    %v5091 = vmul.f32 1.0, %v5090
    %v5092 = vrcp.pop %v5087
    %v5093 = vmul.f32 1.0, %v5092
    %v5094 = vtanh.pop %v5075
    %v5095 = vmul.f32 %v5091, %v4789
    %v5096 = vmul.f32 %v5089, %v5094
    %v5097 = vadd.f32 %v5095, %v5096
    %v5098 = vtanh.pop %v5097
    %v5099 = vmul.f32 %v5093, %v5098
    %5100 = vst [vmem:[%s2200] sm:$0xff] %v5099
    %v5101 = vld [vmem:[%s2202] sm:$0xff]
    %v5102 = vld [vmem:[%s2202 + $0x8] sm:$0xff]
    %v5103 = vld [vmem:[%s2202 + $0x10] sm:$0xff]
    %v5104 = vld [vmem:[%s2202 + $0x18] sm:$0xff]
    %v5105 = vpack.c.bf16 %v5099, %v5099
    %v5106 = vld [vmem:[#allocation8] sm:$0xff]
    %v5107 = vld [vmem:[#allocation8 + $0x8] sm:$0xff]
    %v5108 = vld [vmem:[#allocation8 + $0x10] sm:$0xff]
    %v5109 = vld [vmem:[#allocation8 + $0x18] sm:$0xff]
    %v5110 = vld [vmem:[#allocation8 + $0x20] sm:$0xff]
    %v5111 = vld [vmem:[#allocation8 + $0x28] sm:$0xff]
    %v5112 = vld [vmem:[#allocation8 + $0x30] sm:$0xff]
    %v5113 = vld [vmem:[#allocation8 + $0x38] sm:$0xff]
    %v5114 = vld [vmem:[#allocation8 + $0x40] sm:$0xff]
    %v5115 = vld [vmem:[#allocation8 + $0x48] sm:$0xff]
    %v5116 = vld [vmem:[#allocation8 + $0x50] sm:$0xff]
    %v5117 = vld [vmem:[#allocation8 + $0x58] sm:$0xff]
    %v5118 = vld [vmem:[#allocation8 + $0x60] sm:$0xff]
    %v5119 = vld [vmem:[#allocation8 + $0x68] sm:$0xff]
    %v5120 = vld [vmem:[#allocation8 + $0x70] sm:$0xff]
    %v5121 = vld [vmem:[#allocation8 + $0x78] sm:$0xff]
    %v5122 = vld [vmem:[#allocation8 + $0x80] sm:$0xff]
    %v5123 = vld [vmem:[#allocation8 + $0x88] sm:$0xff]
    %v5124 = vld [vmem:[#allocation8 + $0x90] sm:$0xff]
    %v5125 = vld [vmem:[#allocation8 + $0x98] sm:$0xff]
    %v5126 = vld [vmem:[#allocation8 + $0xa0] sm:$0xff]
    %v5127 = vld [vmem:[#allocation8 + $0xa8] sm:$0xff]
    %v5128 = vld [vmem:[#allocation8 + $0xb0] sm:$0xff]
    %v5129 = vld [vmem:[#allocation8 + $0xb8] sm:$0xff]
    %v5130 = vld [vmem:[#allocation8 + $0xc0] sm:$0xff]
    %v5131 = vld [vmem:[#allocation8 + $0xc8] sm:$0xff]
    %v5132 = vld [vmem:[#allocation8 + $0xd0] sm:$0xff]
    %v5133 = vld [vmem:[#allocation8 + $0xd8] sm:$0xff]
    %v5134 = vld [vmem:[#allocation8 + $0xe0] sm:$0xff]
    %v5135 = vld [vmem:[#allocation8 + $0xe8] sm:$0xff]
    %v5136 = vld [vmem:[#allocation8 + $0xf0] sm:$0xff]
    %v5137 = vld [vmem:[#allocation8 + $0xf8] sm:$0xff]
    %v5170 = vunpack.c.l.b16 %v5106
    %v5171 = vunpack.c.h.b16 %v5106
    %v5172 = vunpack.c.l.b16 %v5107
    %v5173 = vunpack.c.h.b16 %v5107
    %v5174 = vunpack.c.l.b16 %v5108
    %v5175 = vunpack.c.h.b16 %v5108
    %v5176 = vunpack.c.l.b16 %v5109
    %v5177 = vunpack.c.h.b16 %v5109
    %v5178 = vunpack.c.l.b16 %v5110
    %v5179 = vunpack.c.h.b16 %v5110
    %v5180 = vunpack.c.l.b16 %v5111
    %v5181 = vunpack.c.h.b16 %v5111
    %v5182 = vunpack.c.l.b16 %v5112
    %v5183 = vunpack.c.h.b16 %v5112
    %v5184 = vunpack.c.l.b16 %v5113
    %v5185 = vunpack.c.h.b16 %v5113
    %v5186 = vunpack.c.l.b16 %v5114
    %v5187 = vunpack.c.h.b16 %v5114
    %v5188 = vunpack.c.l.b16 %v5115
    %v5189 = vunpack.c.h.b16 %v5115
    %v5190 = vunpack.c.l.b16 %v5116
    %v5191 = vunpack.c.h.b16 %v5116
    %v5192 = vunpack.c.l.b16 %v5117
    %v5193 = vunpack.c.h.b16 %v5117
    %v5194 = vunpack.c.l.b16 %v5118
    %v5195 = vunpack.c.h.b16 %v5118
    %v5196 = vunpack.c.l.b16 %v5119
    %v5197 = vunpack.c.h.b16 %v5119
    %v5198 = vunpack.c.l.b16 %v5120
    %v5199 = vunpack.c.h.b16 %v5120
    %v5200 = vunpack.c.l.b16 %v5121
    %v5201 = vunpack.c.h.b16 %v5121
    %v5202 = vunpack.c.l.b16 %v5122
    %v5203 = vunpack.c.h.b16 %v5122
    %v5204 = vunpack.c.l.b16 %v5123
    %v5205 = vunpack.c.h.b16 %v5123
    %v5206 = vunpack.c.l.b16 %v5124
    %v5207 = vunpack.c.h.b16 %v5124
    %v5208 = vunpack.c.l.b16 %v5125
    %v5209 = vunpack.c.h.b16 %v5125
    %v5210 = vunpack.c.l.b16 %v5126
    %v5211 = vunpack.c.h.b16 %v5126
    %v5212 = vunpack.c.l.b16 %v5127
    %v5213 = vunpack.c.h.b16 %v5127
    %v5214 = vunpack.c.l.b16 %v5128
    %v5215 = vunpack.c.h.b16 %v5128
    %v5216 = vunpack.c.l.b16 %v5129
    %v5217 = vunpack.c.h.b16 %v5129
    %v5218 = vunpack.c.l.b16 %v5130
    %v5219 = vunpack.c.h.b16 %v5130
    %v5220 = vunpack.c.l.b16 %v5131
    %v5221 = vunpack.c.h.b16 %v5131
    %v5222 = vunpack.c.l.b16 %v5132
    %v5223 = vunpack.c.h.b16 %v5132
    %v5224 = vunpack.c.l.b16 %v5133
    %v5225 = vunpack.c.h.b16 %v5133
    %v5226 = vunpack.c.l.b16 %v5134
    %v5227 = vunpack.c.h.b16 %v5134
    %v5228 = vunpack.c.l.b16 %v5135
    %v5229 = vunpack.c.h.b16 %v5135
    %v5230 = vunpack.c.l.b16 %v5136
    %v5231 = vunpack.c.h.b16 %v5136
    %v5232 = vunpack.c.l.b16 %v5137
    %v5233 = vunpack.c.h.b16 %v5137
    %v5234 = vpack.c.b16 %v5174, %v5170
    %v5235 = vpack.c.b16 %v5175, %v5171
    %v5236 = vpack.c.b16 %v5176, %v5172
    %v5237 = vpack.c.b16 %v5177, %v5173
    %v5238 = vpack.c.b16 %v5182, %v5178
    %v5239 = vpack.c.b16 %v5183, %v5179
    %v5240 = vpack.c.b16 %v5184, %v5180
    %v5241 = vpack.c.b16 %v5185, %v5181
    %v5242 = vpack.c.b16 %v5190, %v5186
    %v5243 = vpack.c.b16 %v5191, %v5187
    %v5244 = vpack.c.b16 %v5192, %v5188
    %v5245 = vpack.c.b16 %v5193, %v5189
    %v5246 = vpack.c.b16 %v5198, %v5194
    %v5247 = vpack.c.b16 %v5199, %v5195
    %v5248 = vpack.c.b16 %v5200, %v5196
    %v5249 = vpack.c.b16 %v5201, %v5197
    %v5250 = vpack.c.b16 %v5206, %v5202
    %v5251 = vpack.c.b16 %v5207, %v5203
    %v5252 = vpack.c.b16 %v5208, %v5204
    %v5253 = vpack.c.b16 %v5209, %v5205
    %v5254 = vpack.c.b16 %v5214, %v5210
    %v5255 = vpack.c.b16 %v5215, %v5211
    %v5256 = vpack.c.b16 %v5216, %v5212
    %v5257 = vpack.c.b16 %v5217, %v5213
    %v5258 = vpack.c.b16 %v5222, %v5218
    %v5259 = vpack.c.b16 %v5223, %v5219
    %v5260 = vpack.c.b16 %v5224, %v5220
    %v5261 = vpack.c.b16 %v5225, %v5221
    %v5262 = vpack.c.b16 %v5230, %v5226
    %v5263 = vpack.c.b16 %v5231, %v5227
    %v5264 = vpack.c.b16 %v5232, %v5228
    %v5265 = vpack.c.b16 %v5233, %v5229
    %5298 = vmatprep.subr.bf16.mxu0 %v5263
    %5299 = vmatpush1.bf16.msra.mxu0 %v5262
    %5300 = vmatprep.subr.bf16.mxu0 %v5259
    %5301 = vmatpush1.bf16.msra.mxu0 %v5258
    %5302 = vmatprep.subr.bf16.mxu0 %v5255
    %5303 = vmatpush1.bf16.msra.mxu0 %v5254
    %5304 = vmatprep.subr.bf16.mxu0 %v5251
    %5305 = vmatpush1.bf16.msra.mxu0 %v5250
    %5306 = vmatprep.subr.bf16.mxu0 %v5247
    %5307 = vmatpush1.bf16.msra.mxu0 %v5246
    %5308 = vmatprep.subr.bf16.mxu0 %v5243
    %5309 = vmatpush1.bf16.msra.mxu0 %v5242
    %5310 = vmatprep.subr.bf16.mxu0 %v5239
    %5311 = vmatpush1.bf16.msra.mxu0 %v5238
    %5312 = vmatprep.subr.bf16.mxu0 %v5235
    %5313 = vmatpush1.bf16.msra.mxu0 %v5234
    %5314 = vmatprep.subr.bf16.mxu0 0
    %5315 = vmatpush2.bf16.msra.mxu0 0
    %5316 = vmatprep.subr.bf16.mxu0 0
    %5317 = vmatpush2.bf16.msra.mxu0 0
    %5318 = vmatprep.subr.bf16.mxu0 0
    %5319 = vmatpush2.bf16.msra.mxu0 0
    %5320 = vmatprep.subr.bf16.mxu0 0
    %5321 = vmatpush2.bf16.msra.mxu0 0
    %5322 = vmatprep.subr.bf16.mxu0 0
    %5323 = vmatpush2.bf16.msra.mxu0 0
    %5324 = vmatprep.subr.bf16.mxu0 0
    %5325 = vmatpush2.bf16.msra.mxu0 0
    %5326 = vmatprep.subr.bf16.mxu0 0
    %5327 = vmatpush2.bf16.msra.mxu0 0
    %5328 = vmatprep.subr.bf16.mxu0 0
    %5329 = vmatpush2.bf16.msra.mxu0 0
    %5330 = vmatprep.mubr.bf16.mxu0 0
    %5331 = vmatmul.mubr.bf16.gmra.mxu0 %v5105
    %v5332 = vpop.f32.mrf.mxu0
    %v5333 = vadd.f32 0.0, %v5332
    %v5334 = vpop.f32.mrf.mxu0
    %v5335 = vadd.f32 0.0, %v5334
    %v5336 = vpop.f32.mrf.mxu0
    %v5337 = vpop.f32.mrf.mxu0
    %5338 = vdwg.mxu0
    %5339 = vmatprep.subr.bf16.mxu0 %v5265
    %5340 = vmatpush1.bf16.msra.mxu0 %v5264
    %5341 = vmatprep.subr.bf16.mxu0 %v5261
    %5342 = vmatpush1.bf16.msra.mxu0 %v5260
    %5343 = vmatprep.subr.bf16.mxu0 %v5257
    %5344 = vmatpush1.bf16.msra.mxu0 %v5256
    %5345 = vmatprep.subr.bf16.mxu0 %v5253
    %5346 = vmatpush1.bf16.msra.mxu0 %v5252
    %5347 = vmatprep.subr.bf16.mxu0 %v5249
    %5348 = vmatpush1.bf16.msra.mxu0 %v5248
    %5349 = vmatprep.subr.bf16.mxu0 %v5245
    %5350 = vmatpush1.bf16.msra.mxu0 %v5244
    %5351 = vmatprep.subr.bf16.mxu0 %v5241
    %5352 = vmatpush1.bf16.msra.mxu0 %v5240
    %5353 = vmatprep.subr.bf16.mxu0 %v5237
    %5354 = vmatpush1.bf16.msra.mxu0 %v5236
    %5355 = vmatprep.subr.bf16.mxu0 0
    %5356 = vmatpush2.bf16.msra.mxu0 0
    %5357 = vmatprep.subr.bf16.mxu0 0
    %5358 = vmatpush2.bf16.msra.mxu0 0
    %5359 = vmatprep.subr.bf16.mxu0 0
    %5360 = vmatpush2.bf16.msra.mxu0 0
    %5361 = vmatprep.subr.bf16.mxu0 0
    %5362 = vmatpush2.bf16.msra.mxu0 0
    %5363 = vmatprep.subr.bf16.mxu0 0
    %5364 = vmatpush2.bf16.msra.mxu0 0
    %5365 = vmatprep.subr.bf16.mxu0 0
    %5366 = vmatpush2.bf16.msra.mxu0 0
    %5367 = vmatprep.subr.bf16.mxu0 0
    %5368 = vmatpush2.bf16.msra.mxu0 0
    %5369 = vmatprep.subr.bf16.mxu0 0
    %5370 = vmatpush2.bf16.msra.mxu0 0
    %5371 = vmatprep.mubr.bf16.mxu0 0
    %5372 = vmatmul.mubr.bf16.gmra.mxu0 %v5105
    %v5373 = vpop.f32.mrf.mxu0
    %v5374 = vadd.f32 0.0, %v5373
    %v5375 = vpop.f32.mrf.mxu0
    %v5376 = vadd.f32 0.0, %v5375
    %v5377 = vpop.f32.mrf.mxu0
    %v5378 = vpop.f32.mrf.mxu0
    %5379 = vdwg.mxu0
    %v5380 = vadd.f32 %v5101, %v5333
    %v5381 = vadd.f32 %v5102, %v5335
    %v5382 = vadd.f32 %v5103, %v5374
    %v5383 = vadd.f32 %v5104, %v5376
    %v5384 = vxor.u32 %v5380, 2147483648
    %v5385 = vxor.u32 %v5381, 2147483648
    %v5386 = vxor.u32 %v5382, 2147483648
    %v5387 = vmul.f32 %v5384, 1.442695
    %v5388 = vpow.pop %v5387
    %v5389 = vmul.f32 %v5385, 1.442695
    %v5390 = vpow.pop %v5389
    %v5391 = vmul.f32 %v5386, 1.442695
    %v5392 = vpow.pop %v5391
    %v5393 = vadd.f32 %v5388, 1.0
    %v5394 = vadd.f32 %v5390, 1.0
    %v5395 = vadd.f32 %v5392, 1.0
    %v5396 = vrcp.pop %v5393
    %v5397 = vmul.f32 1.0, %v5396
    %v5398 = vrcp.pop %v5394
    %v5399 = vmul.f32 1.0, %v5398
    %v5400 = vrcp.pop %v5395
    %v5401 = vmul.f32 1.0, %v5400
    %v5402 = vtanh.pop %v5383
    %v5403 = vmul.f32 %v5399, %v5097
    %v5404 = vmul.f32 %v5397, %v5402
    %v5405 = vadd.f32 %v5403, %v5404
    %v5406 = vtanh.pop %v5405
    %v5407 = vmul.f32 %v5401, %v5406
    %5408 = vst [vmem:[%s2510] sm:$0xff] %v5407
    %v5409 = vld [vmem:[%s2512] sm:$0xff]
    %v5410 = vld [vmem:[%s2512 + $0x8] sm:$0xff]
    %v5411 = vld [vmem:[%s2512 + $0x10] sm:$0xff]
    %v5412 = vld [vmem:[%s2512 + $0x18] sm:$0xff]
    %v5413 = vpack.c.bf16 %v5407, %v5407
    %v5414 = vld [vmem:[#allocation8] sm:$0xff]
    %v5415 = vld [vmem:[#allocation8 + $0x8] sm:$0xff]
    %v5416 = vld [vmem:[#allocation8 + $0x10] sm:$0xff]
    %v5417 = vld [vmem:[#allocation8 + $0x18] sm:$0xff]
    %v5418 = vld [vmem:[#allocation8 + $0x20] sm:$0xff]
    %v5419 = vld [vmem:[#allocation8 + $0x28] sm:$0xff]
    %v5420 = vld [vmem:[#allocation8 + $0x30] sm:$0xff]
    %v5421 = vld [vmem:[#allocation8 + $0x38] sm:$0xff]
    %v5422 = vld [vmem:[#allocation8 + $0x40] sm:$0xff]
    %v5423 = vld [vmem:[#allocation8 + $0x48] sm:$0xff]
    %v5424 = vld [vmem:[#allocation8 + $0x50] sm:$0xff]
    %v5425 = vld [vmem:[#allocation8 + $0x58] sm:$0xff]
    %v5426 = vld [vmem:[#allocation8 + $0x60] sm:$0xff]
    %v5427 = vld [vmem:[#allocation8 + $0x68] sm:$0xff]
    %v5428 = vld [vmem:[#allocation8 + $0x70] sm:$0xff]
    %v5429 = vld [vmem:[#allocation8 + $0x78] sm:$0xff]
    %v5430 = vld [vmem:[#allocation8 + $0x80] sm:$0xff]
    %v5431 = vld [vmem:[#allocation8 + $0x88] sm:$0xff]
    %v5432 = vld [vmem:[#allocation8 + $0x90] sm:$0xff]
    %v5433 = vld [vmem:[#allocation8 + $0x98] sm:$0xff]
    %v5434 = vld [vmem:[#allocation8 + $0xa0] sm:$0xff]
    %v5435 = vld [vmem:[#allocation8 + $0xa8] sm:$0xff]
    %v5436 = vld [vmem:[#allocation8 + $0xb0] sm:$0xff]
    %v5437 = vld [vmem:[#allocation8 + $0xb8] sm:$0xff]
    %v5438 = vld [vmem:[#allocation8 + $0xc0] sm:$0xff]
    %v5439 = vld [vmem:[#allocation8 + $0xc8] sm:$0xff]
    %v5440 = vld [vmem:[#allocation8 + $0xd0] sm:$0xff]
    %v5441 = vld [vmem:[#allocation8 + $0xd8] sm:$0xff]
    %v5442 = vld [vmem:[#allocation8 + $0xe0] sm:$0xff]
    %v5443 = vld [vmem:[#allocation8 + $0xe8] sm:$0xff]
    %v5444 = vld [vmem:[#allocation8 + $0xf0] sm:$0xff]
    %v5445 = vld [vmem:[#allocation8 + $0xf8] sm:$0xff]
    %v5478 = vunpack.c.l.b16 %v5414
    %v5479 = vunpack.c.h.b16 %v5414
    %v5480 = vunpack.c.l.b16 %v5415
    %v5481 = vunpack.c.h.b16 %v5415
    %v5482 = vunpack.c.l.b16 %v5416
    %v5483 = vunpack.c.h.b16 %v5416
    %v5484 = vunpack.c.l.b16 %v5417
    %v5485 = vunpack.c.h.b16 %v5417
    %v5486 = vunpack.c.l.b16 %v5418
    %v5487 = vunpack.c.h.b16 %v5418
    %v5488 = vunpack.c.l.b16 %v5419
    %v5489 = vunpack.c.h.b16 %v5419
    %v5490 = vunpack.c.l.b16 %v5420
    %v5491 = vunpack.c.h.b16 %v5420
    %v5492 = vunpack.c.l.b16 %v5421
    %v5493 = vunpack.c.h.b16 %v5421
    %v5494 = vunpack.c.l.b16 %v5422
    %v5495 = vunpack.c.h.b16 %v5422
    %v5496 = vunpack.c.l.b16 %v5423
    %v5497 = vunpack.c.h.b16 %v5423
    %v5498 = vunpack.c.l.b16 %v5424
    %v5499 = vunpack.c.h.b16 %v5424
    %v5500 = vunpack.c.l.b16 %v5425
    %v5501 = vunpack.c.h.b16 %v5425
    %v5502 = vunpack.c.l.b16 %v5426
    %v5503 = vunpack.c.h.b16 %v5426
    %v5504 = vunpack.c.l.b16 %v5427
    %v5505 = vunpack.c.h.b16 %v5427
    %v5506 = vunpack.c.l.b16 %v5428
    %v5507 = vunpack.c.h.b16 %v5428
    %v5508 = vunpack.c.l.b16 %v5429
    %v5509 = vunpack.c.h.b16 %v5429
    %v5510 = vunpack.c.l.b16 %v5430
    %v5511 = vunpack.c.h.b16 %v5430
    %v5512 = vunpack.c.l.b16 %v5431
    %v5513 = vunpack.c.h.b16 %v5431
    %v5514 = vunpack.c.l.b16 %v5432
    %v5515 = vunpack.c.h.b16 %v5432
    %v5516 = vunpack.c.l.b16 %v5433
    %v5517 = vunpack.c.h.b16 %v5433
    %v5518 = vunpack.c.l.b16 %v5434
    %v5519 = vunpack.c.h.b16 %v5434
    %v5520 = vunpack.c.l.b16 %v5435
    %v5521 = vunpack.c.h.b16 %v5435
    %v5522 = vunpack.c.l.b16 %v5436
    %v5523 = vunpack.c.h.b16 %v5436
    %v5524 = vunpack.c.l.b16 %v5437
    %v5525 = vunpack.c.h.b16 %v5437
    %v5526 = vunpack.c.l.b16 %v5438
    %v5527 = vunpack.c.h.b16 %v5438
    %v5528 = vunpack.c.l.b16 %v5439
    %v5529 = vunpack.c.h.b16 %v5439
    %v5530 = vunpack.c.l.b16 %v5440
    %v5531 = vunpack.c.h.b16 %v5440
    %v5532 = vunpack.c.l.b16 %v5441
    %v5533 = vunpack.c.h.b16 %v5441
    %v5534 = vunpack.c.l.b16 %v5442
    %v5535 = vunpack.c.h.b16 %v5442
    %v5536 = vunpack.c.l.b16 %v5443
    %v5537 = vunpack.c.h.b16 %v5443
    %v5538 = vunpack.c.l.b16 %v5444
    %v5539 = vunpack.c.h.b16 %v5444
    %v5540 = vunpack.c.l.b16 %v5445
    %v5541 = vunpack.c.h.b16 %v5445
    %v5542 = vpack.c.b16 %v5482, %v5478
    %v5543 = vpack.c.b16 %v5483, %v5479
    %v5544 = vpack.c.b16 %v5484, %v5480
    %v5545 = vpack.c.b16 %v5485, %v5481
    %v5546 = vpack.c.b16 %v5490, %v5486
    %v5547 = vpack.c.b16 %v5491, %v5487
    %v5548 = vpack.c.b16 %v5492, %v5488
    %v5549 = vpack.c.b16 %v5493, %v5489
    %v5550 = vpack.c.b16 %v5498, %v5494
    %v5551 = vpack.c.b16 %v5499, %v5495
    %v5552 = vpack.c.b16 %v5500, %v5496
    %v5553 = vpack.c.b16 %v5501, %v5497
    %v5554 = vpack.c.b16 %v5506, %v5502
    %v5555 = vpack.c.b16 %v5507, %v5503
    %v5556 = vpack.c.b16 %v5508, %v5504
    %v5557 = vpack.c.b16 %v5509, %v5505
    %v5558 = vpack.c.b16 %v5514, %v5510
    %v5559 = vpack.c.b16 %v5515, %v5511
    %v5560 = vpack.c.b16 %v5516, %v5512
    %v5561 = vpack.c.b16 %v5517, %v5513
    %v5562 = vpack.c.b16 %v5522, %v5518
    %v5563 = vpack.c.b16 %v5523, %v5519
    %v5564 = vpack.c.b16 %v5524, %v5520
    %v5565 = vpack.c.b16 %v5525, %v5521
    %v5566 = vpack.c.b16 %v5530, %v5526
    %v5567 = vpack.c.b16 %v5531, %v5527
    %v5568 = vpack.c.b16 %v5532, %v5528
    %v5569 = vpack.c.b16 %v5533, %v5529
    %v5570 = vpack.c.b16 %v5538, %v5534
    %v5571 = vpack.c.b16 %v5539, %v5535
    %v5572 = vpack.c.b16 %v5540, %v5536
    %v5573 = vpack.c.b16 %v5541, %v5537
    %5606 = vmatprep.subr.bf16.mxu0 %v5571
    %5607 = vmatpush1.bf16.msra.mxu0 %v5570
    %5608 = vmatprep.subr.bf16.mxu0 %v5567
    %5609 = vmatpush1.bf16.msra.mxu0 %v5566
    %5610 = vmatprep.subr.bf16.mxu0 %v5563
    %5611 = vmatpush1.bf16.msra.mxu0 %v5562
    %5612 = vmatprep.subr.bf16.mxu0 %v5559
    %5613 = vmatpush1.bf16.msra.mxu0 %v5558
    %5614 = vmatprep.subr.bf16.mxu0 %v5555
    %5615 = vmatpush1.bf16.msra.mxu0 %v5554
    %5616 = vmatprep.subr.bf16.mxu0 %v5551
    %5617 = vmatpush1.bf16.msra.mxu0 %v5550
    %5618 = vmatprep.subr.bf16.mxu0 %v5547
    %5619 = vmatpush1.bf16.msra.mxu0 %v5546
    %5620 = vmatprep.subr.bf16.mxu0 %v5543
    %5621 = vmatpush1.bf16.msra.mxu0 %v5542
    %5622 = vmatprep.subr.bf16.mxu0 0
    %5623 = vmatpush2.bf16.msra.mxu0 0
    %5624 = vmatprep.subr.bf16.mxu0 0
    %5625 = vmatpush2.bf16.msra.mxu0 0
    %5626 = vmatprep.subr.bf16.mxu0 0
    %5627 = vmatpush2.bf16.msra.mxu0 0
    %5628 = vmatprep.subr.bf16.mxu0 0
    %5629 = vmatpush2.bf16.msra.mxu0 0
    %5630 = vmatprep.subr.bf16.mxu0 0
    %5631 = vmatpush2.bf16.msra.mxu0 0
    %5632 = vmatprep.subr.bf16.mxu0 0
    %5633 = vmatpush2.bf16.msra.mxu0 0
    %5634 = vmatprep.subr.bf16.mxu0 0
    %5635 = vmatpush2.bf16.msra.mxu0 0
    %5636 = vmatprep.subr.bf16.mxu0 0
    %5637 = vmatpush2.bf16.msra.mxu0 0
    %5638 = vmatprep.mubr.bf16.mxu0 0
    %5639 = vmatmul.mubr.bf16.gmra.mxu0 %v5413
    %v5640 = vpop.f32.mrf.mxu0
    %v5641 = vadd.f32 0.0, %v5640
    %v5642 = vpop.f32.mrf.mxu0
    %v5643 = vadd.f32 0.0, %v5642
    %v5644 = vpop.f32.mrf.mxu0
    %v5645 = vpop.f32.mrf.mxu0
    %5646 = vdwg.mxu0
    %5647 = vmatprep.subr.bf16.mxu0 %v5573
    %5648 = vmatpush1.bf16.msra.mxu0 %v5572
    %5649 = vmatprep.subr.bf16.mxu0 %v5569
    %5650 = vmatpush1.bf16.msra.mxu0 %v5568
    %5651 = vmatprep.subr.bf16.mxu0 %v5565
    %5652 = vmatpush1.bf16.msra.mxu0 %v5564
    %5653 = vmatprep.subr.bf16.mxu0 %v5561
    %5654 = vmatpush1.bf16.msra.mxu0 %v5560
    %5655 = vmatprep.subr.bf16.mxu0 %v5557
    %5656 = vmatpush1.bf16.msra.mxu0 %v5556
    %5657 = vmatprep.subr.bf16.mxu0 %v5553
    %5658 = vmatpush1.bf16.msra.mxu0 %v5552
    %5659 = vmatprep.subr.bf16.mxu0 %v5549
    %5660 = vmatpush1.bf16.msra.mxu0 %v5548
    %5661 = vmatprep.subr.bf16.mxu0 %v5545
    %5662 = vmatpush1.bf16.msra.mxu0 %v5544
    %5663 = vmatprep.subr.bf16.mxu0 0
    %5664 = vmatpush2.bf16.msra.mxu0 0
    %5665 = vmatprep.subr.bf16.mxu0 0
    %5666 = vmatpush2.bf16.msra.mxu0 0
    %5667 = vmatprep.subr.bf16.mxu0 0
    %5668 = vmatpush2.bf16.msra.mxu0 0
    %5669 = vmatprep.subr.bf16.mxu0 0
    %5670 = vmatpush2.bf16.msra.mxu0 0
    %5671 = vmatprep.subr.bf16.mxu0 0
    %5672 = vmatpush2.bf16.msra.mxu0 0
    %5673 = vmatprep.subr.bf16.mxu0 0
    %5674 = vmatpush2.bf16.msra.mxu0 0
    %5675 = vmatprep.subr.bf16.mxu0 0
    %5676 = vmatpush2.bf16.msra.mxu0 0
    %5677 = vmatprep.subr.bf16.mxu0 0
    %5678 = vmatpush2.bf16.msra.mxu0 0
    %5679 = vmatprep.mubr.bf16.mxu0 0
    %5680 = vmatmul.mubr.bf16.gmra.mxu0 %v5413
    %v5681 = vpop.f32.mrf.mxu0
    %v5682 = vadd.f32 0.0, %v5681
    %v5683 = vpop.f32.mrf.mxu0
    %v5684 = vadd.f32 0.0, %v5683
    %v5685 = vpop.f32.mrf.mxu0
    %v5686 = vpop.f32.mrf.mxu0
    %5687 = vdwg.mxu0
    %v5688 = vadd.f32 %v5409, %v5641
    %v5689 = vadd.f32 %v5410, %v5643
    %v5690 = vadd.f32 %v5411, %v5682
    %v5691 = vadd.f32 %v5412, %v5684
    %v5692 = vxor.u32 %v5688, 2147483648
    %v5693 = vxor.u32 %v5689, 2147483648
    %v5694 = vxor.u32 %v5690, 2147483648
    %v5695 = vmul.f32 %v5692, 1.442695
    %v5696 = vpow.pop %v5695
    %v5697 = vmul.f32 %v5693, 1.442695
    %v5698 = vpow.pop %v5697
    %v5699 = vmul.f32 %v5694, 1.442695
    %v5700 = vpow.pop %v5699
    %v5701 = vadd.f32 %v5696, 1.0
    %v5702 = vadd.f32 %v5698, 1.0
    %v5703 = vadd.f32 %v5700, 1.0
    %v5704 = vrcp.pop %v5701
    %v5705 = vmul.f32 1.0, %v5704
    %v5706 = vrcp.pop %v5702
    %v5707 = vmul.f32 1.0, %v5706
    %v5708 = vrcp.pop %v5703
    %v5709 = vmul.f32 1.0, %v5708
    %v5710 = vtanh.pop %v5691
    %v5711 = vmul.f32 %v5707, %v5405
    %v5712 = vmul.f32 %v5705, %v5710
    %v5713 = vadd.f32 %v5711, %v5712
    %v5714 = vtanh.pop %v5713
    %v5715 = vmul.f32 %v5709, %v5714
    %5716 = vst [vmem:[%s2820] sm:$0xff] %v5715
    %v5717 = vld [vmem:[#allocation3] sm:$0xff]
    %v5718 = vld [vmem:[#allocation3 + $0x8] sm:$0xff]
    %v5719 = vld [vmem:[#allocation3 + $0x10] sm:$0xff]
    %v5720 = vld [vmem:[#allocation3 + $0x18] sm:$0xff]
    %v5721 = vld [vmem:[#allocation3 + $0x20] sm:$0xff]
    %v5722 = vld [vmem:[#allocation3 + $0x28] sm:$0xff]
    %v5723 = vld [vmem:[#allocation3 + $0x30] sm:$0xff]
    %v5724 = vld [vmem:[#allocation3 + $0x38] sm:$0xff]
    %v5725 = vpack.c.bf16 %v5717, %v5717
    %v5726 = vpack.c.bf16 %v5718, %v5718
    %v5727 = vpack.c.bf16 %v5719, %v5719
    %v5728 = vpack.c.bf16 %v5720, %v5720
    %v5729 = vpack.c.bf16 %v5721, %v5721
    %v5730 = vpack.c.bf16 %v5722, %v5722
    %v5731 = vpack.c.bf16 %v5723, %v5723
    %v5732 = vpack.c.bf16 %v5724, %v5724
    %v5733 = vld [vmem:[%s8] sm:$0xf]
    %v5734 = vld [vmem:[%s8 + $0x4] sm:$0xf]
    %v5735 = vld [vmem:[%s8 + $0x8] sm:$0xf]
    %v5736 = vld [vmem:[%s8 + $0xc] sm:$0xf]
    %v5737 = vld [vmem:[%s8 + $0x10] sm:$0xf]
    %v5738 = vld [vmem:[%s8 + $0x14] sm:$0xf]
    %v5739 = vld [vmem:[%s8 + $0x18] sm:$0xf]
    %v5740 = vld [vmem:[%s8 + $0x1c] sm:$0xf]
    %v5741 = vld [vmem:[%s8 + $0x20] sm:$0xf]
    %v5742 = vld [vmem:[%s8 + $0x24] sm:$0xf]
    %v5743 = vld [vmem:[%s8 + $0x28] sm:$0xf]
    %v5744 = vld [vmem:[%s8 + $0x2c] sm:$0xf]
    %v5745 = vld [vmem:[%s8 + $0x30] sm:$0xf]
    %v5746 = vld [vmem:[%s8 + $0x34] sm:$0xf]
    %v5747 = vld [vmem:[%s8 + $0x38] sm:$0xf]
    %v5748 = vld [vmem:[%s8 + $0x3c] sm:$0xf]
    %v5749 = vld [vmem:[%s9] sm:$0x1]
    %v5751 = vlaneseq
    %v5752 = vshrl.u32 %v5751, 7
    %v5753 = vsub.s32 0, %v5752
    %v5754 = vrot.slane %v5749, %v5753
    %v5764 = vunpack.c.l.b16 %v5725
    %v5765 = vunpack.c.l.b16 %v5726
    %v5766 = vunpack.c.l.b16 %v5727
    %v5767 = vunpack.c.l.b16 %v5728
    %v5768 = vunpack.c.l.b16 %v5729
    %v5769 = vunpack.c.l.b16 %v5730
    %v5770 = vunpack.c.l.b16 %v5731
    %v5771 = vunpack.c.l.b16 %v5732
    %v5772 = vpack.c.b16 %v5765, %v5764
    %v5773 = vpack.c.b16 %v5767, %v5766
    %v5774 = vpack.c.b16 %v5769, %v5768
    %v5775 = vpack.c.b16 %v5771, %v5770
    %v5796 = vunpack.c.l.b16 %v5733
    %v5797 = vunpack.c.l.b16 %v5734
    %v5798 = vunpack.c.l.b16 %v5735
    %v5799 = vunpack.c.l.b16 %v5736
    %v5800 = vunpack.c.l.b16 %v5737
    %v5801 = vunpack.c.l.b16 %v5738
    %v5802 = vunpack.c.l.b16 %v5739
    %v5803 = vunpack.c.l.b16 %v5740
    %v5804 = vunpack.c.l.b16 %v5741
    %v5805 = vunpack.c.l.b16 %v5742
    %v5806 = vunpack.c.l.b16 %v5743
    %v5807 = vunpack.c.l.b16 %v5744
    %v5808 = vunpack.c.l.b16 %v5745
    %v5809 = vunpack.c.l.b16 %v5746
    %v5810 = vunpack.c.l.b16 %v5747
    %v5811 = vunpack.c.l.b16 %v5748
    %v5812 = vpack.c.b16 %v5797, %v5796
    %v5813 = vpack.c.b16 %v5799, %v5798
    %v5814 = vpack.c.b16 %v5801, %v5800
    %v5815 = vpack.c.b16 %v5803, %v5802
    %v5816 = vpack.c.b16 %v5805, %v5804
    %v5817 = vpack.c.b16 %v5807, %v5806
    %v5818 = vpack.c.b16 %v5809, %v5808
    %v5819 = vpack.c.b16 %v5811, %v5810
    %5828 = vmatprep.subr.bf16.mxu0 0
    %5829 = vmatpush1.bf16.msra.mxu0 %v5819
    %5830 = vmatprep.subr.bf16.mxu0 0
    %5831 = vmatpush1.bf16.msra.mxu0 %v5818
    %5832 = vmatprep.subr.bf16.mxu0 0
    %5833 = vmatpush1.bf16.msra.mxu0 %v5817
    %5834 = vmatprep.subr.bf16.mxu0 0
    %5835 = vmatpush1.bf16.msra.mxu0 %v5816
    %5836 = vmatprep.subr.bf16.mxu0 0
    %5837 = vmatpush1.bf16.msra.mxu0 %v5815
    %5838 = vmatprep.subr.bf16.mxu0 0
    %5839 = vmatpush1.bf16.msra.mxu0 %v5814
    %5840 = vmatprep.subr.bf16.mxu0 0
    %5841 = vmatpush1.bf16.msra.mxu0 %v5813
    %5842 = vmatprep.subr.bf16.mxu0 0
    %5843 = vmatpush1.bf16.msra.mxu0 %v5812
    %5844 = vmatprep.subr.bf16.mxu0 0
    %5845 = vmatpush2.bf16.msra.mxu0 0
    %5846 = vmatprep.subr.bf16.mxu0 0
    %5847 = vmatpush2.bf16.msra.mxu0 0
    %5848 = vmatprep.subr.bf16.mxu0 0
    %5849 = vmatpush2.bf16.msra.mxu0 0
    %5850 = vmatprep.subr.bf16.mxu0 0
    %5851 = vmatpush2.bf16.msra.mxu0 0
    %5852 = vmatprep.subr.bf16.mxu0 0
    %5853 = vmatpush2.bf16.msra.mxu0 0
    %5854 = vmatprep.subr.bf16.mxu0 0
    %5855 = vmatpush2.bf16.msra.mxu0 0
    %5856 = vmatprep.subr.bf16.mxu0 0
    %5857 = vmatpush2.bf16.msra.mxu0 0
    %5858 = vmatprep.subr.bf16.mxu0 0
    %5859 = vmatpush2.bf16.msra.mxu0 0
    %5860 = vmatprep.mubr.bf16.mxu0 0
    %5861 = vmatmul.mubr.bf16.gmra.mxu0 %v5772
    %v5862 = vpop.f32.mrf.mxu0
    %v5863 = vadd.f32 %v5754, %v5862
    %v5864 = vpop.f32.mrf.mxu0
    %v5865 = vpop.f32.mrf.mxu0
    %v5866 = vadd.f32 %v5754, %v5865
    %v5867 = vpop.f32.mrf.mxu0
    %5868 = vmatprep.mubr.bf16.mxu0 0
    %5869 = vmatmul.mubr.bf16.gmra.mxu0 %v5773
    %v5870 = vpop.f32.mrf.mxu0
    %v5871 = vadd.f32 %v5754, %v5870
    %v5872 = vpop.f32.mrf.mxu0
    %v5873 = vpop.f32.mrf.mxu0
    %v5874 = vadd.f32 %v5754, %v5873
    %v5875 = vpop.f32.mrf.mxu0
    %5876 = vmatprep.mubr.bf16.mxu0 0
    %5877 = vmatmul.mubr.bf16.gmra.mxu0 %v5774
    %v5878 = vpop.f32.mrf.mxu0
    %v5879 = vadd.f32 %v5754, %v5878
    %v5880 = vpop.f32.mrf.mxu0
    %v5881 = vpop.f32.mrf.mxu0
    %v5882 = vadd.f32 %v5754, %v5881
    %v5883 = vpop.f32.mrf.mxu0
    %5884 = vmatprep.mubr.bf16.mxu0 0
    %5885 = vmatmul.mubr.bf16.gmra.mxu0 %v5775
    %v5886 = vpop.f32.mrf.mxu0
    %v5887 = vadd.f32 %v5754, %v5886
    %v5888 = vpop.f32.mrf.mxu0
    %v5889 = vpop.f32.mrf.mxu0
    %v5890 = vadd.f32 %v5754, %v5889
    %v5891 = vpop.f32.mrf.mxu0
    %5892 = vdwg.mxu0
    %v5893 = vld [vmem:[%s7] sm:$0xff]
    %5894 = vset.pattern.permute.xlu0 0
    %5895 = vperm.xlu0 %5894, %v5893
    %v5896 = vpop.permute.xlu0 %5895
    %v5897 = vld [vmem:[%s10] sm:$0x1]
    %v5899 = vlaneseq
    %v5900 = vshrl.u32 %v5899, 7
    %v5901 = vsub.s32 0, %v5900
    %v5902 = vrot.slane %v5897, %v5901
    %vm5904 = vcmp.gt.s32.totalorder %v5896, 0
    %vm5905 = vcmp.gt.s32.totalorder %v5896, 1
    %vm5906 = vcmp.gt.s32.totalorder %v5896, 2
    %vm5907 = vcmp.gt.s32.totalorder %v5896, 3
    %vm5908 = vcmp.gt.s32.totalorder %v5896, 4
    %vm5909 = vcmp.gt.s32.totalorder %v5896, 5
    %vm5910 = vcmp.gt.s32.totalorder %v5896, 6
    %vm5911 = vcmp.gt.s32.totalorder %v5896, 7
    %v5912 = vsel %vm5904, %v5863, %v5902
    %v5913 = vsel %vm5905, %v5866, %v5902
    %v5914 = vsel %vm5906, %v5871, %v5902
    %v5915 = vsel %vm5907, %v5874, %v5902
    %v5916 = vsel %vm5908, %v5879, %v5902
    %v5917 = vsel %vm5909, %v5882, %v5902
    %v5918 = vsel %vm5910, %v5887, %v5902
    %v5919 = vsel %vm5911, %v5890, %v5902
    %vm5920 = vcmask 31744
    %5921 = vst.msk [vmem:[%s11] sm:$0xff] %vm5920, %v5912
    %5922 = vst.msk [vmem:[%s11 + $0x8] sm:$0xff] %vm5920, %v5913
    %5923 = vst.msk [vmem:[%s11 + $0x10] sm:$0xff] %vm5920, %v5914
    %5924 = vst.msk [vmem:[%s11 + $0x18] sm:$0xff] %vm5920, %v5915
    %5925 = vst.msk [vmem:[%s11 + $0x20] sm:$0xff] %vm5920, %v5916
    %5926 = vst.msk [vmem:[%s11 + $0x28] sm:$0xff] %vm5920, %v5917
    %5927 = vst.msk [vmem:[%s11 + $0x30] sm:$0xff] %vm5920, %v5918
    %5928 = vst.msk [vmem:[%s11 + $0x38] sm:$0xff] %vm5920, %v5919
    // Predicated region
    $region58: #{tpu_custom_call.1} parent=1 // pred_check
      _
    $region59: #{tpu_custom_call.1} parent=1 // pred_check_branch
      %5930 = sbr.rel (0) target = $region61
    $region60: #{tpu_custom_call.1} parent=1 // pred_region
      _
    $region61: #{tpu_custom_call.1} parent=1 // pred_fallthru
      _
    // Predicated region
    $region62: #{tpu_custom_call.1} parent=1 // pred_check
      _
    $region63: #{tpu_custom_call.1} parent=1 // pred_check_branch
      %5932 = sbr.rel (0) target = $region65
    $region64: #{tpu_custom_call.1} parent=1 // pred_region
      _
    $region65: #{tpu_custom_call.1} parent=1 // pred_fallthru
      _
    %5933 = vsyncpa [#allocation5], 1
    %5934 = vsyncpa [#allocation7], 1

</llo_original>
